<compile_context>
chip_gen: v5e
topology: v5e:2x2
jax: 0.10.0
libtpu: 0.0.40
codegen_flags: <defaults>
</compile_context>

<pallas_src>
import functools

import jax
import jax.numpy as jnp
from jax.experimental import pallas as pl
from jax.experimental.pallas import tpu as pltpu

KERNEL_SIZE = 51
PAD = KERNEL_SIZE // 2
LAYER = 8
N_LAYERS = 6
TAP_GROUP = 16  # taps per matmul chunk -> contraction depth 16*8 = 128


def _smooth_fused_kernel(x_ref, w_ref, b_ref, o_ref, *, length, nb):
    # x_ref: (nb, 1, L)              input batch block (Cin = 1)
    # w_ref: (6, 8, K*8)             per-layer weights, flattened (Cout, K*Cin)
    # b_ref: (6, 8, 1)               per-layer biases (zero padded)
    # o_ref: (nb, 1, L)              output batch block (Cout = 1)
    f32 = jnp.float32
    zeros_rest = jnp.zeros((LAYER - 1, length), f32)

    # Per-batch activations, channels on sublanes: each (8, L).  The 1-channel
    # input sits in row 0; rows 1..7 are zero (layer-0 weights are zero-padded
    # to the same 8-channel plan, so those rows contribute exactly zero).
    hs = [jnp.concatenate([x_ref[b].astype(f32), zeros_rest], axis=0)
          for b in range(nb)]

    for li in range(N_LAYERS):
        w = w_ref[li].astype(f32)        # (8, K*8), column index = t*8 + ci
        bias = b_ref[li].astype(f32)     # (8, 1)

        # In-kernel circular padding (values only, no HBM traffic).
        hps = [jnp.concatenate([h[:, length - PAD:], h, h[:, :PAD]], axis=-1)
               for h in hs]              # each (8, L + 2*PAD)

        acc = jnp.zeros((LAYER, nb * length), f32)
        # A few deep-contraction matmuls per layer instead of 51 shallow dots.
        # Each chunk: (8, <=128) @ (<=128, nb*L); weight slice is 128-aligned.
        for t0 in range(0, KERNEL_SIZE, TAP_GROUP):
            t1 = min(t0 + TAP_GROUP, KERNEL_SIZE)
            cols = jnp.concatenate(
                [jnp.concatenate([hp[:, t:t + length] for t in range(t0, t1)],
                                 axis=0)
                 for hp in hps],
                axis=-1)                 # ((t1-t0)*8, nb*L) im2col slab chunk
            acc = acc + jnp.dot(w[:, t0 * LAYER:t1 * LAYER], cols,
                                preferred_element_type=f32)

        out = acc + bias                 # (8, nb*L), bias broadcasts over lanes
        if li < N_LAYERS - 1:
            out = jnp.maximum(out, 0.0)  # ReLU after every layer but the last
        hs = [out[:, b * length:(b + 1) * length] for b in range(nb)]

    # Channel 0 of the final layer is the network output (rows 1..7 are zero
    # because the last layer's weight/bias rows were zero-padded).
    for b in range(nb):
        o_ref[b] = hs[b][0:1, :].astype(o_ref.dtype)


def _pack_params(params):
    """Zero-pad every layer to an (8 -> 8) channel plan and flatten weights to
    (Cout, K*Cin) with column index t*Cin + ci, matching the in-kernel im2col."""
    w_all, b_all = [], []
    for w, b in params:
        cout, cin, k = w.shape
        wp = jnp.zeros((LAYER, LAYER, k), jnp.float32).at[:cout, :cin, :].set(w)
        bp = jnp.zeros((LAYER,), jnp.float32).at[:cout].set(b)
        # (cout, cin, k) -> (cout, k, cin) -> (cout, k*cin)
        w_all.append(jnp.transpose(wp, (0, 2, 1)).reshape(LAYER, k * LAYER))
        b_all.append(bp.reshape(LAYER, 1))
    return jnp.stack(w_all), jnp.stack(b_all)  # (6, 8, K*8), (6, 8, 1)


def _pick_batch_block(n, length):
    """Pick NB batch elements per grid step so NB*L is a multiple of 128 when
    possible (lane-dense tiles) while keeping >= 2 grid steps when the batch
    allows (both v7x TensorCores busy with dimension_semantics='parallel')."""
    best = 1
    for nb in range(1, n + 1):
        if n % nb:
            continue
        if nb * length > 512:          # keep the packed tile modest
            break
        lane_dense = (nb * length) % 128 == 0
        multi_step = (n // nb) >= 2 or n == 1
        if lane_dense and multi_step:
            best = nb
    return best


def smooth_forward(params, x):
    """x: (N, 1, L) -> (N, 1, L). Fully fused circular Conv1d + ReLU stack."""
    n, cin, length = x.shape
    assert cin == 1, "Smooth expects single-channel input"
    if len(params) != N_LAYERS:
        raise ValueError("expected 6 conv layers")
    if length < PAD:
        # Same restriction PyTorch's circular padding has (pad <= input size).
        raise ValueError(f"sequence length {length} must be >= {PAD}")

    w_all, b_all = _pack_params(params)
    nb = _pick_batch_block(n, length)
    grid = (n // nb,)

    kernel = functools.partial(_smooth_fused_kernel, length=length, nb=nb)
    return pl.pallas_call(
        kernel,
        out_shape=jax.ShapeDtypeStruct((n, 1, length), jnp.float32),
        grid=grid,
        in_specs=[
            pl.BlockSpec((nb, 1, length), lambda i: (i, 0, 0)),   # batch block
            pl.BlockSpec((N_LAYERS, LAYER, KERNEL_SIZE * LAYER),
                         lambda i: (0, 0, 0)),                    # weights, resident
            pl.BlockSpec((N_LAYERS, LAYER, 1),
                         lambda i: (0, 0, 0)),                    # biases, resident
        ],
        out_specs=pl.BlockSpec((nb, 1, length), lambda i: (i, 0, 0)),
        compiler_params=pltpu.CompilerParams(
            dimension_semantics=("parallel",)),
    )(x, w_all, b_all)


def init_smooth_params(key):
    """Deterministic synthetic parameters matching Smooth.__init__ shapes."""
    channel_plan = [(1, LAYER), (LAYER, LAYER), (LAYER, LAYER),
                    (LAYER, LAYER), (LAYER, LAYER), (LAYER, 1)]
    params = []
    for cin, cout in channel_plan:
        key, kw, kb = jax.random.split(key, 3)
        fan_in = cin * KERNEL_SIZE
        scale = 1.0 / jnp.sqrt(jnp.float32(fan_in))
        w = jax.random.uniform(kw, (cout, cin, KERNEL_SIZE), jnp.float32,
                               minval=-scale, maxval=scale)
        b = jax.random.uniform(kb, (cout,), jnp.float32, minval=-scale, maxval=scale)
        params.append((w, b))
    return params


def _reference_forward(params, x):
    """Pure-JAX reference (einsum over circularly padded input)."""
    h = x
    n_layers = len(params)
    for i, (w, b) in enumerate(params):
        _, _, length = h.shape
        ksize = w.shape[-1]
        pad = ksize // 2
        hp = jnp.concatenate([h[..., length - pad:], h, h[..., :pad]], axis=-1)
        cols = jnp.stack([hp[..., t:t + length] for t in range(ksize)], axis=2)
        out = jnp.einsum("oik,nikl->nol", w, cols) + b[None, :, None]
        if i < n_layers - 1:
            out = jnp.maximum(out, 0.0)
        h = out
    return h


if __name__ == "__main__":
    key = jax.random.PRNGKey(0)
    kparams, kx = jax.random.split(key)
    params = init_smooth_params(kparams)

    N, L = 4, 64  # NB=2 -> lane-dense 128-wide tiles and a 2-step parallel grid
    x = jax.random.normal(kx, (N, 1, L), jnp.float32)

    out = jax.block_until_ready(smooth_forward(params, x))
    ref = jax.block_until_ready(_reference_forward(params, x))

    assert out.shape == (N, 1, L), out.shape
    max_err = float(jnp.max(jnp.abs(out - ref)))
    assert jnp.allclose(out, ref, atol=1e-4, rtol=1e-4), max_err
    print("KERNEL_OK")
</pallas_src>

<mosaic_0001>
module attributes {stable_mosaic.version = 11 : i64} {
  func.func @_smooth_fused_kernel(%arg0: i32, %arg1: memref<2x1x64xf32, #tpu.memory_space<vmem>>, %arg2: memref<6x8x408xf32, #tpu.memory_space<vmem>>, %arg3: memref<6x8x1xf32, #tpu.memory_space<vmem>>, %arg4: memref<2x1x64xf32, #tpu.memory_space<vmem>>) attributes {dimension_semantics = [#tpu.dimension_semantics<parallel>], iteration_bounds = array<i64: 2>, scalar_prefetch = 0 : i64, scratch_operands = 0 : i64, tpu.core_type = #tpu.core_type<tc>, window_params = [{transform_indices = @transform_0, window_bounds = array<i64: 2, 1, 64>}, {pipeline_mode = #tpu.pipeline_mode<synchronous>, transform_indices = @transform_1, window_bounds = array<i64: 6, 8, 408>}, {pipeline_mode = #tpu.pipeline_mode<synchronous>, transform_indices = @transform_2, window_bounds = array<i64: 6, 8, 1>}, {transform_indices = @transform_3, window_bounds = array<i64: 2, 1, 64>}]} {
    %cst = arith.constant 0.000000e+00 : f32
    %0 = vector.broadcast %cst : f32 to vector<7x64xf32>
    %c0 = arith.constant 0 : index
    %c0_0 = arith.constant 0 : index
    %c0_1 = arith.constant 0 : index
    %1 = vector.load %arg1[%c0, %c0_0, %c0_1] : memref<2x1x64xf32, #tpu.memory_space<vmem>>, vector<1x1x64xf32>
    %2 = vector.shape_cast %1 : vector<1x1x64xf32> to vector<1x64xf32>
    %3 = tpu.concatenate %2, %0 in 0 : vector<1x64xf32>, vector<7x64xf32> -> vector<8x64xf32>
    %c1 = arith.constant 1 : index
    %c0_2 = arith.constant 0 : index
    %c0_3 = arith.constant 0 : index
    %4 = vector.load %arg1[%c1, %c0_2, %c0_3] : memref<2x1x64xf32, #tpu.memory_space<vmem>>, vector<1x1x64xf32>
    %5 = vector.shape_cast %4 : vector<1x1x64xf32> to vector<1x64xf32>
    %6 = tpu.concatenate %5, %0 in 0 : vector<1x64xf32>, vector<7x64xf32> -> vector<8x64xf32>
    %c0_4 = arith.constant 0 : index
    %c0_5 = arith.constant 0 : index
    %c0_6 = arith.constant 0 : index
    %7 = vector.load %arg2[%c0_4, %c0_5, %c0_6] : memref<6x8x408xf32, #tpu.memory_space<vmem>>, vector<1x8x408xf32>
    %8 = vector.shape_cast %7 : vector<1x8x408xf32> to vector<8x408xf32>
    %c0_7 = arith.constant 0 : index
    %c0_8 = arith.constant 0 : index
    %c0_9 = arith.constant 0 : index
    %9 = vector.load %arg3[%c0_7, %c0_8, %c0_9] : memref<6x8x1xf32, #tpu.memory_space<vmem>>, vector<1x8x1xf32>
    %10 = vector.shape_cast %9 : vector<1x8x1xf32> to vector<8x1xf32>
    %11 = vector.extract_strided_slice %3 {offsets = [0, 39], sizes = [8, 25], strides = [1, 1]} : vector<8x64xf32> to vector<8x25xf32>
    %12 = vector.extract_strided_slice %3 {offsets = [0, 0], sizes = [8, 25], strides = [1, 1]} : vector<8x64xf32> to vector<8x25xf32>
    %13 = tpu.concatenate %11, %3, %12 in 1 : vector<8x25xf32>, vector<8x64xf32>, vector<8x25xf32> -> vector<8x114xf32>
    %14 = vector.extract_strided_slice %6 {offsets = [0, 39], sizes = [8, 25], strides = [1, 1]} : vector<8x64xf32> to vector<8x25xf32>
    %15 = vector.extract_strided_slice %6 {offsets = [0, 0], sizes = [8, 25], strides = [1, 1]} : vector<8x64xf32> to vector<8x25xf32>
    %16 = tpu.concatenate %14, %6, %15 in 1 : vector<8x25xf32>, vector<8x64xf32>, vector<8x25xf32> -> vector<8x114xf32>
    %cst_10 = arith.constant 0.000000e+00 : f32
    %17 = vector.broadcast %cst_10 : f32 to vector<8x128xf32>
    %18 = vector.extract_strided_slice %13 {offsets = [0, 0], sizes = [8, 64], strides = [1, 1]} : vector<8x114xf32> to vector<8x64xf32>
    %19 = vector.extract_strided_slice %13 {offsets = [0, 1], sizes = [8, 64], strides = [1, 1]} : vector<8x114xf32> to vector<8x64xf32>
    %20 = vector.extract_strided_slice %13 {offsets = [0, 2], sizes = [8, 64], strides = [1, 1]} : vector<8x114xf32> to vector<8x64xf32>
    %21 = vector.extract_strided_slice %13 {offsets = [0, 3], sizes = [8, 64], strides = [1, 1]} : vector<8x114xf32> to vector<8x64xf32>
    %22 = vector.extract_strided_slice %13 {offsets = [0, 4], sizes = [8, 64], strides = [1, 1]} : vector<8x114xf32> to vector<8x64xf32>
    %23 = vector.extract_strided_slice %13 {offsets = [0, 5], sizes = [8, 64], strides = [1, 1]} : vector<8x114xf32> to vector<8x64xf32>
    %24 = vector.extract_strided_slice %13 {offsets = [0, 6], sizes = [8, 64], strides = [1, 1]} : vector<8x114xf32> to vector<8x64xf32>
    %25 = vector.extract_strided_slice %13 {offsets = [0, 7], sizes = [8, 64], strides = [1, 1]} : vector<8x114xf32> to vector<8x64xf32>
    %26 = vector.extract_strided_slice %13 {offsets = [0, 8], sizes = [8, 64], strides = [1, 1]} : vector<8x114xf32> to vector<8x64xf32>
    %27 = vector.extract_strided_slice %13 {offsets = [0, 9], sizes = [8, 64], strides = [1, 1]} : vector<8x114xf32> to vector<8x64xf32>
    %28 = vector.extract_strided_slice %13 {offsets = [0, 10], sizes = [8, 64], strides = [1, 1]} : vector<8x114xf32> to vector<8x64xf32>
    %29 = vector.extract_strided_slice %13 {offsets = [0, 11], sizes = [8, 64], strides = [1, 1]} : vector<8x114xf32> to vector<8x64xf32>
    %30 = vector.extract_strided_slice %13 {offsets = [0, 12], sizes = [8, 64], strides = [1, 1]} : vector<8x114xf32> to vector<8x64xf32>
    %31 = vector.extract_strided_slice %13 {offsets = [0, 13], sizes = [8, 64], strides = [1, 1]} : vector<8x114xf32> to vector<8x64xf32>
    %32 = vector.extract_strided_slice %13 {offsets = [0, 14], sizes = [8, 64], strides = [1, 1]} : vector<8x114xf32> to vector<8x64xf32>
    %33 = vector.extract_strided_slice %13 {offsets = [0, 15], sizes = [8, 64], strides = [1, 1]} : vector<8x114xf32> to vector<8x64xf32>
    %34 = tpu.concatenate %18, %19, %20, %21, %22, %23, %24, %25, %26, %27, %28, %29, %30, %31, %32, %33 in 0 : vector<8x64xf32>, vector<8x64xf32>, vector<8x64xf32>, vector<8x64xf32>, vector<8x64xf32>, vector<8x64xf32>, vector<8x64xf32>, vector<8x64xf32>, vector<8x64xf32>, vector<8x64xf32>, vector<8x64xf32>, vector<8x64xf32>, vector<8x64xf32>, vector<8x64xf32>, vector<8x64xf32>, vector<8x64xf32> -> vector<128x64xf32>
    %35 = vector.extract_strided_slice %16 {offsets = [0, 0], sizes = [8, 64], strides = [1, 1]} : vector<8x114xf32> to vector<8x64xf32>
    %36 = vector.extract_strided_slice %16 {offsets = [0, 1], sizes = [8, 64], strides = [1, 1]} : vector<8x114xf32> to vector<8x64xf32>
    %37 = vector.extract_strided_slice %16 {offsets = [0, 2], sizes = [8, 64], strides = [1, 1]} : vector<8x114xf32> to vector<8x64xf32>
    %38 = vector.extract_strided_slice %16 {offsets = [0, 3], sizes = [8, 64], strides = [1, 1]} : vector<8x114xf32> to vector<8x64xf32>
    %39 = vector.extract_strided_slice %16 {offsets = [0, 4], sizes = [8, 64], strides = [1, 1]} : vector<8x114xf32> to vector<8x64xf32>
    %40 = vector.extract_strided_slice %16 {offsets = [0, 5], sizes = [8, 64], strides = [1, 1]} : vector<8x114xf32> to vector<8x64xf32>
    %41 = vector.extract_strided_slice %16 {offsets = [0, 6], sizes = [8, 64], strides = [1, 1]} : vector<8x114xf32> to vector<8x64xf32>
    %42 = vector.extract_strided_slice %16 {offsets = [0, 7], sizes = [8, 64], strides = [1, 1]} : vector<8x114xf32> to vector<8x64xf32>
    %43 = vector.extract_strided_slice %16 {offsets = [0, 8], sizes = [8, 64], strides = [1, 1]} : vector<8x114xf32> to vector<8x64xf32>
    %44 = vector.extract_strided_slice %16 {offsets = [0, 9], sizes = [8, 64], strides = [1, 1]} : vector<8x114xf32> to vector<8x64xf32>
    %45 = vector.extract_strided_slice %16 {offsets = [0, 10], sizes = [8, 64], strides = [1, 1]} : vector<8x114xf32> to vector<8x64xf32>
    %46 = vector.extract_strided_slice %16 {offsets = [0, 11], sizes = [8, 64], strides = [1, 1]} : vector<8x114xf32> to vector<8x64xf32>
    %47 = vector.extract_strided_slice %16 {offsets = [0, 12], sizes = [8, 64], strides = [1, 1]} : vector<8x114xf32> to vector<8x64xf32>
    %48 = vector.extract_strided_slice %16 {offsets = [0, 13], sizes = [8, 64], strides = [1, 1]} : vector<8x114xf32> to vector<8x64xf32>
    %49 = vector.extract_strided_slice %16 {offsets = [0, 14], sizes = [8, 64], strides = [1, 1]} : vector<8x114xf32> to vector<8x64xf32>
    %50 = vector.extract_strided_slice %16 {offsets = [0, 15], sizes = [8, 64], strides = [1, 1]} : vector<8x114xf32> to vector<8x64xf32>
    %51 = tpu.concatenate %35, %36, %37, %38, %39, %40, %41, %42, %43, %44, %45, %46, %47, %48, %49, %50 in 0 : vector<8x64xf32>, vector<8x64xf32>, vector<8x64xf32>, vector<8x64xf32>, vector<8x64xf32>, vector<8x64xf32>, vector<8x64xf32>, vector<8x64xf32>, vector<8x64xf32>, vector<8x64xf32>, vector<8x64xf32>, vector<8x64xf32>, vector<8x64xf32>, vector<8x64xf32>, vector<8x64xf32>, vector<8x64xf32> -> vector<128x64xf32>
    %52 = tpu.concatenate %34, %51 in 1 : vector<128x64xf32>, vector<128x64xf32> -> vector<128x128xf32>
    %53 = vector.extract_strided_slice %8 {offsets = [0, 0], sizes = [8, 128], strides = [1, 1]} : vector<8x408xf32> to vector<8x128xf32>
    %cst_11 = arith.constant dense<0.000000e+00> : vector<8x128xf32>
    %54 = tpu.matmul %53, %52, %cst_11 {dimension_numbers = #tpu.dot_dimension_numbers<[1], [0], [0], [1], [0, 0, 1, 1], [], []>} : vector<8x128xf32>, vector<128x128xf32>, vector<8x128xf32> -> vector<8x128xf32>
    %55 = arith.addf %17, %54 : vector<8x128xf32>
    %56 = vector.extract_strided_slice %13 {offsets = [0, 16], sizes = [8, 64], strides = [1, 1]} : vector<8x114xf32> to vector<8x64xf32>
    %57 = vector.extract_strided_slice %13 {offsets = [0, 17], sizes = [8, 64], strides = [1, 1]} : vector<8x114xf32> to vector<8x64xf32>
    %58 = vector.extract_strided_slice %13 {offsets = [0, 18], sizes = [8, 64], strides = [1, 1]} : vector<8x114xf32> to vector<8x64xf32>
    %59 = vector.extract_strided_slice %13 {offsets = [0, 19], sizes = [8, 64], strides = [1, 1]} : vector<8x114xf32> to vector<8x64xf32>
    %60 = vector.extract_strided_slice %13 {offsets = [0, 20], sizes = [8, 64], strides = [1, 1]} : vector<8x114xf32> to vector<8x64xf32>
    %61 = vector.extract_strided_slice %13 {offsets = [0, 21], sizes = [8, 64], strides = [1, 1]} : vector<8x114xf32> to vector<8x64xf32>
    %62 = vector.extract_strided_slice %13 {offsets = [0, 22], sizes = [8, 64], strides = [1, 1]} : vector<8x114xf32> to vector<8x64xf32>
    %63 = vector.extract_strided_slice %13 {offsets = [0, 23], sizes = [8, 64], strides = [1, 1]} : vector<8x114xf32> to vector<8x64xf32>
    %64 = vector.extract_strided_slice %13 {offsets = [0, 24], sizes = [8, 64], strides = [1, 1]} : vector<8x114xf32> to vector<8x64xf32>
    %65 = vector.extract_strided_slice %13 {offsets = [0, 25], sizes = [8, 64], strides = [1, 1]} : vector<8x114xf32> to vector<8x64xf32>
    %66 = vector.extract_strided_slice %13 {offsets = [0, 26], sizes = [8, 64], strides = [1, 1]} : vector<8x114xf32> to vector<8x64xf32>
    %67 = vector.extract_strided_slice %13 {offsets = [0, 27], sizes = [8, 64], strides = [1, 1]} : vector<8x114xf32> to vector<8x64xf32>
    %68 = vector.extract_strided_slice %13 {offsets = [0, 28], sizes = [8, 64], strides = [1, 1]} : vector<8x114xf32> to vector<8x64xf32>
    %69 = vector.extract_strided_slice %13 {offsets = [0, 29], sizes = [8, 64], strides = [1, 1]} : vector<8x114xf32> to vector<8x64xf32>
    %70 = vector.extract_strided_slice %13 {offsets = [0, 30], sizes = [8, 64], strides = [1, 1]} : vector<8x114xf32> to vector<8x64xf32>
    %71 = vector.extract_strided_slice %13 {offsets = [0, 31], sizes = [8, 64], strides = [1, 1]} : vector<8x114xf32> to vector<8x64xf32>
    %72 = tpu.concatenate %56, %57, %58, %59, %60, %61, %62, %63, %64, %65, %66, %67, %68, %69, %70, %71 in 0 : vector<8x64xf32>, vector<8x64xf32>, vector<8x64xf32>, vector<8x64xf32>, vector<8x64xf32>, vector<8x64xf32>, vector<8x64xf32>, vector<8x64xf32>, vector<8x64xf32>, vector<8x64xf32>, vector<8x64xf32>, vector<8x64xf32>, vector<8x64xf32>, vector<8x64xf32>, vector<8x64xf32>, vector<8x64xf32> -> vector<128x64xf32>
    %73 = vector.extract_strided_slice %16 {offsets = [0, 16], sizes = [8, 64], strides = [1, 1]} : vector<8x114xf32> to vector<8x64xf32>
    %74 = vector.extract_strided_slice %16 {offsets = [0, 17], sizes = [8, 64], strides = [1, 1]} : vector<8x114xf32> to vector<8x64xf32>
    %75 = vector.extract_strided_slice %16 {offsets = [0, 18], sizes = [8, 64], strides = [1, 1]} : vector<8x114xf32> to vector<8x64xf32>
    %76 = vector.extract_strided_slice %16 {offsets = [0, 19], sizes = [8, 64], strides = [1, 1]} : vector<8x114xf32> to vector<8x64xf32>
    %77 = vector.extract_strided_slice %16 {offsets = [0, 20], sizes = [8, 64], strides = [1, 1]} : vector<8x114xf32> to vector<8x64xf32>
    %78 = vector.extract_strided_slice %16 {offsets = [0, 21], sizes = [8, 64], strides = [1, 1]} : vector<8x114xf32> to vector<8x64xf32>
    %79 = vector.extract_strided_slice %16 {offsets = [0, 22], sizes = [8, 64], strides = [1, 1]} : vector<8x114xf32> to vector<8x64xf32>
    %80 = vector.extract_strided_slice %16 {offsets = [0, 23], sizes = [8, 64], strides = [1, 1]} : vector<8x114xf32> to vector<8x64xf32>
    %81 = vector.extract_strided_slice %16 {offsets = [0, 24], sizes = [8, 64], strides = [1, 1]} : vector<8x114xf32> to vector<8x64xf32>
    %82 = vector.extract_strided_slice %16 {offsets = [0, 25], sizes = [8, 64], strides = [1, 1]} : vector<8x114xf32> to vector<8x64xf32>
    %83 = vector.extract_strided_slice %16 {offsets = [0, 26], sizes = [8, 64], strides = [1, 1]} : vector<8x114xf32> to vector<8x64xf32>
    %84 = vector.extract_strided_slice %16 {offsets = [0, 27], sizes = [8, 64], strides = [1, 1]} : vector<8x114xf32> to vector<8x64xf32>
    %85 = vector.extract_strided_slice %16 {offsets = [0, 28], sizes = [8, 64], strides = [1, 1]} : vector<8x114xf32> to vector<8x64xf32>
    %86 = vector.extract_strided_slice %16 {offsets = [0, 29], sizes = [8, 64], strides = [1, 1]} : vector<8x114xf32> to vector<8x64xf32>
    %87 = vector.extract_strided_slice %16 {offsets = [0, 30], sizes = [8, 64], strides = [1, 1]} : vector<8x114xf32> to vector<8x64xf32>
    %88 = vector.extract_strided_slice %16 {offsets = [0, 31], sizes = [8, 64], strides = [1, 1]} : vector<8x114xf32> to vector<8x64xf32>
    %89 = tpu.concatenate %73, %74, %75, %76, %77, %78, %79, %80, %81, %82, %83, %84, %85, %86, %87, %88 in 0 : vector<8x64xf32>, vector<8x64xf32>, vector<8x64xf32>, vector<8x64xf32>, vector<8x64xf32>, vector<8x64xf32>, vector<8x64xf32>, vector<8x64xf32>, vector<8x64xf32>, vector<8x64xf32>, vector<8x64xf32>, vector<8x64xf32>, vector<8x64xf32>, vector<8x64xf32>, vector<8x64xf32>, vector<8x64xf32> -> vector<128x64xf32>
    %90 = tpu.concatenate %72, %89 in 1 : vector<128x64xf32>, vector<128x64xf32> -> vector<128x128xf32>
    %91 = vector.extract_strided_slice %8 {offsets = [0, 128], sizes = [8, 128], strides = [1, 1]} : vector<8x408xf32> to vector<8x128xf32>
    %cst_12 = arith.constant dense<0.000000e+00> : vector<8x128xf32>
    %92 = tpu.matmul %91, %90, %cst_12 {dimension_numbers = #tpu.dot_dimension_numbers<[1], [0], [0], [1], [0, 0, 1, 1], [], []>} : vector<8x128xf32>, vector<128x128xf32>, vector<8x128xf32> -> vector<8x128xf32>
    %93 = arith.addf %55, %92 : vector<8x128xf32>
    %94 = vector.extract_strided_slice %13 {offsets = [0, 32], sizes = [8, 64], strides = [1, 1]} : vector<8x114xf32> to vector<8x64xf32>
    %95 = vector.extract_strided_slice %13 {offsets = [0, 33], sizes = [8, 64], strides = [1, 1]} : vector<8x114xf32> to vector<8x64xf32>
    %96 = vector.extract_strided_slice %13 {offsets = [0, 34], sizes = [8, 64], strides = [1, 1]} : vector<8x114xf32> to vector<8x64xf32>
    %97 = vector.extract_strided_slice %13 {offsets = [0, 35], sizes = [8, 64], strides = [1, 1]} : vector<8x114xf32> to vector<8x64xf32>
    %98 = vector.extract_strided_slice %13 {offsets = [0, 36], sizes = [8, 64], strides = [1, 1]} : vector<8x114xf32> to vector<8x64xf32>
    %99 = vector.extract_strided_slice %13 {offsets = [0, 37], sizes = [8, 64], strides = [1, 1]} : vector<8x114xf32> to vector<8x64xf32>
    %100 = vector.extract_strided_slice %13 {offsets = [0, 38], sizes = [8, 64], strides = [1, 1]} : vector<8x114xf32> to vector<8x64xf32>
    %101 = vector.extract_strided_slice %13 {offsets = [0, 39], sizes = [8, 64], strides = [1, 1]} : vector<8x114xf32> to vector<8x64xf32>
    %102 = vector.extract_strided_slice %13 {offsets = [0, 40], sizes = [8, 64], strides = [1, 1]} : vector<8x114xf32> to vector<8x64xf32>
    %103 = vector.extract_strided_slice %13 {offsets = [0, 41], sizes = [8, 64], strides = [1, 1]} : vector<8x114xf32> to vector<8x64xf32>
    %104 = vector.extract_strided_slice %13 {offsets = [0, 42], sizes = [8, 64], strides = [1, 1]} : vector<8x114xf32> to vector<8x64xf32>
    %105 = vector.extract_strided_slice %13 {offsets = [0, 43], sizes = [8, 64], strides = [1, 1]} : vector<8x114xf32> to vector<8x64xf32>
    %106 = vector.extract_strided_slice %13 {offsets = [0, 44], sizes = [8, 64], strides = [1, 1]} : vector<8x114xf32> to vector<8x64xf32>
    %107 = vector.extract_strided_slice %13 {offsets = [0, 45], sizes = [8, 64], strides = [1, 1]} : vector<8x114xf32> to vector<8x64xf32>
    %108 = vector.extract_strided_slice %13 {offsets = [0, 46], sizes = [8, 64], strides = [1, 1]} : vector<8x114xf32> to vector<8x64xf32>
    %109 = vector.extract_strided_slice %13 {offsets = [0, 47], sizes = [8, 64], strides = [1, 1]} : vector<8x114xf32> to vector<8x64xf32>
    %110 = tpu.concatenate %94, %95, %96, %97, %98, %99, %100, %101, %102, %103, %104, %105, %106, %107, %108, %109 in 0 : vector<8x64xf32>, vector<8x64xf32>, vector<8x64xf32>, vector<8x64xf32>, vector<8x64xf32>, vector<8x64xf32>, vector<8x64xf32>, vector<8x64xf32>, vector<8x64xf32>, vector<8x64xf32>, vector<8x64xf32>, vector<8x64xf32>, vector<8x64xf32>, vector<8x64xf32>, vector<8x64xf32>, vector<8x64xf32> -> vector<128x64xf32>
    %111 = vector.extract_strided_slice %16 {offsets = [0, 32], sizes = [8, 64], strides = [1, 1]} : vector<8x114xf32> to vector<8x64xf32>
    %112 = vector.extract_strided_slice %16 {offsets = [0, 33], sizes = [8, 64], strides = [1, 1]} : vector<8x114xf32> to vector<8x64xf32>
    %113 = vector.extract_strided_slice %16 {offsets = [0, 34], sizes = [8, 64], strides = [1, 1]} : vector<8x114xf32> to vector<8x64xf32>
    %114 = vector.extract_strided_slice %16 {offsets = [0, 35], sizes = [8, 64], strides = [1, 1]} : vector<8x114xf32> to vector<8x64xf32>
    %115 = vector.extract_strided_slice %16 {offsets = [0, 36], sizes = [8, 64], strides = [1, 1]} : vector<8x114xf32> to vector<8x64xf32>
    %116 = vector.extract_strided_slice %16 {offsets = [0, 37], sizes = [8, 64], strides = [1, 1]} : vector<8x114xf32> to vector<8x64xf32>
    %117 = vector.extract_strided_slice %16 {offsets = [0, 38], sizes = [8, 64], strides = [1, 1]} : vector<8x114xf32> to vector<8x64xf32>
    %118 = vector.extract_strided_slice %16 {offsets = [0, 39], sizes = [8, 64], strides = [1, 1]} : vector<8x114xf32> to vector<8x64xf32>
    %119 = vector.extract_strided_slice %16 {offsets = [0, 40], sizes = [8, 64], strides = [1, 1]} : vector<8x114xf32> to vector<8x64xf32>
    %120 = vector.extract_strided_slice %16 {offsets = [0, 41], sizes = [8, 64], strides = [1, 1]} : vector<8x114xf32> to vector<8x64xf32>
    %121 = vector.extract_strided_slice %16 {offsets = [0, 42], sizes = [8, 64], strides = [1, 1]} : vector<8x114xf32> to vector<8x64xf32>
    %122 = vector.extract_strided_slice %16 {offsets = [0, 43], sizes = [8, 64], strides = [1, 1]} : vector<8x114xf32> to vector<8x64xf32>
    %123 = vector.extract_strided_slice %16 {offsets = [0, 44], sizes = [8, 64], strides = [1, 1]} : vector<8x114xf32> to vector<8x64xf32>
    %124 = vector.extract_strided_slice %16 {offsets = [0, 45], sizes = [8, 64], strides = [1, 1]} : vector<8x114xf32> to vector<8x64xf32>
    %125 = vector.extract_strided_slice %16 {offsets = [0, 46], sizes = [8, 64], strides = [1, 1]} : vector<8x114xf32> to vector<8x64xf32>
    %126 = vector.extract_strided_slice %16 {offsets = [0, 47], sizes = [8, 64], strides = [1, 1]} : vector<8x114xf32> to vector<8x64xf32>
    %127 = tpu.concatenate %111, %112, %113, %114, %115, %116, %117, %118, %119, %120, %121, %122, %123, %124, %125, %126 in 0 : vector<8x64xf32>, vector<8x64xf32>, vector<8x64xf32>, vector<8x64xf32>, vector<8x64xf32>, vector<8x64xf32>, vector<8x64xf32>, vector<8x64xf32>, vector<8x64xf32>, vector<8x64xf32>, vector<8x64xf32>, vector<8x64xf32>, vector<8x64xf32>, vector<8x64xf32>, vector<8x64xf32>, vector<8x64xf32> -> vector<128x64xf32>
    %128 = tpu.concatenate %110, %127 in 1 : vector<128x64xf32>, vector<128x64xf32> -> vector<128x128xf32>
    %129 = vector.extract_strided_slice %8 {offsets = [0, 256], sizes = [8, 128], strides = [1, 1]} : vector<8x408xf32> to vector<8x128xf32>
    %cst_13 = arith.constant dense<0.000000e+00> : vector<8x128xf32>
    %130 = tpu.matmul %129, %128, %cst_13 {dimension_numbers = #tpu.dot_dimension_numbers<[1], [0], [0], [1], [0, 0, 1, 1], [], []>} : vector<8x128xf32>, vector<128x128xf32>, vector<8x128xf32> -> vector<8x128xf32>
    %131 = arith.addf %93, %130 : vector<8x128xf32>
    %132 = vector.extract_strided_slice %13 {offsets = [0, 48], sizes = [8, 64], strides = [1, 1]} : vector<8x114xf32> to vector<8x64xf32>
    %133 = vector.extract_strided_slice %13 {offsets = [0, 49], sizes = [8, 64], strides = [1, 1]} : vector<8x114xf32> to vector<8x64xf32>
    %134 = vector.extract_strided_slice %13 {offsets = [0, 50], sizes = [8, 64], strides = [1, 1]} : vector<8x114xf32> to vector<8x64xf32>
    %135 = tpu.concatenate %132, %133, %134 in 0 : vector<8x64xf32>, vector<8x64xf32>, vector<8x64xf32> -> vector<24x64xf32>
    %136 = vector.extract_strided_slice %16 {offsets = [0, 48], sizes = [8, 64], strides = [1, 1]} : vector<8x114xf32> to vector<8x64xf32>
    %137 = vector.extract_strided_slice %16 {offsets = [0, 49], sizes = [8, 64], strides = [1, 1]} : vector<8x114xf32> to vector<8x64xf32>
    %138 = vector.extract_strided_slice %16 {offsets = [0, 50], sizes = [8, 64], strides = [1, 1]} : vector<8x114xf32> to vector<8x64xf32>
    %139 = tpu.concatenate %136, %137, %138 in 0 : vector<8x64xf32>, vector<8x64xf32>, vector<8x64xf32> -> vector<24x64xf32>
    %140 = tpu.concatenate %135, %139 in 1 : vector<24x64xf32>, vector<24x64xf32> -> vector<24x128xf32>
    %141 = vector.extract_strided_slice %8 {offsets = [0, 384], sizes = [8, 24], strides = [1, 1]} : vector<8x408xf32> to vector<8x24xf32>
    %cst_14 = arith.constant dense<0.000000e+00> : vector<8x128xf32>
    %142 = tpu.matmul %141, %140, %cst_14 {dimension_numbers = #tpu.dot_dimension_numbers<[1], [0], [0], [1], [0, 0, 1, 1], [], []>} : vector<8x24xf32>, vector<24x128xf32>, vector<8x128xf32> -> vector<8x128xf32>
    %143 = arith.addf %131, %142 : vector<8x128xf32>
    %144 = vector.broadcast %10 : vector<8x1xf32> to vector<8x128xf32>
    %145 = arith.addf %143, %144 : vector<8x128xf32>
    %cst_15 = arith.constant 0.000000e+00 : f32
    %146 = vector.broadcast %cst_15 : f32 to vector<8x128xf32>
    %147 = arith.maximumf %145, %146 : vector<8x128xf32>
    %148 = vector.extract_strided_slice %147 {offsets = [0, 0], sizes = [8, 64], strides = [1, 1]} : vector<8x128xf32> to vector<8x64xf32>
    %149 = vector.extract_strided_slice %147 {offsets = [0, 64], sizes = [8, 64], strides = [1, 1]} : vector<8x128xf32> to vector<8x64xf32>
    %c1_16 = arith.constant 1 : index
    %c0_17 = arith.constant 0 : index
    %c0_18 = arith.constant 0 : index
    %150 = vector.load %arg2[%c1_16, %c0_17, %c0_18] : memref<6x8x408xf32, #tpu.memory_space<vmem>>, vector<1x8x408xf32>
    %151 = vector.shape_cast %150 : vector<1x8x408xf32> to vector<8x408xf32>
    %c1_19 = arith.constant 1 : index
    %c0_20 = arith.constant 0 : index
    %c0_21 = arith.constant 0 : index
    %152 = vector.load %arg3[%c1_19, %c0_20, %c0_21] : memref<6x8x1xf32, #tpu.memory_space<vmem>>, vector<1x8x1xf32>
    %153 = vector.shape_cast %152 : vector<1x8x1xf32> to vector<8x1xf32>
    %154 = vector.extract_strided_slice %148 {offsets = [0, 39], sizes = [8, 25], strides = [1, 1]} : vector<8x64xf32> to vector<8x25xf32>
    %155 = vector.extract_strided_slice %148 {offsets = [0, 0], sizes = [8, 25], strides = [1, 1]} : vector<8x64xf32> to vector<8x25xf32>
    %156 = tpu.concatenate %154, %148, %155 in 1 : vector<8x25xf32>, vector<8x64xf32>, vector<8x25xf32> -> vector<8x114xf32>
    %157 = vector.extract_strided_slice %149 {offsets = [0, 39], sizes = [8, 25], strides = [1, 1]} : vector<8x64xf32> to vector<8x25xf32>
    %158 = vector.extract_strided_slice %149 {offsets = [0, 0], sizes = [8, 25], strides = [1, 1]} : vector<8x64xf32> to vector<8x25xf32>
    %159 = tpu.concatenate %157, %149, %158 in 1 : vector<8x25xf32>, vector<8x64xf32>, vector<8x25xf32> -> vector<8x114xf32>
    %cst_22 = arith.constant 0.000000e+00 : f32
    %160 = vector.broadcast %cst_22 : f32 to vector<8x128xf32>
    %161 = vector.extract_strided_slice %156 {offsets = [0, 0], sizes = [8, 64], strides = [1, 1]} : vector<8x114xf32> to vector<8x64xf32>
    %162 = vector.extract_strided_slice %156 {offsets = [0, 1], sizes = [8, 64], strides = [1, 1]} : vector<8x114xf32> to vector<8x64xf32>
    %163 = vector.extract_strided_slice %156 {offsets = [0, 2], sizes = [8, 64], strides = [1, 1]} : vector<8x114xf32> to vector<8x64xf32>
    %164 = vector.extract_strided_slice %156 {offsets = [0, 3], sizes = [8, 64], strides = [1, 1]} : vector<8x114xf32> to vector<8x64xf32>
    %165 = vector.extract_strided_slice %156 {offsets = [0, 4], sizes = [8, 64], strides = [1, 1]} : vector<8x114xf32> to vector<8x64xf32>
    %166 = vector.extract_strided_slice %156 {offsets = [0, 5], sizes = [8, 64], strides = [1, 1]} : vector<8x114xf32> to vector<8x64xf32>
    %167 = vector.extract_strided_slice %156 {offsets = [0, 6], sizes = [8, 64], strides = [1, 1]} : vector<8x114xf32> to vector<8x64xf32>
    %168 = vector.extract_strided_slice %156 {offsets = [0, 7], sizes = [8, 64], strides = [1, 1]} : vector<8x114xf32> to vector<8x64xf32>
    %169 = vector.extract_strided_slice %156 {offsets = [0, 8], sizes = [8, 64], strides = [1, 1]} : vector<8x114xf32> to vector<8x64xf32>
    %170 = vector.extract_strided_slice %156 {offsets = [0, 9], sizes = [8, 64], strides = [1, 1]} : vector<8x114xf32> to vector<8x64xf32>
    %171 = vector.extract_strided_slice %156 {offsets = [0, 10], sizes = [8, 64], strides = [1, 1]} : vector<8x114xf32> to vector<8x64xf32>
    %172 = vector.extract_strided_slice %156 {offsets = [0, 11], sizes = [8, 64], strides = [1, 1]} : vector<8x114xf32> to vector<8x64xf32>
    %173 = vector.extract_strided_slice %156 {offsets = [0, 12], sizes = [8, 64], strides = [1, 1]} : vector<8x114xf32> to vector<8x64xf32>
    %174 = vector.extract_strided_slice %156 {offsets = [0, 13], sizes = [8, 64], strides = [1, 1]} : vector<8x114xf32> to vector<8x64xf32>
    %175 = vector.extract_strided_slice %156 {offsets = [0, 14], sizes = [8, 64], strides = [1, 1]} : vector<8x114xf32> to vector<8x64xf32>
    %176 = vector.extract_strided_slice %156 {offsets = [0, 15], sizes = [8, 64], strides = [1, 1]} : vector<8x114xf32> to vector<8x64xf32>
    %177 = tpu.concatenate %161, %162, %163, %164, %165, %166, %167, %168, %169, %170, %171, %172, %173, %174, %175, %176 in 0 : vector<8x64xf32>, vector<8x64xf32>, vector<8x64xf32>, vector<8x64xf32>, vector<8x64xf32>, vector<8x64xf32>, vector<8x64xf32>, vector<8x64xf32>, vector<8x64xf32>, vector<8x64xf32>, vector<8x64xf32>, vector<8x64xf32>, vector<8x64xf32>, vector<8x64xf32>, vector<8x64xf32>, vector<8x64xf32> -> vector<128x64xf32>
    %178 = vector.extract_strided_slice %159 {offsets = [0, 0], sizes = [8, 64], strides = [1, 1]} : vector<8x114xf32> to vector<8x64xf32>
    %179 = vector.extract_strided_slice %159 {offsets = [0, 1], sizes = [8, 64], strides = [1, 1]} : vector<8x114xf32> to vector<8x64xf32>
    %180 = vector.extract_strided_slice %159 {offsets = [0, 2], sizes = [8, 64], strides = [1, 1]} : vector<8x114xf32> to vector<8x64xf32>
    %181 = vector.extract_strided_slice %159 {offsets = [0, 3], sizes = [8, 64], strides = [1, 1]} : vector<8x114xf32> to vector<8x64xf32>
    %182 = vector.extract_strided_slice %159 {offsets = [0, 4], sizes = [8, 64], strides = [1, 1]} : vector<8x114xf32> to vector<8x64xf32>
    %183 = vector.extract_strided_slice %159 {offsets = [0, 5], sizes = [8, 64], strides = [1, 1]} : vector<8x114xf32> to vector<8x64xf32>
    %184 = vector.extract_strided_slice %159 {offsets = [0, 6], sizes = [8, 64], strides = [1, 1]} : vector<8x114xf32> to vector<8x64xf32>
    %185 = vector.extract_strided_slice %159 {offsets = [0, 7], sizes = [8, 64], strides = [1, 1]} : vector<8x114xf32> to vector<8x64xf32>
    %186 = vector.extract_strided_slice %159 {offsets = [0, 8], sizes = [8, 64], strides = [1, 1]} : vector<8x114xf32> to vector<8x64xf32>
    %187 = vector.extract_strided_slice %159 {offsets = [0, 9], sizes = [8, 64], strides = [1, 1]} : vector<8x114xf32> to vector<8x64xf32>
    %188 = vector.extract_strided_slice %159 {offsets = [0, 10], sizes = [8, 64], strides = [1, 1]} : vector<8x114xf32> to vector<8x64xf32>
    %189 = vector.extract_strided_slice %159 {offsets = [0, 11], sizes = [8, 64], strides = [1, 1]} : vector<8x114xf32> to vector<8x64xf32>
    %190 = vector.extract_strided_slice %159 {offsets = [0, 12], sizes = [8, 64], strides = [1, 1]} : vector<8x114xf32> to vector<8x64xf32>
    %191 = vector.extract_strided_slice %159 {offsets = [0, 13], sizes = [8, 64], strides = [1, 1]} : vector<8x114xf32> to vector<8x64xf32>
    %192 = vector.extract_strided_slice %159 {offsets = [0, 14], sizes = [8, 64], strides = [1, 1]} : vector<8x114xf32> to vector<8x64xf32>
    %193 = vector.extract_strided_slice %159 {offsets = [0, 15], sizes = [8, 64], strides = [1, 1]} : vector<8x114xf32> to vector<8x64xf32>
    %194 = tpu.concatenate %178, %179, %180, %181, %182, %183, %184, %185, %186, %187, %188, %189, %190, %191, %192, %193 in 0 : vector<8x64xf32>, vector<8x64xf32>, vector<8x64xf32>, vector<8x64xf32>, vector<8x64xf32>, vector<8x64xf32>, vector<8x64xf32>, vector<8x64xf32>, vector<8x64xf32>, vector<8x64xf32>, vector<8x64xf32>, vector<8x64xf32>, vector<8x64xf32>, vector<8x64xf32>, vector<8x64xf32>, vector<8x64xf32> -> vector<128x64xf32>
    %195 = tpu.concatenate %177, %194 in 1 : vector<128x64xf32>, vector<128x64xf32> -> vector<128x128xf32>
    %196 = vector.extract_strided_slice %151 {offsets = [0, 0], sizes = [8, 128], strides = [1, 1]} : vector<8x408xf32> to vector<8x128xf32>
    %cst_23 = arith.constant dense<0.000000e+00> : vector<8x128xf32>
    %197 = tpu.matmul %196, %195, %cst_23 {dimension_numbers = #tpu.dot_dimension_numbers<[1], [0], [0], [1], [0, 0, 1, 1], [], []>} : vector<8x128xf32>, vector<128x128xf32>, vector<8x128xf32> -> vector<8x128xf32>
    %198 = arith.addf %160, %197 : vector<8x128xf32>
    %199 = vector.extract_strided_slice %156 {offsets = [0, 16], sizes = [8, 64], strides = [1, 1]} : vector<8x114xf32> to vector<8x64xf32>
    %200 = vector.extract_strided_slice %156 {offsets = [0, 17], sizes = [8, 64], strides = [1, 1]} : vector<8x114xf32> to vector<8x64xf32>
    %201 = vector.extract_strided_slice %156 {offsets = [0, 18], sizes = [8, 64], strides = [1, 1]} : vector<8x114xf32> to vector<8x64xf32>
    %202 = vector.extract_strided_slice %156 {offsets = [0, 19], sizes = [8, 64], strides = [1, 1]} : vector<8x114xf32> to vector<8x64xf32>
    %203 = vector.extract_strided_slice %156 {offsets = [0, 20], sizes = [8, 64], strides = [1, 1]} : vector<8x114xf32> to vector<8x64xf32>
    %204 = vector.extract_strided_slice %156 {offsets = [0, 21], sizes = [8, 64], strides = [1, 1]} : vector<8x114xf32> to vector<8x64xf32>
    %205 = vector.extract_strided_slice %156 {offsets = [0, 22], sizes = [8, 64], strides = [1, 1]} : vector<8x114xf32> to vector<8x64xf32>
    %206 = vector.extract_strided_slice %156 {offsets = [0, 23], sizes = [8, 64], strides = [1, 1]} : vector<8x114xf32> to vector<8x64xf32>
    %207 = vector.extract_strided_slice %156 {offsets = [0, 24], sizes = [8, 64], strides = [1, 1]} : vector<8x114xf32> to vector<8x64xf32>
    %208 = vector.extract_strided_slice %156 {offsets = [0, 25], sizes = [8, 64], strides = [1, 1]} : vector<8x114xf32> to vector<8x64xf32>
    %209 = vector.extract_strided_slice %156 {offsets = [0, 26], sizes = [8, 64], strides = [1, 1]} : vector<8x114xf32> to vector<8x64xf32>
    %210 = vector.extract_strided_slice %156 {offsets = [0, 27], sizes = [8, 64], strides = [1, 1]} : vector<8x114xf32> to vector<8x64xf32>
    %211 = vector.extract_strided_slice %156 {offsets = [0, 28], sizes = [8, 64], strides = [1, 1]} : vector<8x114xf32> to vector<8x64xf32>
    %212 = vector.extract_strided_slice %156 {offsets = [0, 29], sizes = [8, 64], strides = [1, 1]} : vector<8x114xf32> to vector<8x64xf32>
    %213 = vector.extract_strided_slice %156 {offsets = [0, 30], sizes = [8, 64], strides = [1, 1]} : vector<8x114xf32> to vector<8x64xf32>
    %214 = vector.extract_strided_slice %156 {offsets = [0, 31], sizes = [8, 64], strides = [1, 1]} : vector<8x114xf32> to vector<8x64xf32>
    %215 = tpu.concatenate %199, %200, %201, %202, %203, %204, %205, %206, %207, %208, %209, %210, %211, %212, %213, %214 in 0 : vector<8x64xf32>, vector<8x64xf32>, vector<8x64xf32>, vector<8x64xf32>, vector<8x64xf32>, vector<8x64xf32>, vector<8x64xf32>, vector<8x64xf32>, vector<8x64xf32>, vector<8x64xf32>, vector<8x64xf32>, vector<8x64xf32>, vector<8x64xf32>, vector<8x64xf32>, vector<8x64xf32>, vector<8x64xf32> -> vector<128x64xf32>
    %216 = vector.extract_strided_slice %159 {offsets = [0, 16], sizes = [8, 64], strides = [1, 1]} : vector<8x114xf32> to vector<8x64xf32>
    %217 = vector.extract_strided_slice %159 {offsets = [0, 17], sizes = [8, 64], strides = [1, 1]} : vector<8x114xf32> to vector<8x64xf32>
    %218 = vector.extract_strided_slice %159 {offsets = [0, 18], sizes = [8, 64], strides = [1, 1]} : vector<8x114xf32> to vector<8x64xf32>
    %219 = vector.extract_strided_slice %159 {offsets = [0, 19], sizes = [8, 64], strides = [1, 1]} : vector<8x114xf32> to vector<8x64xf32>
    %220 = vector.extract_strided_slice %159 {offsets = [0, 20], sizes = [8, 64], strides = [1, 1]} : vector<8x114xf32> to vector<8x64xf32>
    %221 = vector.extract_strided_slice %159 {offsets = [0, 21], sizes = [8, 64], strides = [1, 1]} : vector<8x114xf32> to vector<8x64xf32>
    %222 = vector.extract_strided_slice %159 {offsets = [0, 22], sizes = [8, 64], strides = [1, 1]} : vector<8x114xf32> to vector<8x64xf32>
    %223 = vector.extract_strided_slice %159 {offsets = [0, 23], sizes = [8, 64], strides = [1, 1]} : vector<8x114xf32> to vector<8x64xf32>
    %224 = vector.extract_strided_slice %159 {offsets = [0, 24], sizes = [8, 64], strides = [1, 1]} : vector<8x114xf32> to vector<8x64xf32>
    %225 = vector.extract_strided_slice %159 {offsets = [0, 25], sizes = [8, 64], strides = [1, 1]} : vector<8x114xf32> to vector<8x64xf32>
    %226 = vector.extract_strided_slice %159 {offsets = [0, 26], sizes = [8, 64], strides = [1, 1]} : vector<8x114xf32> to vector<8x64xf32>
    %227 = vector.extract_strided_slice %159 {offsets = [0, 27], sizes = [8, 64], strides = [1, 1]} : vector<8x114xf32> to vector<8x64xf32>
    %228 = vector.extract_strided_slice %159 {offsets = [0, 28], sizes = [8, 64], strides = [1, 1]} : vector<8x114xf32> to vector<8x64xf32>
    %229 = vector.extract_strided_slice %159 {offsets = [0, 29], sizes = [8, 64], strides = [1, 1]} : vector<8x114xf32> to vector<8x64xf32>
    %230 = vector.extract_strided_slice %159 {offsets = [0, 30], sizes = [8, 64], strides = [1, 1]} : vector<8x114xf32> to vector<8x64xf32>
    %231 = vector.extract_strided_slice %159 {offsets = [0, 31], sizes = [8, 64], strides = [1, 1]} : vector<8x114xf32> to vector<8x64xf32>
    %232 = tpu.concatenate %216, %217, %218, %219, %220, %221, %222, %223, %224, %225, %226, %227, %228, %229, %230, %231 in 0 : vector<8x64xf32>, vector<8x64xf32>, vector<8x64xf32>, vector<8x64xf32>, vector<8x64xf32>, vector<8x64xf32>, vector<8x64xf32>, vector<8x64xf32>, vector<8x64xf32>, vector<8x64xf32>, vector<8x64xf32>, vector<8x64xf32>, vector<8x64xf32>, vector<8x64xf32>, vector<8x64xf32>, vector<8x64xf32> -> vector<128x64xf32>
    %233 = tpu.concatenate %215, %232 in 1 : vector<128x64xf32>, vector<128x64xf32> -> vector<128x128xf32>
    %234 = vector.extract_strided_slice %151 {offsets = [0, 128], sizes = [8, 128], strides = [1, 1]} : vector<8x408xf32> to vector<8x128xf32>
    %cst_24 = arith.constant dense<0.000000e+00> : vector<8x128xf32>
    %235 = tpu.matmul %234, %233, %cst_24 {dimension_numbers = #tpu.dot_dimension_numbers<[1], [0], [0], [1], [0, 0, 1, 1], [], []>} : vector<8x128xf32>, vector<128x128xf32>, vector<8x128xf32> -> vector<8x128xf32>
    %236 = arith.addf %198, %235 : vector<8x128xf32>
    %237 = vector.extract_strided_slice %156 {offsets = [0, 32], sizes = [8, 64], strides = [1, 1]} : vector<8x114xf32> to vector<8x64xf32>
    %238 = vector.extract_strided_slice %156 {offsets = [0, 33], sizes = [8, 64], strides = [1, 1]} : vector<8x114xf32> to vector<8x64xf32>
    %239 = vector.extract_strided_slice %156 {offsets = [0, 34], sizes = [8, 64], strides = [1, 1]} : vector<8x114xf32> to vector<8x64xf32>
    %240 = vector.extract_strided_slice %156 {offsets = [0, 35], sizes = [8, 64], strides = [1, 1]} : vector<8x114xf32> to vector<8x64xf32>
    %241 = vector.extract_strided_slice %156 {offsets = [0, 36], sizes = [8, 64], strides = [1, 1]} : vector<8x114xf32> to vector<8x64xf32>
    %242 = vector.extract_strided_slice %156 {offsets = [0, 37], sizes = [8, 64], strides = [1, 1]} : vector<8x114xf32> to vector<8x64xf32>
    %243 = vector.extract_strided_slice %156 {offsets = [0, 38], sizes = [8, 64], strides = [1, 1]} : vector<8x114xf32> to vector<8x64xf32>
    %244 = vector.extract_strided_slice %156 {offsets = [0, 39], sizes = [8, 64], strides = [1, 1]} : vector<8x114xf32> to vector<8x64xf32>
    %245 = vector.extract_strided_slice %156 {offsets = [0, 40], sizes = [8, 64], strides = [1, 1]} : vector<8x114xf32> to vector<8x64xf32>
    %246 = vector.extract_strided_slice %156 {offsets = [0, 41], sizes = [8, 64], strides = [1, 1]} : vector<8x114xf32> to vector<8x64xf32>
    %247 = vector.extract_strided_slice %156 {offsets = [0, 42], sizes = [8, 64], strides = [1, 1]} : vector<8x114xf32> to vector<8x64xf32>
    %248 = vector.extract_strided_slice %156 {offsets = [0, 43], sizes = [8, 64], strides = [1, 1]} : vector<8x114xf32> to vector<8x64xf32>
    %249 = vector.extract_strided_slice %156 {offsets = [0, 44], sizes = [8, 64], strides = [1, 1]} : vector<8x114xf32> to vector<8x64xf32>
    %250 = vector.extract_strided_slice %156 {offsets = [0, 45], sizes = [8, 64], strides = [1, 1]} : vector<8x114xf32> to vector<8x64xf32>
    %251 = vector.extract_strided_slice %156 {offsets = [0, 46], sizes = [8, 64], strides = [1, 1]} : vector<8x114xf32> to vector<8x64xf32>
    %252 = vector.extract_strided_slice %156 {offsets = [0, 47], sizes = [8, 64], strides = [1, 1]} : vector<8x114xf32> to vector<8x64xf32>
    %253 = tpu.concatenate %237, %238, %239, %240, %241, %242, %243, %244, %245, %246, %247, %248, %249, %250, %251, %252 in 0 : vector<8x64xf32>, vector<8x64xf32>, vector<8x64xf32>, vector<8x64xf32>, vector<8x64xf32>, vector<8x64xf32>, vector<8x64xf32>, vector<8x64xf32>, vector<8x64xf32>, vector<8x64xf32>, vector<8x64xf32>, vector<8x64xf32>, vector<8x64xf32>, vector<8x64xf32>, vector<8x64xf32>, vector<8x64xf32> -> vector<128x64xf32>
    %254 = vector.extract_strided_slice %159 {offsets = [0, 32], sizes = [8, 64], strides = [1, 1]} : vector<8x114xf32> to vector<8x64xf32>
    %255 = vector.extract_strided_slice %159 {offsets = [0, 33], sizes = [8, 64], strides = [1, 1]} : vector<8x114xf32> to vector<8x64xf32>
    %256 = vector.extract_strided_slice %159 {offsets = [0, 34], sizes = [8, 64], strides = [1, 1]} : vector<8x114xf32> to vector<8x64xf32>
    %257 = vector.extract_strided_slice %159 {offsets = [0, 35], sizes = [8, 64], strides = [1, 1]} : vector<8x114xf32> to vector<8x64xf32>
    %258 = vector.extract_strided_slice %159 {offsets = [0, 36], sizes = [8, 64], strides = [1, 1]} : vector<8x114xf32> to vector<8x64xf32>
    %259 = vector.extract_strided_slice %159 {offsets = [0, 37], sizes = [8, 64], strides = [1, 1]} : vector<8x114xf32> to vector<8x64xf32>
    %260 = vector.extract_strided_slice %159 {offsets = [0, 38], sizes = [8, 64], strides = [1, 1]} : vector<8x114xf32> to vector<8x64xf32>
    %261 = vector.extract_strided_slice %159 {offsets = [0, 39], sizes = [8, 64], strides = [1, 1]} : vector<8x114xf32> to vector<8x64xf32>
    %262 = vector.extract_strided_slice %159 {offsets = [0, 40], sizes = [8, 64], strides = [1, 1]} : vector<8x114xf32> to vector<8x64xf32>
    %263 = vector.extract_strided_slice %159 {offsets = [0, 41], sizes = [8, 64], strides = [1, 1]} : vector<8x114xf32> to vector<8x64xf32>
    %264 = vector.extract_strided_slice %159 {offsets = [0, 42], sizes = [8, 64], strides = [1, 1]} : vector<8x114xf32> to vector<8x64xf32>
    %265 = vector.extract_strided_slice %159 {offsets = [0, 43], sizes = [8, 64], strides = [1, 1]} : vector<8x114xf32> to vector<8x64xf32>
    %266 = vector.extract_strided_slice %159 {offsets = [0, 44], sizes = [8, 64], strides = [1, 1]} : vector<8x114xf32> to vector<8x64xf32>
    %267 = vector.extract_strided_slice %159 {offsets = [0, 45], sizes = [8, 64], strides = [1, 1]} : vector<8x114xf32> to vector<8x64xf32>
    %268 = vector.extract_strided_slice %159 {offsets = [0, 46], sizes = [8, 64], strides = [1, 1]} : vector<8x114xf32> to vector<8x64xf32>
    %269 = vector.extract_strided_slice %159 {offsets = [0, 47], sizes = [8, 64], strides = [1, 1]} : vector<8x114xf32> to vector<8x64xf32>
    %270 = tpu.concatenate %254, %255, %256, %257, %258, %259, %260, %261, %262, %263, %264, %265, %266, %267, %268, %269 in 0 : vector<8x64xf32>, vector<8x64xf32>, vector<8x64xf32>, vector<8x64xf32>, vector<8x64xf32>, vector<8x64xf32>, vector<8x64xf32>, vector<8x64xf32>, vector<8x64xf32>, vector<8x64xf32>, vector<8x64xf32>, vector<8x64xf32>, vector<8x64xf32>, vector<8x64xf32>, vector<8x64xf32>, vector<8x64xf32> -> vector<128x64xf32>
    %271 = tpu.concatenate %253, %270 in 1 : vector<128x64xf32>, vector<128x64xf32> -> vector<128x128xf32>
    %272 = vector.extract_strided_slice %151 {offsets = [0, 256], sizes = [8, 128], strides = [1, 1]} : vector<8x408xf32> to vector<8x128xf32>
    %cst_25 = arith.constant dense<0.000000e+00> : vector<8x128xf32>
    %273 = tpu.matmul %272, %271, %cst_25 {dimension_numbers = #tpu.dot_dimension_numbers<[1], [0], [0], [1], [0, 0, 1, 1], [], []>} : vector<8x128xf32>, vector<128x128xf32>, vector<8x128xf32> -> vector<8x128xf32>
    %274 = arith.addf %236, %273 : vector<8x128xf32>
    %275 = vector.extract_strided_slice %156 {offsets = [0, 48], sizes = [8, 64], strides = [1, 1]} : vector<8x114xf32> to vector<8x64xf32>
    %276 = vector.extract_strided_slice %156 {offsets = [0, 49], sizes = [8, 64], strides = [1, 1]} : vector<8x114xf32> to vector<8x64xf32>
    %277 = vector.extract_strided_slice %156 {offsets = [0, 50], sizes = [8, 64], strides = [1, 1]} : vector<8x114xf32> to vector<8x64xf32>
    %278 = tpu.concatenate %275, %276, %277 in 0 : vector<8x64xf32>, vector<8x64xf32>, vector<8x64xf32> -> vector<24x64xf32>
    %279 = vector.extract_strided_slice %159 {offsets = [0, 48], sizes = [8, 64], strides = [1, 1]} : vector<8x114xf32> to vector<8x64xf32>
    %280 = vector.extract_strided_slice %159 {offsets = [0, 49], sizes = [8, 64], strides = [1, 1]} : vector<8x114xf32> to vector<8x64xf32>
    %281 = vector.extract_strided_slice %159 {offsets = [0, 50], sizes = [8, 64], strides = [1, 1]} : vector<8x114xf32> to vector<8x64xf32>
    %282 = tpu.concatenate %279, %280, %281 in 0 : vector<8x64xf32>, vector<8x64xf32>, vector<8x64xf32> -> vector<24x64xf32>
    %283 = tpu.concatenate %278, %282 in 1 : vector<24x64xf32>, vector<24x64xf32> -> vector<24x128xf32>
    %284 = vector.extract_strided_slice %151 {offsets = [0, 384], sizes = [8, 24], strides = [1, 1]} : vector<8x408xf32> to vector<8x24xf32>
    %cst_26 = arith.constant dense<0.000000e+00> : vector<8x128xf32>
    %285 = tpu.matmul %284, %283, %cst_26 {dimension_numbers = #tpu.dot_dimension_numbers<[1], [0], [0], [1], [0, 0, 1, 1], [], []>} : vector<8x24xf32>, vector<24x128xf32>, vector<8x128xf32> -> vector<8x128xf32>
    %286 = arith.addf %274, %285 : vector<8x128xf32>
    %287 = vector.broadcast %153 : vector<8x1xf32> to vector<8x128xf32>
    %288 = arith.addf %286, %287 : vector<8x128xf32>
    %cst_27 = arith.constant 0.000000e+00 : f32
    %289 = vector.broadcast %cst_27 : f32 to vector<8x128xf32>
    %290 = arith.maximumf %288, %289 : vector<8x128xf32>
    %291 = vector.extract_strided_slice %290 {offsets = [0, 0], sizes = [8, 64], strides = [1, 1]} : vector<8x128xf32> to vector<8x64xf32>
    %292 = vector.extract_strided_slice %290 {offsets = [0, 64], sizes = [8, 64], strides = [1, 1]} : vector<8x128xf32> to vector<8x64xf32>
    %c2 = arith.constant 2 : index
    %c0_28 = arith.constant 0 : index
    %c0_29 = arith.constant 0 : index
    %293 = vector.load %arg2[%c2, %c0_28, %c0_29] : memref<6x8x408xf32, #tpu.memory_space<vmem>>, vector<1x8x408xf32>
    %294 = vector.shape_cast %293 : vector<1x8x408xf32> to vector<8x408xf32>
    %c2_30 = arith.constant 2 : index
    %c0_31 = arith.constant 0 : index
    %c0_32 = arith.constant 0 : index
    %295 = vector.load %arg3[%c2_30, %c0_31, %c0_32] : memref<6x8x1xf32, #tpu.memory_space<vmem>>, vector<1x8x1xf32>
    %296 = vector.shape_cast %295 : vector<1x8x1xf32> to vector<8x1xf32>
    %297 = vector.extract_strided_slice %291 {offsets = [0, 39], sizes = [8, 25], strides = [1, 1]} : vector<8x64xf32> to vector<8x25xf32>
    %298 = vector.extract_strided_slice %291 {offsets = [0, 0], sizes = [8, 25], strides = [1, 1]} : vector<8x64xf32> to vector<8x25xf32>
    %299 = tpu.concatenate %297, %291, %298 in 1 : vector<8x25xf32>, vector<8x64xf32>, vector<8x25xf32> -> vector<8x114xf32>
    %300 = vector.extract_strided_slice %292 {offsets = [0, 39], sizes = [8, 25], strides = [1, 1]} : vector<8x64xf32> to vector<8x25xf32>
    %301 = vector.extract_strided_slice %292 {offsets = [0, 0], sizes = [8, 25], strides = [1, 1]} : vector<8x64xf32> to vector<8x25xf32>
    %302 = tpu.concatenate %300, %292, %301 in 1 : vector<8x25xf32>, vector<8x64xf32>, vector<8x25xf32> -> vector<8x114xf32>
    %cst_33 = arith.constant 0.000000e+00 : f32
    %303 = vector.broadcast %cst_33 : f32 to vector<8x128xf32>
    %304 = vector.extract_strided_slice %299 {offsets = [0, 0], sizes = [8, 64], strides = [1, 1]} : vector<8x114xf32> to vector<8x64xf32>
    %305 = vector.extract_strided_slice %299 {offsets = [0, 1], sizes = [8, 64], strides = [1, 1]} : vector<8x114xf32> to vector<8x64xf32>
    %306 = vector.extract_strided_slice %299 {offsets = [0, 2], sizes = [8, 64], strides = [1, 1]} : vector<8x114xf32> to vector<8x64xf32>
    %307 = vector.extract_strided_slice %299 {offsets = [0, 3], sizes = [8, 64], strides = [1, 1]} : vector<8x114xf32> to vector<8x64xf32>
    %308 = vector.extract_strided_slice %299 {offsets = [0, 4], sizes = [8, 64], strides = [1, 1]} : vector<8x114xf32> to vector<8x64xf32>
    %309 = vector.extract_strided_slice %299 {offsets = [0, 5], sizes = [8, 64], strides = [1, 1]} : vector<8x114xf32> to vector<8x64xf32>
    %310 = vector.extract_strided_slice %299 {offsets = [0, 6], sizes = [8, 64], strides = [1, 1]} : vector<8x114xf32> to vector<8x64xf32>
    %311 = vector.extract_strided_slice %299 {offsets = [0, 7], sizes = [8, 64], strides = [1, 1]} : vector<8x114xf32> to vector<8x64xf32>
    %312 = vector.extract_strided_slice %299 {offsets = [0, 8], sizes = [8, 64], strides = [1, 1]} : vector<8x114xf32> to vector<8x64xf32>
    %313 = vector.extract_strided_slice %299 {offsets = [0, 9], sizes = [8, 64], strides = [1, 1]} : vector<8x114xf32> to vector<8x64xf32>
    %314 = vector.extract_strided_slice %299 {offsets = [0, 10], sizes = [8, 64], strides = [1, 1]} : vector<8x114xf32> to vector<8x64xf32>
    %315 = vector.extract_strided_slice %299 {offsets = [0, 11], sizes = [8, 64], strides = [1, 1]} : vector<8x114xf32> to vector<8x64xf32>
    %316 = vector.extract_strided_slice %299 {offsets = [0, 12], sizes = [8, 64], strides = [1, 1]} : vector<8x114xf32> to vector<8x64xf32>
    %317 = vector.extract_strided_slice %299 {offsets = [0, 13], sizes = [8, 64], strides = [1, 1]} : vector<8x114xf32> to vector<8x64xf32>
    %318 = vector.extract_strided_slice %299 {offsets = [0, 14], sizes = [8, 64], strides = [1, 1]} : vector<8x114xf32> to vector<8x64xf32>
    %319 = vector.extract_strided_slice %299 {offsets = [0, 15], sizes = [8, 64], strides = [1, 1]} : vector<8x114xf32> to vector<8x64xf32>
    %320 = tpu.concatenate %304, %305, %306, %307, %308, %309, %310, %311, %312, %313, %314, %315, %316, %317, %318, %319 in 0 : vector<8x64xf32>, vector<8x64xf32>, vector<8x64xf32>, vector<8x64xf32>, vector<8x64xf32>, vector<8x64xf32>, vector<8x64xf32>, vector<8x64xf32>, vector<8x64xf32>, vector<8x64xf32>, vector<8x64xf32>, vector<8x64xf32>, vector<8x64xf32>, vector<8x64xf32>, vector<8x64xf32>, vector<8x64xf32> -> vector<128x64xf32>
    %321 = vector.extract_strided_slice %302 {offsets = [0, 0], sizes = [8, 64], strides = [1, 1]} : vector<8x114xf32> to vector<8x64xf32>
    %322 = vector.extract_strided_slice %302 {offsets = [0, 1], sizes = [8, 64], strides = [1, 1]} : vector<8x114xf32> to vector<8x64xf32>
    %323 = vector.extract_strided_slice %302 {offsets = [0, 2], sizes = [8, 64], strides = [1, 1]} : vector<8x114xf32> to vector<8x64xf32>
    %324 = vector.extract_strided_slice %302 {offsets = [0, 3], sizes = [8, 64], strides = [1, 1]} : vector<8x114xf32> to vector<8x64xf32>
    %325 = vector.extract_strided_slice %302 {offsets = [0, 4], sizes = [8, 64], strides = [1, 1]} : vector<8x114xf32> to vector<8x64xf32>
    %326 = vector.extract_strided_slice %302 {offsets = [0, 5], sizes = [8, 64], strides = [1, 1]} : vector<8x114xf32> to vector<8x64xf32>
    %327 = vector.extract_strided_slice %302 {offsets = [0, 6], sizes = [8, 64], strides = [1, 1]} : vector<8x114xf32> to vector<8x64xf32>
    %328 = vector.extract_strided_slice %302 {offsets = [0, 7], sizes = [8, 64], strides = [1, 1]} : vector<8x114xf32> to vector<8x64xf32>
    %329 = vector.extract_strided_slice %302 {offsets = [0, 8], sizes = [8, 64], strides = [1, 1]} : vector<8x114xf32> to vector<8x64xf32>
    %330 = vector.extract_strided_slice %302 {offsets = [0, 9], sizes = [8, 64], strides = [1, 1]} : vector<8x114xf32> to vector<8x64xf32>
    %331 = vector.extract_strided_slice %302 {offsets = [0, 10], sizes = [8, 64], strides = [1, 1]} : vector<8x114xf32> to vector<8x64xf32>
    %332 = vector.extract_strided_slice %302 {offsets = [0, 11], sizes = [8, 64], strides = [1, 1]} : vector<8x114xf32> to vector<8x64xf32>
    %333 = vector.extract_strided_slice %302 {offsets = [0, 12], sizes = [8, 64], strides = [1, 1]} : vector<8x114xf32> to vector<8x64xf32>
    %334 = vector.extract_strided_slice %302 {offsets = [0, 13], sizes = [8, 64], strides = [1, 1]} : vector<8x114xf32> to vector<8x64xf32>
    %335 = vector.extract_strided_slice %302 {offsets = [0, 14], sizes = [8, 64], strides = [1, 1]} : vector<8x114xf32> to vector<8x64xf32>
    %336 = vector.extract_strided_slice %302 {offsets = [0, 15], sizes = [8, 64], strides = [1, 1]} : vector<8x114xf32> to vector<8x64xf32>
    %337 = tpu.concatenate %321, %322, %323, %324, %325, %326, %327, %328, %329, %330, %331, %332, %333, %334, %335, %336 in 0 : vector<8x64xf32>, vector<8x64xf32>, vector<8x64xf32>, vector<8x64xf32>, vector<8x64xf32>, vector<8x64xf32>, vector<8x64xf32>, vector<8x64xf32>, vector<8x64xf32>, vector<8x64xf32>, vector<8x64xf32>, vector<8x64xf32>, vector<8x64xf32>, vector<8x64xf32>, vector<8x64xf32>, vector<8x64xf32> -> vector<128x64xf32>
    %338 = tpu.concatenate %320, %337 in 1 : vector<128x64xf32>, vector<128x64xf32> -> vector<128x128xf32>
    %339 = vector.extract_strided_slice %294 {offsets = [0, 0], sizes = [8, 128], strides = [1, 1]} : vector<8x408xf32> to vector<8x128xf32>
    %cst_34 = arith.constant dense<0.000000e+00> : vector<8x128xf32>
    %340 = tpu.matmul %339, %338, %cst_34 {dimension_numbers = #tpu.dot_dimension_numbers<[1], [0], [0], [1], [0, 0, 1, 1], [], []>} : vector<8x128xf32>, vector<128x128xf32>, vector<8x128xf32> -> vector<8x128xf32>
    %341 = arith.addf %303, %340 : vector<8x128xf32>
    %342 = vector.extract_strided_slice %299 {offsets = [0, 16], sizes = [8, 64], strides = [1, 1]} : vector<8x114xf32> to vector<8x64xf32>
    %343 = vector.extract_strided_slice %299 {offsets = [0, 17], sizes = [8, 64], strides = [1, 1]} : vector<8x114xf32> to vector<8x64xf32>
    %344 = vector.extract_strided_slice %299 {offsets = [0, 18], sizes = [8, 64], strides = [1, 1]} : vector<8x114xf32> to vector<8x64xf32>
    %345 = vector.extract_strided_slice %299 {offsets = [0, 19], sizes = [8, 64], strides = [1, 1]} : vector<8x114xf32> to vector<8x64xf32>
    %346 = vector.extract_strided_slice %299 {offsets = [0, 20], sizes = [8, 64], strides = [1, 1]} : vector<8x114xf32> to vector<8x64xf32>
    %347 = vector.extract_strided_slice %299 {offsets = [0, 21], sizes = [8, 64], strides = [1, 1]} : vector<8x114xf32> to vector<8x64xf32>
    %348 = vector.extract_strided_slice %299 {offsets = [0, 22], sizes = [8, 64], strides = [1, 1]} : vector<8x114xf32> to vector<8x64xf32>
    %349 = vector.extract_strided_slice %299 {offsets = [0, 23], sizes = [8, 64], strides = [1, 1]} : vector<8x114xf32> to vector<8x64xf32>
    %350 = vector.extract_strided_slice %299 {offsets = [0, 24], sizes = [8, 64], strides = [1, 1]} : vector<8x114xf32> to vector<8x64xf32>
    %351 = vector.extract_strided_slice %299 {offsets = [0, 25], sizes = [8, 64], strides = [1, 1]} : vector<8x114xf32> to vector<8x64xf32>
    %352 = vector.extract_strided_slice %299 {offsets = [0, 26], sizes = [8, 64], strides = [1, 1]} : vector<8x114xf32> to vector<8x64xf32>
    %353 = vector.extract_strided_slice %299 {offsets = [0, 27], sizes = [8, 64], strides = [1, 1]} : vector<8x114xf32> to vector<8x64xf32>
    %354 = vector.extract_strided_slice %299 {offsets = [0, 28], sizes = [8, 64], strides = [1, 1]} : vector<8x114xf32> to vector<8x64xf32>
    %355 = vector.extract_strided_slice %299 {offsets = [0, 29], sizes = [8, 64], strides = [1, 1]} : vector<8x114xf32> to vector<8x64xf32>
    %356 = vector.extract_strided_slice %299 {offsets = [0, 30], sizes = [8, 64], strides = [1, 1]} : vector<8x114xf32> to vector<8x64xf32>
    %357 = vector.extract_strided_slice %299 {offsets = [0, 31], sizes = [8, 64], strides = [1, 1]} : vector<8x114xf32> to vector<8x64xf32>
    %358 = tpu.concatenate %342, %343, %344, %345, %346, %347, %348, %349, %350, %351, %352, %353, %354, %355, %356, %357 in 0 : vector<8x64xf32>, vector<8x64xf32>, vector<8x64xf32>, vector<8x64xf32>, vector<8x64xf32>, vector<8x64xf32>, vector<8x64xf32>, vector<8x64xf32>, vector<8x64xf32>, vector<8x64xf32>, vector<8x64xf32>, vector<8x64xf32>, vector<8x64xf32>, vector<8x64xf32>, vector<8x64xf32>, vector<8x64xf32> -> vector<128x64xf32>
    %359 = vector.extract_strided_slice %302 {offsets = [0, 16], sizes = [8, 64], strides = [1, 1]} : vector<8x114xf32> to vector<8x64xf32>
    %360 = vector.extract_strided_slice %302 {offsets = [0, 17], sizes = [8, 64], strides = [1, 1]} : vector<8x114xf32> to vector<8x64xf32>
    %361 = vector.extract_strided_slice %302 {offsets = [0, 18], sizes = [8, 64], strides = [1, 1]} : vector<8x114xf32> to vector<8x64xf32>
    %362 = vector.extract_strided_slice %302 {offsets = [0, 19], sizes = [8, 64], strides = [1, 1]} : vector<8x114xf32> to vector<8x64xf32>
    %363 = vector.extract_strided_slice %302 {offsets = [0, 20], sizes = [8, 64], strides = [1, 1]} : vector<8x114xf32> to vector<8x64xf32>
    %364 = vector.extract_strided_slice %302 {offsets = [0, 21], sizes = [8, 64], strides = [1, 1]} : vector<8x114xf32> to vector<8x64xf32>
    %365 = vector.extract_strided_slice %302 {offsets = [0, 22], sizes = [8, 64], strides = [1, 1]} : vector<8x114xf32> to vector<8x64xf32>
    %366 = vector.extract_strided_slice %302 {offsets = [0, 23], sizes = [8, 64], strides = [1, 1]} : vector<8x114xf32> to vector<8x64xf32>
    %367 = vector.extract_strided_slice %302 {offsets = [0, 24], sizes = [8, 64], strides = [1, 1]} : vector<8x114xf32> to vector<8x64xf32>
    %368 = vector.extract_strided_slice %302 {offsets = [0, 25], sizes = [8, 64], strides = [1, 1]} : vector<8x114xf32> to vector<8x64xf32>
    %369 = vector.extract_strided_slice %302 {offsets = [0, 26], sizes = [8, 64], strides = [1, 1]} : vector<8x114xf32> to vector<8x64xf32>
    %370 = vector.extract_strided_slice %302 {offsets = [0, 27], sizes = [8, 64], strides = [1, 1]} : vector<8x114xf32> to vector<8x64xf32>
    %371 = vector.extract_strided_slice %302 {offsets = [0, 28], sizes = [8, 64], strides = [1, 1]} : vector<8x114xf32> to vector<8x64xf32>
    %372 = vector.extract_strided_slice %302 {offsets = [0, 29], sizes = [8, 64], strides = [1, 1]} : vector<8x114xf32> to vector<8x64xf32>
    %373 = vector.extract_strided_slice %302 {offsets = [0, 30], sizes = [8, 64], strides = [1, 1]} : vector<8x114xf32> to vector<8x64xf32>
    %374 = vector.extract_strided_slice %302 {offsets = [0, 31], sizes = [8, 64], strides = [1, 1]} : vector<8x114xf32> to vector<8x64xf32>
    %375 = tpu.concatenate %359, %360, %361, %362, %363, %364, %365, %366, %367, %368, %369, %370, %371, %372, %373, %374 in 0 : vector<8x64xf32>, vector<8x64xf32>, vector<8x64xf32>, vector<8x64xf32>, vector<8x64xf32>, vector<8x64xf32>, vector<8x64xf32>, vector<8x64xf32>, vector<8x64xf32>, vector<8x64xf32>, vector<8x64xf32>, vector<8x64xf32>, vector<8x64xf32>, vector<8x64xf32>, vector<8x64xf32>, vector<8x64xf32> -> vector<128x64xf32>
    %376 = tpu.concatenate %358, %375 in 1 : vector<128x64xf32>, vector<128x64xf32> -> vector<128x128xf32>
    %377 = vector.extract_strided_slice %294 {offsets = [0, 128], sizes = [8, 128], strides = [1, 1]} : vector<8x408xf32> to vector<8x128xf32>
    %cst_35 = arith.constant dense<0.000000e+00> : vector<8x128xf32>
    %378 = tpu.matmul %377, %376, %cst_35 {dimension_numbers = #tpu.dot_dimension_numbers<[1], [0], [0], [1], [0, 0, 1, 1], [], []>} : vector<8x128xf32>, vector<128x128xf32>, vector<8x128xf32> -> vector<8x128xf32>
    %379 = arith.addf %341, %378 : vector<8x128xf32>
    %380 = vector.extract_strided_slice %299 {offsets = [0, 32], sizes = [8, 64], strides = [1, 1]} : vector<8x114xf32> to vector<8x64xf32>
    %381 = vector.extract_strided_slice %299 {offsets = [0, 33], sizes = [8, 64], strides = [1, 1]} : vector<8x114xf32> to vector<8x64xf32>
    %382 = vector.extract_strided_slice %299 {offsets = [0, 34], sizes = [8, 64], strides = [1, 1]} : vector<8x114xf32> to vector<8x64xf32>
    %383 = vector.extract_strided_slice %299 {offsets = [0, 35], sizes = [8, 64], strides = [1, 1]} : vector<8x114xf32> to vector<8x64xf32>
    %384 = vector.extract_strided_slice %299 {offsets = [0, 36], sizes = [8, 64], strides = [1, 1]} : vector<8x114xf32> to vector<8x64xf32>
    %385 = vector.extract_strided_slice %299 {offsets = [0, 37], sizes = [8, 64], strides = [1, 1]} : vector<8x114xf32> to vector<8x64xf32>
    %386 = vector.extract_strided_slice %299 {offsets = [0, 38], sizes = [8, 64], strides = [1, 1]} : vector<8x114xf32> to vector<8x64xf32>
    %387 = vector.extract_strided_slice %299 {offsets = [0, 39], sizes = [8, 64], strides = [1, 1]} : vector<8x114xf32> to vector<8x64xf32>
    %388 = vector.extract_strided_slice %299 {offsets = [0, 40], sizes = [8, 64], strides = [1, 1]} : vector<8x114xf32> to vector<8x64xf32>
    %389 = vector.extract_strided_slice %299 {offsets = [0, 41], sizes = [8, 64], strides = [1, 1]} : vector<8x114xf32> to vector<8x64xf32>
    %390 = vector.extract_strided_slice %299 {offsets = [0, 42], sizes = [8, 64], strides = [1, 1]} : vector<8x114xf32> to vector<8x64xf32>
    %391 = vector.extract_strided_slice %299 {offsets = [0, 43], sizes = [8, 64], strides = [1, 1]} : vector<8x114xf32> to vector<8x64xf32>
    %392 = vector.extract_strided_slice %299 {offsets = [0, 44], sizes = [8, 64], strides = [1, 1]} : vector<8x114xf32> to vector<8x64xf32>
    %393 = vector.extract_strided_slice %299 {offsets = [0, 45], sizes = [8, 64], strides = [1, 1]} : vector<8x114xf32> to vector<8x64xf32>
    %394 = vector.extract_strided_slice %299 {offsets = [0, 46], sizes = [8, 64], strides = [1, 1]} : vector<8x114xf32> to vector<8x64xf32>
    %395 = vector.extract_strided_slice %299 {offsets = [0, 47], sizes = [8, 64], strides = [1, 1]} : vector<8x114xf32> to vector<8x64xf32>
    %396 = tpu.concatenate %380, %381, %382, %383, %384, %385, %386, %387, %388, %389, %390, %391, %392, %393, %394, %395 in 0 : vector<8x64xf32>, vector<8x64xf32>, vector<8x64xf32>, vector<8x64xf32>, vector<8x64xf32>, vector<8x64xf32>, vector<8x64xf32>, vector<8x64xf32>, vector<8x64xf32>, vector<8x64xf32>, vector<8x64xf32>, vector<8x64xf32>, vector<8x64xf32>, vector<8x64xf32>, vector<8x64xf32>, vector<8x64xf32> -> vector<128x64xf32>
    %397 = vector.extract_strided_slice %302 {offsets = [0, 32], sizes = [8, 64], strides = [1, 1]} : vector<8x114xf32> to vector<8x64xf32>
    %398 = vector.extract_strided_slice %302 {offsets = [0, 33], sizes = [8, 64], strides = [1, 1]} : vector<8x114xf32> to vector<8x64xf32>
    %399 = vector.extract_strided_slice %302 {offsets = [0, 34], sizes = [8, 64], strides = [1, 1]} : vector<8x114xf32> to vector<8x64xf32>
    %400 = vector.extract_strided_slice %302 {offsets = [0, 35], sizes = [8, 64], strides = [1, 1]} : vector<8x114xf32> to vector<8x64xf32>
    %401 = vector.extract_strided_slice %302 {offsets = [0, 36], sizes = [8, 64], strides = [1, 1]} : vector<8x114xf32> to vector<8x64xf32>
    %402 = vector.extract_strided_slice %302 {offsets = [0, 37], sizes = [8, 64], strides = [1, 1]} : vector<8x114xf32> to vector<8x64xf32>
    %403 = vector.extract_strided_slice %302 {offsets = [0, 38], sizes = [8, 64], strides = [1, 1]} : vector<8x114xf32> to vector<8x64xf32>
    %404 = vector.extract_strided_slice %302 {offsets = [0, 39], sizes = [8, 64], strides = [1, 1]} : vector<8x114xf32> to vector<8x64xf32>
    %405 = vector.extract_strided_slice %302 {offsets = [0, 40], sizes = [8, 64], strides = [1, 1]} : vector<8x114xf32> to vector<8x64xf32>
    %406 = vector.extract_strided_slice %302 {offsets = [0, 41], sizes = [8, 64], strides = [1, 1]} : vector<8x114xf32> to vector<8x64xf32>
    %407 = vector.extract_strided_slice %302 {offsets = [0, 42], sizes = [8, 64], strides = [1, 1]} : vector<8x114xf32> to vector<8x64xf32>
    %408 = vector.extract_strided_slice %302 {offsets = [0, 43], sizes = [8, 64], strides = [1, 1]} : vector<8x114xf32> to vector<8x64xf32>
    %409 = vector.extract_strided_slice %302 {offsets = [0, 44], sizes = [8, 64], strides = [1, 1]} : vector<8x114xf32> to vector<8x64xf32>
    %410 = vector.extract_strided_slice %302 {offsets = [0, 45], sizes = [8, 64], strides = [1, 1]} : vector<8x114xf32> to vector<8x64xf32>
    %411 = vector.extract_strided_slice %302 {offsets = [0, 46], sizes = [8, 64], strides = [1, 1]} : vector<8x114xf32> to vector<8x64xf32>
    %412 = vector.extract_strided_slice %302 {offsets = [0, 47], sizes = [8, 64], strides = [1, 1]} : vector<8x114xf32> to vector<8x64xf32>
    %413 = tpu.concatenate %397, %398, %399, %400, %401, %402, %403, %404, %405, %406, %407, %408, %409, %410, %411, %412 in 0 : vector<8x64xf32>, vector<8x64xf32>, vector<8x64xf32>, vector<8x64xf32>, vector<8x64xf32>, vector<8x64xf32>, vector<8x64xf32>, vector<8x64xf32>, vector<8x64xf32>, vector<8x64xf32>, vector<8x64xf32>, vector<8x64xf32>, vector<8x64xf32>, vector<8x64xf32>, vector<8x64xf32>, vector<8x64xf32> -> vector<128x64xf32>
    %414 = tpu.concatenate %396, %413 in 1 : vector<128x64xf32>, vector<128x64xf32> -> vector<128x128xf32>
    %415 = vector.extract_strided_slice %294 {offsets = [0, 256], sizes = [8, 128], strides = [1, 1]} : vector<8x408xf32> to vector<8x128xf32>
    %cst_36 = arith.constant dense<0.000000e+00> : vector<8x128xf32>
    %416 = tpu.matmul %415, %414, %cst_36 {dimension_numbers = #tpu.dot_dimension_numbers<[1], [0], [0], [1], [0, 0, 1, 1], [], []>} : vector<8x128xf32>, vector<128x128xf32>, vector<8x128xf32> -> vector<8x128xf32>
    %417 = arith.addf %379, %416 : vector<8x128xf32>
    %418 = vector.extract_strided_slice %299 {offsets = [0, 48], sizes = [8, 64], strides = [1, 1]} : vector<8x114xf32> to vector<8x64xf32>
    %419 = vector.extract_strided_slice %299 {offsets = [0, 49], sizes = [8, 64], strides = [1, 1]} : vector<8x114xf32> to vector<8x64xf32>
    %420 = vector.extract_strided_slice %299 {offsets = [0, 50], sizes = [8, 64], strides = [1, 1]} : vector<8x114xf32> to vector<8x64xf32>
    %421 = tpu.concatenate %418, %419, %420 in 0 : vector<8x64xf32>, vector<8x64xf32>, vector<8x64xf32> -> vector<24x64xf32>
    %422 = vector.extract_strided_slice %302 {offsets = [0, 48], sizes = [8, 64], strides = [1, 1]} : vector<8x114xf32> to vector<8x64xf32>
    %423 = vector.extract_strided_slice %302 {offsets = [0, 49], sizes = [8, 64], strides = [1, 1]} : vector<8x114xf32> to vector<8x64xf32>
    %424 = vector.extract_strided_slice %302 {offsets = [0, 50], sizes = [8, 64], strides = [1, 1]} : vector<8x114xf32> to vector<8x64xf32>
    %425 = tpu.concatenate %422, %423, %424 in 0 : vector<8x64xf32>, vector<8x64xf32>, vector<8x64xf32> -> vector<24x64xf32>
    %426 = tpu.concatenate %421, %425 in 1 : vector<24x64xf32>, vector<24x64xf32> -> vector<24x128xf32>
    %427 = vector.extract_strided_slice %294 {offsets = [0, 384], sizes = [8, 24], strides = [1, 1]} : vector<8x408xf32> to vector<8x24xf32>
    %cst_37 = arith.constant dense<0.000000e+00> : vector<8x128xf32>
    %428 = tpu.matmul %427, %426, %cst_37 {dimension_numbers = #tpu.dot_dimension_numbers<[1], [0], [0], [1], [0, 0, 1, 1], [], []>} : vector<8x24xf32>, vector<24x128xf32>, vector<8x128xf32> -> vector<8x128xf32>
    %429 = arith.addf %417, %428 : vector<8x128xf32>
    %430 = vector.broadcast %296 : vector<8x1xf32> to vector<8x128xf32>
    %431 = arith.addf %429, %430 : vector<8x128xf32>
    %cst_38 = arith.constant 0.000000e+00 : f32
    %432 = vector.broadcast %cst_38 : f32 to vector<8x128xf32>
    %433 = arith.maximumf %431, %432 : vector<8x128xf32>
    %434 = vector.extract_strided_slice %433 {offsets = [0, 0], sizes = [8, 64], strides = [1, 1]} : vector<8x128xf32> to vector<8x64xf32>
    %435 = vector.extract_strided_slice %433 {offsets = [0, 64], sizes = [8, 64], strides = [1, 1]} : vector<8x128xf32> to vector<8x64xf32>
    %c3 = arith.constant 3 : index
    %c0_39 = arith.constant 0 : index
    %c0_40 = arith.constant 0 : index
    %436 = vector.load %arg2[%c3, %c0_39, %c0_40] : memref<6x8x408xf32, #tpu.memory_space<vmem>>, vector<1x8x408xf32>
    %437 = vector.shape_cast %436 : vector<1x8x408xf32> to vector<8x408xf32>
    %c3_41 = arith.constant 3 : index
    %c0_42 = arith.constant 0 : index
    %c0_43 = arith.constant 0 : index
    %438 = vector.load %arg3[%c3_41, %c0_42, %c0_43] : memref<6x8x1xf32, #tpu.memory_space<vmem>>, vector<1x8x1xf32>
    %439 = vector.shape_cast %438 : vector<1x8x1xf32> to vector<8x1xf32>
    %440 = vector.extract_strided_slice %434 {offsets = [0, 39], sizes = [8, 25], strides = [1, 1]} : vector<8x64xf32> to vector<8x25xf32>
    %441 = vector.extract_strided_slice %434 {offsets = [0, 0], sizes = [8, 25], strides = [1, 1]} : vector<8x64xf32> to vector<8x25xf32>
    %442 = tpu.concatenate %440, %434, %441 in 1 : vector<8x25xf32>, vector<8x64xf32>, vector<8x25xf32> -> vector<8x114xf32>
    %443 = vector.extract_strided_slice %435 {offsets = [0, 39], sizes = [8, 25], strides = [1, 1]} : vector<8x64xf32> to vector<8x25xf32>
    %444 = vector.extract_strided_slice %435 {offsets = [0, 0], sizes = [8, 25], strides = [1, 1]} : vector<8x64xf32> to vector<8x25xf32>
    %445 = tpu.concatenate %443, %435, %444 in 1 : vector<8x25xf32>, vector<8x64xf32>, vector<8x25xf32> -> vector<8x114xf32>
    %cst_44 = arith.constant 0.000000e+00 : f32
    %446 = vector.broadcast %cst_44 : f32 to vector<8x128xf32>
    %447 = vector.extract_strided_slice %442 {offsets = [0, 0], sizes = [8, 64], strides = [1, 1]} : vector<8x114xf32> to vector<8x64xf32>
    %448 = vector.extract_strided_slice %442 {offsets = [0, 1], sizes = [8, 64], strides = [1, 1]} : vector<8x114xf32> to vector<8x64xf32>
    %449 = vector.extract_strided_slice %442 {offsets = [0, 2], sizes = [8, 64], strides = [1, 1]} : vector<8x114xf32> to vector<8x64xf32>
    %450 = vector.extract_strided_slice %442 {offsets = [0, 3], sizes = [8, 64], strides = [1, 1]} : vector<8x114xf32> to vector<8x64xf32>
    %451 = vector.extract_strided_slice %442 {offsets = [0, 4], sizes = [8, 64], strides = [1, 1]} : vector<8x114xf32> to vector<8x64xf32>
    %452 = vector.extract_strided_slice %442 {offsets = [0, 5], sizes = [8, 64], strides = [1, 1]} : vector<8x114xf32> to vector<8x64xf32>
    %453 = vector.extract_strided_slice %442 {offsets = [0, 6], sizes = [8, 64], strides = [1, 1]} : vector<8x114xf32> to vector<8x64xf32>
    %454 = vector.extract_strided_slice %442 {offsets = [0, 7], sizes = [8, 64], strides = [1, 1]} : vector<8x114xf32> to vector<8x64xf32>
    %455 = vector.extract_strided_slice %442 {offsets = [0, 8], sizes = [8, 64], strides = [1, 1]} : vector<8x114xf32> to vector<8x64xf32>
    %456 = vector.extract_strided_slice %442 {offsets = [0, 9], sizes = [8, 64], strides = [1, 1]} : vector<8x114xf32> to vector<8x64xf32>
    %457 = vector.extract_strided_slice %442 {offsets = [0, 10], sizes = [8, 64], strides = [1, 1]} : vector<8x114xf32> to vector<8x64xf32>
    %458 = vector.extract_strided_slice %442 {offsets = [0, 11], sizes = [8, 64], strides = [1, 1]} : vector<8x114xf32> to vector<8x64xf32>
    %459 = vector.extract_strided_slice %442 {offsets = [0, 12], sizes = [8, 64], strides = [1, 1]} : vector<8x114xf32> to vector<8x64xf32>
    %460 = vector.extract_strided_slice %442 {offsets = [0, 13], sizes = [8, 64], strides = [1, 1]} : vector<8x114xf32> to vector<8x64xf32>
    %461 = vector.extract_strided_slice %442 {offsets = [0, 14], sizes = [8, 64], strides = [1, 1]} : vector<8x114xf32> to vector<8x64xf32>
    %462 = vector.extract_strided_slice %442 {offsets = [0, 15], sizes = [8, 64], strides = [1, 1]} : vector<8x114xf32> to vector<8x64xf32>
    %463 = tpu.concatenate %447, %448, %449, %450, %451, %452, %453, %454, %455, %456, %457, %458, %459, %460, %461, %462 in 0 : vector<8x64xf32>, vector<8x64xf32>, vector<8x64xf32>, vector<8x64xf32>, vector<8x64xf32>, vector<8x64xf32>, vector<8x64xf32>, vector<8x64xf32>, vector<8x64xf32>, vector<8x64xf32>, vector<8x64xf32>, vector<8x64xf32>, vector<8x64xf32>, vector<8x64xf32>, vector<8x64xf32>, vector<8x64xf32> -> vector<128x64xf32>
    %464 = vector.extract_strided_slice %445 {offsets = [0, 0], sizes = [8, 64], strides = [1, 1]} : vector<8x114xf32> to vector<8x64xf32>
    %465 = vector.extract_strided_slice %445 {offsets = [0, 1], sizes = [8, 64], strides = [1, 1]} : vector<8x114xf32> to vector<8x64xf32>
    %466 = vector.extract_strided_slice %445 {offsets = [0, 2], sizes = [8, 64], strides = [1, 1]} : vector<8x114xf32> to vector<8x64xf32>
    %467 = vector.extract_strided_slice %445 {offsets = [0, 3], sizes = [8, 64], strides = [1, 1]} : vector<8x114xf32> to vector<8x64xf32>
    %468 = vector.extract_strided_slice %445 {offsets = [0, 4], sizes = [8, 64], strides = [1, 1]} : vector<8x114xf32> to vector<8x64xf32>
    %469 = vector.extract_strided_slice %445 {offsets = [0, 5], sizes = [8, 64], strides = [1, 1]} : vector<8x114xf32> to vector<8x64xf32>
    %470 = vector.extract_strided_slice %445 {offsets = [0, 6], sizes = [8, 64], strides = [1, 1]} : vector<8x114xf32> to vector<8x64xf32>
    %471 = vector.extract_strided_slice %445 {offsets = [0, 7], sizes = [8, 64], strides = [1, 1]} : vector<8x114xf32> to vector<8x64xf32>
    %472 = vector.extract_strided_slice %445 {offsets = [0, 8], sizes = [8, 64], strides = [1, 1]} : vector<8x114xf32> to vector<8x64xf32>
    %473 = vector.extract_strided_slice %445 {offsets = [0, 9], sizes = [8, 64], strides = [1, 1]} : vector<8x114xf32> to vector<8x64xf32>
    %474 = vector.extract_strided_slice %445 {offsets = [0, 10], sizes = [8, 64], strides = [1, 1]} : vector<8x114xf32> to vector<8x64xf32>
    %475 = vector.extract_strided_slice %445 {offsets = [0, 11], sizes = [8, 64], strides = [1, 1]} : vector<8x114xf32> to vector<8x64xf32>
    %476 = vector.extract_strided_slice %445 {offsets = [0, 12], sizes = [8, 64], strides = [1, 1]} : vector<8x114xf32> to vector<8x64xf32>
    %477 = vector.extract_strided_slice %445 {offsets = [0, 13], sizes = [8, 64], strides = [1, 1]} : vector<8x114xf32> to vector<8x64xf32>
    %478 = vector.extract_strided_slice %445 {offsets = [0, 14], sizes = [8, 64], strides = [1, 1]} : vector<8x114xf32> to vector<8x64xf32>
    %479 = vector.extract_strided_slice %445 {offsets = [0, 15], sizes = [8, 64], strides = [1, 1]} : vector<8x114xf32> to vector<8x64xf32>
    %480 = tpu.concatenate %464, %465, %466, %467, %468, %469, %470, %471, %472, %473, %474, %475, %476, %477, %478, %479 in 0 : vector<8x64xf32>, vector<8x64xf32>, vector<8x64xf32>, vector<8x64xf32>, vector<8x64xf32>, vector<8x64xf32>, vector<8x64xf32>, vector<8x64xf32>, vector<8x64xf32>, vector<8x64xf32>, vector<8x64xf32>, vector<8x64xf32>, vector<8x64xf32>, vector<8x64xf32>, vector<8x64xf32>, vector<8x64xf32> -> vector<128x64xf32>
    %481 = tpu.concatenate %463, %480 in 1 : vector<128x64xf32>, vector<128x64xf32> -> vector<128x128xf32>
    %482 = vector.extract_strided_slice %437 {offsets = [0, 0], sizes = [8, 128], strides = [1, 1]} : vector<8x408xf32> to vector<8x128xf32>
    %cst_45 = arith.constant dense<0.000000e+00> : vector<8x128xf32>
    %483 = tpu.matmul %482, %481, %cst_45 {dimension_numbers = #tpu.dot_dimension_numbers<[1], [0], [0], [1], [0, 0, 1, 1], [], []>} : vector<8x128xf32>, vector<128x128xf32>, vector<8x128xf32> -> vector<8x128xf32>
    %484 = arith.addf %446, %483 : vector<8x128xf32>
    %485 = vector.extract_strided_slice %442 {offsets = [0, 16], sizes = [8, 64], strides = [1, 1]} : vector<8x114xf32> to vector<8x64xf32>
    %486 = vector.extract_strided_slice %442 {offsets = [0, 17], sizes = [8, 64], strides = [1, 1]} : vector<8x114xf32> to vector<8x64xf32>
    %487 = vector.extract_strided_slice %442 {offsets = [0, 18], sizes = [8, 64], strides = [1, 1]} : vector<8x114xf32> to vector<8x64xf32>
    %488 = vector.extract_strided_slice %442 {offsets = [0, 19], sizes = [8, 64], strides = [1, 1]} : vector<8x114xf32> to vector<8x64xf32>
    %489 = vector.extract_strided_slice %442 {offsets = [0, 20], sizes = [8, 64], strides = [1, 1]} : vector<8x114xf32> to vector<8x64xf32>
    %490 = vector.extract_strided_slice %442 {offsets = [0, 21], sizes = [8, 64], strides = [1, 1]} : vector<8x114xf32> to vector<8x64xf32>
    %491 = vector.extract_strided_slice %442 {offsets = [0, 22], sizes = [8, 64], strides = [1, 1]} : vector<8x114xf32> to vector<8x64xf32>
    %492 = vector.extract_strided_slice %442 {offsets = [0, 23], sizes = [8, 64], strides = [1, 1]} : vector<8x114xf32> to vector<8x64xf32>
    %493 = vector.extract_strided_slice %442 {offsets = [0, 24], sizes = [8, 64], strides = [1, 1]} : vector<8x114xf32> to vector<8x64xf32>
    %494 = vector.extract_strided_slice %442 {offsets = [0, 25], sizes = [8, 64], strides = [1, 1]} : vector<8x114xf32> to vector<8x64xf32>
    %495 = vector.extract_strided_slice %442 {offsets = [0, 26], sizes = [8, 64], strides = [1, 1]} : vector<8x114xf32> to vector<8x64xf32>
    %496 = vector.extract_strided_slice %442 {offsets = [0, 27], sizes = [8, 64], strides = [1, 1]} : vector<8x114xf32> to vector<8x64xf32>
    %497 = vector.extract_strided_slice %442 {offsets = [0, 28], sizes = [8, 64], strides = [1, 1]} : vector<8x114xf32> to vector<8x64xf32>
    %498 = vector.extract_strided_slice %442 {offsets = [0, 29], sizes = [8, 64], strides = [1, 1]} : vector<8x114xf32> to vector<8x64xf32>
    %499 = vector.extract_strided_slice %442 {offsets = [0, 30], sizes = [8, 64], strides = [1, 1]} : vector<8x114xf32> to vector<8x64xf32>
    %500 = vector.extract_strided_slice %442 {offsets = [0, 31], sizes = [8, 64], strides = [1, 1]} : vector<8x114xf32> to vector<8x64xf32>
    %501 = tpu.concatenate %485, %486, %487, %488, %489, %490, %491, %492, %493, %494, %495, %496, %497, %498, %499, %500 in 0 : vector<8x64xf32>, vector<8x64xf32>, vector<8x64xf32>, vector<8x64xf32>, vector<8x64xf32>, vector<8x64xf32>, vector<8x64xf32>, vector<8x64xf32>, vector<8x64xf32>, vector<8x64xf32>, vector<8x64xf32>, vector<8x64xf32>, vector<8x64xf32>, vector<8x64xf32>, vector<8x64xf32>, vector<8x64xf32> -> vector<128x64xf32>
    %502 = vector.extract_strided_slice %445 {offsets = [0, 16], sizes = [8, 64], strides = [1, 1]} : vector<8x114xf32> to vector<8x64xf32>
    %503 = vector.extract_strided_slice %445 {offsets = [0, 17], sizes = [8, 64], strides = [1, 1]} : vector<8x114xf32> to vector<8x64xf32>
    %504 = vector.extract_strided_slice %445 {offsets = [0, 18], sizes = [8, 64], strides = [1, 1]} : vector<8x114xf32> to vector<8x64xf32>
    %505 = vector.extract_strided_slice %445 {offsets = [0, 19], sizes = [8, 64], strides = [1, 1]} : vector<8x114xf32> to vector<8x64xf32>
    %506 = vector.extract_strided_slice %445 {offsets = [0, 20], sizes = [8, 64], strides = [1, 1]} : vector<8x114xf32> to vector<8x64xf32>
    %507 = vector.extract_strided_slice %445 {offsets = [0, 21], sizes = [8, 64], strides = [1, 1]} : vector<8x114xf32> to vector<8x64xf32>
    %508 = vector.extract_strided_slice %445 {offsets = [0, 22], sizes = [8, 64], strides = [1, 1]} : vector<8x114xf32> to vector<8x64xf32>
    %509 = vector.extract_strided_slice %445 {offsets = [0, 23], sizes = [8, 64], strides = [1, 1]} : vector<8x114xf32> to vector<8x64xf32>
    %510 = vector.extract_strided_slice %445 {offsets = [0, 24], sizes = [8, 64], strides = [1, 1]} : vector<8x114xf32> to vector<8x64xf32>
    %511 = vector.extract_strided_slice %445 {offsets = [0, 25], sizes = [8, 64], strides = [1, 1]} : vector<8x114xf32> to vector<8x64xf32>
    %512 = vector.extract_strided_slice %445 {offsets = [0, 26], sizes = [8, 64], strides = [1, 1]} : vector<8x114xf32> to vector<8x64xf32>
    %513 = vector.extract_strided_slice %445 {offsets = [0, 27], sizes = [8, 64], strides = [1, 1]} : vector<8x114xf32> to vector<8x64xf32>
    %514 = vector.extract_strided_slice %445 {offsets = [0, 28], sizes = [8, 64], strides = [1, 1]} : vector<8x114xf32> to vector<8x64xf32>
    %515 = vector.extract_strided_slice %445 {offsets = [0, 29], sizes = [8, 64], strides = [1, 1]} : vector<8x114xf32> to vector<8x64xf32>
    %516 = vector.extract_strided_slice %445 {offsets = [0, 30], sizes = [8, 64], strides = [1, 1]} : vector<8x114xf32> to vector<8x64xf32>
    %517 = vector.extract_strided_slice %445 {offsets = [0, 31], sizes = [8, 64], strides = [1, 1]} : vector<8x114xf32> to vector<8x64xf32>
    %518 = tpu.concatenate %502, %503, %504, %505, %506, %507, %508, %509, %510, %511, %512, %513, %514, %515, %516, %517 in 0 : vector<8x64xf32>, vector<8x64xf32>, vector<8x64xf32>, vector<8x64xf32>, vector<8x64xf32>, vector<8x64xf32>, vector<8x64xf32>, vector<8x64xf32>, vector<8x64xf32>, vector<8x64xf32>, vector<8x64xf32>, vector<8x64xf32>, vector<8x64xf32>, vector<8x64xf32>, vector<8x64xf32>, vector<8x64xf32> -> vector<128x64xf32>
    %519 = tpu.concatenate %501, %518 in 1 : vector<128x64xf32>, vector<128x64xf32> -> vector<128x128xf32>
    %520 = vector.extract_strided_slice %437 {offsets = [0, 128], sizes = [8, 128], strides = [1, 1]} : vector<8x408xf32> to vector<8x128xf32>
    %cst_46 = arith.constant dense<0.000000e+00> : vector<8x128xf32>
    %521 = tpu.matmul %520, %519, %cst_46 {dimension_numbers = #tpu.dot_dimension_numbers<[1], [0], [0], [1], [0, 0, 1, 1], [], []>} : vector<8x128xf32>, vector<128x128xf32>, vector<8x128xf32> -> vector<8x128xf32>
    %522 = arith.addf %484, %521 : vector<8x128xf32>
    %523 = vector.extract_strided_slice %442 {offsets = [0, 32], sizes = [8, 64], strides = [1, 1]} : vector<8x114xf32> to vector<8x64xf32>
    %524 = vector.extract_strided_slice %442 {offsets = [0, 33], sizes = [8, 64], strides = [1, 1]} : vector<8x114xf32> to vector<8x64xf32>
    %525 = vector.extract_strided_slice %442 {offsets = [0, 34], sizes = [8, 64], strides = [1, 1]} : vector<8x114xf32> to vector<8x64xf32>
    %526 = vector.extract_strided_slice %442 {offsets = [0, 35], sizes = [8, 64], strides = [1, 1]} : vector<8x114xf32> to vector<8x64xf32>
    %527 = vector.extract_strided_slice %442 {offsets = [0, 36], sizes = [8, 64], strides = [1, 1]} : vector<8x114xf32> to vector<8x64xf32>
    %528 = vector.extract_strided_slice %442 {offsets = [0, 37], sizes = [8, 64], strides = [1, 1]} : vector<8x114xf32> to vector<8x64xf32>
    %529 = vector.extract_strided_slice %442 {offsets = [0, 38], sizes = [8, 64], strides = [1, 1]} : vector<8x114xf32> to vector<8x64xf32>
    %530 = vector.extract_strided_slice %442 {offsets = [0, 39], sizes = [8, 64], strides = [1, 1]} : vector<8x114xf32> to vector<8x64xf32>
    %531 = vector.extract_strided_slice %442 {offsets = [0, 40], sizes = [8, 64], strides = [1, 1]} : vector<8x114xf32> to vector<8x64xf32>
    %532 = vector.extract_strided_slice %442 {offsets = [0, 41], sizes = [8, 64], strides = [1, 1]} : vector<8x114xf32> to vector<8x64xf32>
    %533 = vector.extract_strided_slice %442 {offsets = [0, 42], sizes = [8, 64], strides = [1, 1]} : vector<8x114xf32> to vector<8x64xf32>
    %534 = vector.extract_strided_slice %442 {offsets = [0, 43], sizes = [8, 64], strides = [1, 1]} : vector<8x114xf32> to vector<8x64xf32>
    %535 = vector.extract_strided_slice %442 {offsets = [0, 44], sizes = [8, 64], strides = [1, 1]} : vector<8x114xf32> to vector<8x64xf32>
    %536 = vector.extract_strided_slice %442 {offsets = [0, 45], sizes = [8, 64], strides = [1, 1]} : vector<8x114xf32> to vector<8x64xf32>
    %537 = vector.extract_strided_slice %442 {offsets = [0, 46], sizes = [8, 64], strides = [1, 1]} : vector<8x114xf32> to vector<8x64xf32>
    %538 = vector.extract_strided_slice %442 {offsets = [0, 47], sizes = [8, 64], strides = [1, 1]} : vector<8x114xf32> to vector<8x64xf32>
    %539 = tpu.concatenate %523, %524, %525, %526, %527, %528, %529, %530, %531, %532, %533, %534, %535, %536, %537, %538 in 0 : vector<8x64xf32>, vector<8x64xf32>, vector<8x64xf32>, vector<8x64xf32>, vector<8x64xf32>, vector<8x64xf32>, vector<8x64xf32>, vector<8x64xf32>, vector<8x64xf32>, vector<8x64xf32>, vector<8x64xf32>, vector<8x64xf32>, vector<8x64xf32>, vector<8x64xf32>, vector<8x64xf32>, vector<8x64xf32> -> vector<128x64xf32>
    %540 = vector.extract_strided_slice %445 {offsets = [0, 32], sizes = [8, 64], strides = [1, 1]} : vector<8x114xf32> to vector<8x64xf32>
    %541 = vector.extract_strided_slice %445 {offsets = [0, 33], sizes = [8, 64], strides = [1, 1]} : vector<8x114xf32> to vector<8x64xf32>
    %542 = vector.extract_strided_slice %445 {offsets = [0, 34], sizes = [8, 64], strides = [1, 1]} : vector<8x114xf32> to vector<8x64xf32>
    %543 = vector.extract_strided_slice %445 {offsets = [0, 35], sizes = [8, 64], strides = [1, 1]} : vector<8x114xf32> to vector<8x64xf32>
    %544 = vector.extract_strided_slice %445 {offsets = [0, 36], sizes = [8, 64], strides = [1, 1]} : vector<8x114xf32> to vector<8x64xf32>
    %545 = vector.extract_strided_slice %445 {offsets = [0, 37], sizes = [8, 64], strides = [1, 1]} : vector<8x114xf32> to vector<8x64xf32>
    %546 = vector.extract_strided_slice %445 {offsets = [0, 38], sizes = [8, 64], strides = [1, 1]} : vector<8x114xf32> to vector<8x64xf32>
    %547 = vector.extract_strided_slice %445 {offsets = [0, 39], sizes = [8, 64], strides = [1, 1]} : vector<8x114xf32> to vector<8x64xf32>
    %548 = vector.extract_strided_slice %445 {offsets = [0, 40], sizes = [8, 64], strides = [1, 1]} : vector<8x114xf32> to vector<8x64xf32>
    %549 = vector.extract_strided_slice %445 {offsets = [0, 41], sizes = [8, 64], strides = [1, 1]} : vector<8x114xf32> to vector<8x64xf32>
    %550 = vector.extract_strided_slice %445 {offsets = [0, 42], sizes = [8, 64], strides = [1, 1]} : vector<8x114xf32> to vector<8x64xf32>
    %551 = vector.extract_strided_slice %445 {offsets = [0, 43], sizes = [8, 64], strides = [1, 1]} : vector<8x114xf32> to vector<8x64xf32>
    %552 = vector.extract_strided_slice %445 {offsets = [0, 44], sizes = [8, 64], strides = [1, 1]} : vector<8x114xf32> to vector<8x64xf32>
    %553 = vector.extract_strided_slice %445 {offsets = [0, 45], sizes = [8, 64], strides = [1, 1]} : vector<8x114xf32> to vector<8x64xf32>
    %554 = vector.extract_strided_slice %445 {offsets = [0, 46], sizes = [8, 64], strides = [1, 1]} : vector<8x114xf32> to vector<8x64xf32>
    %555 = vector.extract_strided_slice %445 {offsets = [0, 47], sizes = [8, 64], strides = [1, 1]} : vector<8x114xf32> to vector<8x64xf32>
    %556 = tpu.concatenate %540, %541, %542, %543, %544, %545, %546, %547, %548, %549, %550, %551, %552, %553, %554, %555 in 0 : vector<8x64xf32>, vector<8x64xf32>, vector<8x64xf32>, vector<8x64xf32>, vector<8x64xf32>, vector<8x64xf32>, vector<8x64xf32>, vector<8x64xf32>, vector<8x64xf32>, vector<8x64xf32>, vector<8x64xf32>, vector<8x64xf32>, vector<8x64xf32>, vector<8x64xf32>, vector<8x64xf32>, vector<8x64xf32> -> vector<128x64xf32>
    %557 = tpu.concatenate %539, %556 in 1 : vector<128x64xf32>, vector<128x64xf32> -> vector<128x128xf32>
    %558 = vector.extract_strided_slice %437 {offsets = [0, 256], sizes = [8, 128], strides = [1, 1]} : vector<8x408xf32> to vector<8x128xf32>
    %cst_47 = arith.constant dense<0.000000e+00> : vector<8x128xf32>
    %559 = tpu.matmul %558, %557, %cst_47 {dimension_numbers = #tpu.dot_dimension_numbers<[1], [0], [0], [1], [0, 0, 1, 1], [], []>} : vector<8x128xf32>, vector<128x128xf32>, vector<8x128xf32> -> vector<8x128xf32>
    %560 = arith.addf %522, %559 : vector<8x128xf32>
    %561 = vector.extract_strided_slice %442 {offsets = [0, 48], sizes = [8, 64], strides = [1, 1]} : vector<8x114xf32> to vector<8x64xf32>
    %562 = vector.extract_strided_slice %442 {offsets = [0, 49], sizes = [8, 64], strides = [1, 1]} : vector<8x114xf32> to vector<8x64xf32>
    %563 = vector.extract_strided_slice %442 {offsets = [0, 50], sizes = [8, 64], strides = [1, 1]} : vector<8x114xf32> to vector<8x64xf32>
    %564 = tpu.concatenate %561, %562, %563 in 0 : vector<8x64xf32>, vector<8x64xf32>, vector<8x64xf32> -> vector<24x64xf32>
    %565 = vector.extract_strided_slice %445 {offsets = [0, 48], sizes = [8, 64], strides = [1, 1]} : vector<8x114xf32> to vector<8x64xf32>
    %566 = vector.extract_strided_slice %445 {offsets = [0, 49], sizes = [8, 64], strides = [1, 1]} : vector<8x114xf32> to vector<8x64xf32>
    %567 = vector.extract_strided_slice %445 {offsets = [0, 50], sizes = [8, 64], strides = [1, 1]} : vector<8x114xf32> to vector<8x64xf32>
    %568 = tpu.concatenate %565, %566, %567 in 0 : vector<8x64xf32>, vector<8x64xf32>, vector<8x64xf32> -> vector<24x64xf32>
    %569 = tpu.concatenate %564, %568 in 1 : vector<24x64xf32>, vector<24x64xf32> -> vector<24x128xf32>
    %570 = vector.extract_strided_slice %437 {offsets = [0, 384], sizes = [8, 24], strides = [1, 1]} : vector<8x408xf32> to vector<8x24xf32>
    %cst_48 = arith.constant dense<0.000000e+00> : vector<8x128xf32>
    %571 = tpu.matmul %570, %569, %cst_48 {dimension_numbers = #tpu.dot_dimension_numbers<[1], [0], [0], [1], [0, 0, 1, 1], [], []>} : vector<8x24xf32>, vector<24x128xf32>, vector<8x128xf32> -> vector<8x128xf32>
    %572 = arith.addf %560, %571 : vector<8x128xf32>
    %573 = vector.broadcast %439 : vector<8x1xf32> to vector<8x128xf32>
    %574 = arith.addf %572, %573 : vector<8x128xf32>
    %cst_49 = arith.constant 0.000000e+00 : f32
    %575 = vector.broadcast %cst_49 : f32 to vector<8x128xf32>
    %576 = arith.maximumf %574, %575 : vector<8x128xf32>
    %577 = vector.extract_strided_slice %576 {offsets = [0, 0], sizes = [8, 64], strides = [1, 1]} : vector<8x128xf32> to vector<8x64xf32>
    %578 = vector.extract_strided_slice %576 {offsets = [0, 64], sizes = [8, 64], strides = [1, 1]} : vector<8x128xf32> to vector<8x64xf32>
    %c4 = arith.constant 4 : index
    %c0_50 = arith.constant 0 : index
    %c0_51 = arith.constant 0 : index
    %579 = vector.load %arg2[%c4, %c0_50, %c0_51] : memref<6x8x408xf32, #tpu.memory_space<vmem>>, vector<1x8x408xf32>
    %580 = vector.shape_cast %579 : vector<1x8x408xf32> to vector<8x408xf32>
    %c4_52 = arith.constant 4 : index
    %c0_53 = arith.constant 0 : index
    %c0_54 = arith.constant 0 : index
    %581 = vector.load %arg3[%c4_52, %c0_53, %c0_54] : memref<6x8x1xf32, #tpu.memory_space<vmem>>, vector<1x8x1xf32>
    %582 = vector.shape_cast %581 : vector<1x8x1xf32> to vector<8x1xf32>
    %583 = vector.extract_strided_slice %577 {offsets = [0, 39], sizes = [8, 25], strides = [1, 1]} : vector<8x64xf32> to vector<8x25xf32>
    %584 = vector.extract_strided_slice %577 {offsets = [0, 0], sizes = [8, 25], strides = [1, 1]} : vector<8x64xf32> to vector<8x25xf32>
    %585 = tpu.concatenate %583, %577, %584 in 1 : vector<8x25xf32>, vector<8x64xf32>, vector<8x25xf32> -> vector<8x114xf32>
    %586 = vector.extract_strided_slice %578 {offsets = [0, 39], sizes = [8, 25], strides = [1, 1]} : vector<8x64xf32> to vector<8x25xf32>
    %587 = vector.extract_strided_slice %578 {offsets = [0, 0], sizes = [8, 25], strides = [1, 1]} : vector<8x64xf32> to vector<8x25xf32>
    %588 = tpu.concatenate %586, %578, %587 in 1 : vector<8x25xf32>, vector<8x64xf32>, vector<8x25xf32> -> vector<8x114xf32>
    %cst_55 = arith.constant 0.000000e+00 : f32
    %589 = vector.broadcast %cst_55 : f32 to vector<8x128xf32>
    %590 = vector.extract_strided_slice %585 {offsets = [0, 0], sizes = [8, 64], strides = [1, 1]} : vector<8x114xf32> to vector<8x64xf32>
    %591 = vector.extract_strided_slice %585 {offsets = [0, 1], sizes = [8, 64], strides = [1, 1]} : vector<8x114xf32> to vector<8x64xf32>
    %592 = vector.extract_strided_slice %585 {offsets = [0, 2], sizes = [8, 64], strides = [1, 1]} : vector<8x114xf32> to vector<8x64xf32>
    %593 = vector.extract_strided_slice %585 {offsets = [0, 3], sizes = [8, 64], strides = [1, 1]} : vector<8x114xf32> to vector<8x64xf32>
    %594 = vector.extract_strided_slice %585 {offsets = [0, 4], sizes = [8, 64], strides = [1, 1]} : vector<8x114xf32> to vector<8x64xf32>
    %595 = vector.extract_strided_slice %585 {offsets = [0, 5], sizes = [8, 64], strides = [1, 1]} : vector<8x114xf32> to vector<8x64xf32>
    %596 = vector.extract_strided_slice %585 {offsets = [0, 6], sizes = [8, 64], strides = [1, 1]} : vector<8x114xf32> to vector<8x64xf32>
    %597 = vector.extract_strided_slice %585 {offsets = [0, 7], sizes = [8, 64], strides = [1, 1]} : vector<8x114xf32> to vector<8x64xf32>
    %598 = vector.extract_strided_slice %585 {offsets = [0, 8], sizes = [8, 64], strides = [1, 1]} : vector<8x114xf32> to vector<8x64xf32>
    %599 = vector.extract_strided_slice %585 {offsets = [0, 9], sizes = [8, 64], strides = [1, 1]} : vector<8x114xf32> to vector<8x64xf32>
    %600 = vector.extract_strided_slice %585 {offsets = [0, 10], sizes = [8, 64], strides = [1, 1]} : vector<8x114xf32> to vector<8x64xf32>
    %601 = vector.extract_strided_slice %585 {offsets = [0, 11], sizes = [8, 64], strides = [1, 1]} : vector<8x114xf32> to vector<8x64xf32>
    %602 = vector.extract_strided_slice %585 {offsets = [0, 12], sizes = [8, 64], strides = [1, 1]} : vector<8x114xf32> to vector<8x64xf32>
    %603 = vector.extract_strided_slice %585 {offsets = [0, 13], sizes = [8, 64], strides = [1, 1]} : vector<8x114xf32> to vector<8x64xf32>
    %604 = vector.extract_strided_slice %585 {offsets = [0, 14], sizes = [8, 64], strides = [1, 1]} : vector<8x114xf32> to vector<8x64xf32>
    %605 = vector.extract_strided_slice %585 {offsets = [0, 15], sizes = [8, 64], strides = [1, 1]} : vector<8x114xf32> to vector<8x64xf32>
    %606 = tpu.concatenate %590, %591, %592, %593, %594, %595, %596, %597, %598, %599, %600, %601, %602, %603, %604, %605 in 0 : vector<8x64xf32>, vector<8x64xf32>, vector<8x64xf32>, vector<8x64xf32>, vector<8x64xf32>, vector<8x64xf32>, vector<8x64xf32>, vector<8x64xf32>, vector<8x64xf32>, vector<8x64xf32>, vector<8x64xf32>, vector<8x64xf32>, vector<8x64xf32>, vector<8x64xf32>, vector<8x64xf32>, vector<8x64xf32> -> vector<128x64xf32>
    %607 = vector.extract_strided_slice %588 {offsets = [0, 0], sizes = [8, 64], strides = [1, 1]} : vector<8x114xf32> to vector<8x64xf32>
    %608 = vector.extract_strided_slice %588 {offsets = [0, 1], sizes = [8, 64], strides = [1, 1]} : vector<8x114xf32> to vector<8x64xf32>
    %609 = vector.extract_strided_slice %588 {offsets = [0, 2], sizes = [8, 64], strides = [1, 1]} : vector<8x114xf32> to vector<8x64xf32>
    %610 = vector.extract_strided_slice %588 {offsets = [0, 3], sizes = [8, 64], strides = [1, 1]} : vector<8x114xf32> to vector<8x64xf32>
    %611 = vector.extract_strided_slice %588 {offsets = [0, 4], sizes = [8, 64], strides = [1, 1]} : vector<8x114xf32> to vector<8x64xf32>
    %612 = vector.extract_strided_slice %588 {offsets = [0, 5], sizes = [8, 64], strides = [1, 1]} : vector<8x114xf32> to vector<8x64xf32>
    %613 = vector.extract_strided_slice %588 {offsets = [0, 6], sizes = [8, 64], strides = [1, 1]} : vector<8x114xf32> to vector<8x64xf32>
    %614 = vector.extract_strided_slice %588 {offsets = [0, 7], sizes = [8, 64], strides = [1, 1]} : vector<8x114xf32> to vector<8x64xf32>
    %615 = vector.extract_strided_slice %588 {offsets = [0, 8], sizes = [8, 64], strides = [1, 1]} : vector<8x114xf32> to vector<8x64xf32>
    %616 = vector.extract_strided_slice %588 {offsets = [0, 9], sizes = [8, 64], strides = [1, 1]} : vector<8x114xf32> to vector<8x64xf32>
    %617 = vector.extract_strided_slice %588 {offsets = [0, 10], sizes = [8, 64], strides = [1, 1]} : vector<8x114xf32> to vector<8x64xf32>
    %618 = vector.extract_strided_slice %588 {offsets = [0, 11], sizes = [8, 64], strides = [1, 1]} : vector<8x114xf32> to vector<8x64xf32>
    %619 = vector.extract_strided_slice %588 {offsets = [0, 12], sizes = [8, 64], strides = [1, 1]} : vector<8x114xf32> to vector<8x64xf32>
    %620 = vector.extract_strided_slice %588 {offsets = [0, 13], sizes = [8, 64], strides = [1, 1]} : vector<8x114xf32> to vector<8x64xf32>
    %621 = vector.extract_strided_slice %588 {offsets = [0, 14], sizes = [8, 64], strides = [1, 1]} : vector<8x114xf32> to vector<8x64xf32>
    %622 = vector.extract_strided_slice %588 {offsets = [0, 15], sizes = [8, 64], strides = [1, 1]} : vector<8x114xf32> to vector<8x64xf32>
    %623 = tpu.concatenate %607, %608, %609, %610, %611, %612, %613, %614, %615, %616, %617, %618, %619, %620, %621, %622 in 0 : vector<8x64xf32>, vector<8x64xf32>, vector<8x64xf32>, vector<8x64xf32>, vector<8x64xf32>, vector<8x64xf32>, vector<8x64xf32>, vector<8x64xf32>, vector<8x64xf32>, vector<8x64xf32>, vector<8x64xf32>, vector<8x64xf32>, vector<8x64xf32>, vector<8x64xf32>, vector<8x64xf32>, vector<8x64xf32> -> vector<128x64xf32>
    %624 = tpu.concatenate %606, %623 in 1 : vector<128x64xf32>, vector<128x64xf32> -> vector<128x128xf32>
    %625 = vector.extract_strided_slice %580 {offsets = [0, 0], sizes = [8, 128], strides = [1, 1]} : vector<8x408xf32> to vector<8x128xf32>
    %cst_56 = arith.constant dense<0.000000e+00> : vector<8x128xf32>
    %626 = tpu.matmul %625, %624, %cst_56 {dimension_numbers = #tpu.dot_dimension_numbers<[1], [0], [0], [1], [0, 0, 1, 1], [], []>} : vector<8x128xf32>, vector<128x128xf32>, vector<8x128xf32> -> vector<8x128xf32>
    %627 = arith.addf %589, %626 : vector<8x128xf32>
    %628 = vector.extract_strided_slice %585 {offsets = [0, 16], sizes = [8, 64], strides = [1, 1]} : vector<8x114xf32> to vector<8x64xf32>
    %629 = vector.extract_strided_slice %585 {offsets = [0, 17], sizes = [8, 64], strides = [1, 1]} : vector<8x114xf32> to vector<8x64xf32>
    %630 = vector.extract_strided_slice %585 {offsets = [0, 18], sizes = [8, 64], strides = [1, 1]} : vector<8x114xf32> to vector<8x64xf32>
    %631 = vector.extract_strided_slice %585 {offsets = [0, 19], sizes = [8, 64], strides = [1, 1]} : vector<8x114xf32> to vector<8x64xf32>
    %632 = vector.extract_strided_slice %585 {offsets = [0, 20], sizes = [8, 64], strides = [1, 1]} : vector<8x114xf32> to vector<8x64xf32>
    %633 = vector.extract_strided_slice %585 {offsets = [0, 21], sizes = [8, 64], strides = [1, 1]} : vector<8x114xf32> to vector<8x64xf32>
    %634 = vector.extract_strided_slice %585 {offsets = [0, 22], sizes = [8, 64], strides = [1, 1]} : vector<8x114xf32> to vector<8x64xf32>
    %635 = vector.extract_strided_slice %585 {offsets = [0, 23], sizes = [8, 64], strides = [1, 1]} : vector<8x114xf32> to vector<8x64xf32>
    %636 = vector.extract_strided_slice %585 {offsets = [0, 24], sizes = [8, 64], strides = [1, 1]} : vector<8x114xf32> to vector<8x64xf32>
    %637 = vector.extract_strided_slice %585 {offsets = [0, 25], sizes = [8, 64], strides = [1, 1]} : vector<8x114xf32> to vector<8x64xf32>
    %638 = vector.extract_strided_slice %585 {offsets = [0, 26], sizes = [8, 64], strides = [1, 1]} : vector<8x114xf32> to vector<8x64xf32>
    %639 = vector.extract_strided_slice %585 {offsets = [0, 27], sizes = [8, 64], strides = [1, 1]} : vector<8x114xf32> to vector<8x64xf32>
    %640 = vector.extract_strided_slice %585 {offsets = [0, 28], sizes = [8, 64], strides = [1, 1]} : vector<8x114xf32> to vector<8x64xf32>
    %641 = vector.extract_strided_slice %585 {offsets = [0, 29], sizes = [8, 64], strides = [1, 1]} : vector<8x114xf32> to vector<8x64xf32>
    %642 = vector.extract_strided_slice %585 {offsets = [0, 30], sizes = [8, 64], strides = [1, 1]} : vector<8x114xf32> to vector<8x64xf32>
    %643 = vector.extract_strided_slice %585 {offsets = [0, 31], sizes = [8, 64], strides = [1, 1]} : vector<8x114xf32> to vector<8x64xf32>
    %644 = tpu.concatenate %628, %629, %630, %631, %632, %633, %634, %635, %636, %637, %638, %639, %640, %641, %642, %643 in 0 : vector<8x64xf32>, vector<8x64xf32>, vector<8x64xf32>, vector<8x64xf32>, vector<8x64xf32>, vector<8x64xf32>, vector<8x64xf32>, vector<8x64xf32>, vector<8x64xf32>, vector<8x64xf32>, vector<8x64xf32>, vector<8x64xf32>, vector<8x64xf32>, vector<8x64xf32>, vector<8x64xf32>, vector<8x64xf32> -> vector<128x64xf32>
    %645 = vector.extract_strided_slice %588 {offsets = [0, 16], sizes = [8, 64], strides = [1, 1]} : vector<8x114xf32> to vector<8x64xf32>
    %646 = vector.extract_strided_slice %588 {offsets = [0, 17], sizes = [8, 64], strides = [1, 1]} : vector<8x114xf32> to vector<8x64xf32>
    %647 = vector.extract_strided_slice %588 {offsets = [0, 18], sizes = [8, 64], strides = [1, 1]} : vector<8x114xf32> to vector<8x64xf32>
    %648 = vector.extract_strided_slice %588 {offsets = [0, 19], sizes = [8, 64], strides = [1, 1]} : vector<8x114xf32> to vector<8x64xf32>
    %649 = vector.extract_strided_slice %588 {offsets = [0, 20], sizes = [8, 64], strides = [1, 1]} : vector<8x114xf32> to vector<8x64xf32>
    %650 = vector.extract_strided_slice %588 {offsets = [0, 21], sizes = [8, 64], strides = [1, 1]} : vector<8x114xf32> to vector<8x64xf32>
    %651 = vector.extract_strided_slice %588 {offsets = [0, 22], sizes = [8, 64], strides = [1, 1]} : vector<8x114xf32> to vector<8x64xf32>
    %652 = vector.extract_strided_slice %588 {offsets = [0, 23], sizes = [8, 64], strides = [1, 1]} : vector<8x114xf32> to vector<8x64xf32>
    %653 = vector.extract_strided_slice %588 {offsets = [0, 24], sizes = [8, 64], strides = [1, 1]} : vector<8x114xf32> to vector<8x64xf32>
    %654 = vector.extract_strided_slice %588 {offsets = [0, 25], sizes = [8, 64], strides = [1, 1]} : vector<8x114xf32> to vector<8x64xf32>
    %655 = vector.extract_strided_slice %588 {offsets = [0, 26], sizes = [8, 64], strides = [1, 1]} : vector<8x114xf32> to vector<8x64xf32>
    %656 = vector.extract_strided_slice %588 {offsets = [0, 27], sizes = [8, 64], strides = [1, 1]} : vector<8x114xf32> to vector<8x64xf32>
    %657 = vector.extract_strided_slice %588 {offsets = [0, 28], sizes = [8, 64], strides = [1, 1]} : vector<8x114xf32> to vector<8x64xf32>
    %658 = vector.extract_strided_slice %588 {offsets = [0, 29], sizes = [8, 64], strides = [1, 1]} : vector<8x114xf32> to vector<8x64xf32>
    %659 = vector.extract_strided_slice %588 {offsets = [0, 30], sizes = [8, 64], strides = [1, 1]} : vector<8x114xf32> to vector<8x64xf32>
    %660 = vector.extract_strided_slice %588 {offsets = [0, 31], sizes = [8, 64], strides = [1, 1]} : vector<8x114xf32> to vector<8x64xf32>
    %661 = tpu.concatenate %645, %646, %647, %648, %649, %650, %651, %652, %653, %654, %655, %656, %657, %658, %659, %660 in 0 : vector<8x64xf32>, vector<8x64xf32>, vector<8x64xf32>, vector<8x64xf32>, vector<8x64xf32>, vector<8x64xf32>, vector<8x64xf32>, vector<8x64xf32>, vector<8x64xf32>, vector<8x64xf32>, vector<8x64xf32>, vector<8x64xf32>, vector<8x64xf32>, vector<8x64xf32>, vector<8x64xf32>, vector<8x64xf32> -> vector<128x64xf32>
    %662 = tpu.concatenate %644, %661 in 1 : vector<128x64xf32>, vector<128x64xf32> -> vector<128x128xf32>
    %663 = vector.extract_strided_slice %580 {offsets = [0, 128], sizes = [8, 128], strides = [1, 1]} : vector<8x408xf32> to vector<8x128xf32>
    %cst_57 = arith.constant dense<0.000000e+00> : vector<8x128xf32>
    %664 = tpu.matmul %663, %662, %cst_57 {dimension_numbers = #tpu.dot_dimension_numbers<[1], [0], [0], [1], [0, 0, 1, 1], [], []>} : vector<8x128xf32>, vector<128x128xf32>, vector<8x128xf32> -> vector<8x128xf32>
    %665 = arith.addf %627, %664 : vector<8x128xf32>
    %666 = vector.extract_strided_slice %585 {offsets = [0, 32], sizes = [8, 64], strides = [1, 1]} : vector<8x114xf32> to vector<8x64xf32>
    %667 = vector.extract_strided_slice %585 {offsets = [0, 33], sizes = [8, 64], strides = [1, 1]} : vector<8x114xf32> to vector<8x64xf32>
    %668 = vector.extract_strided_slice %585 {offsets = [0, 34], sizes = [8, 64], strides = [1, 1]} : vector<8x114xf32> to vector<8x64xf32>
    %669 = vector.extract_strided_slice %585 {offsets = [0, 35], sizes = [8, 64], strides = [1, 1]} : vector<8x114xf32> to vector<8x64xf32>
    %670 = vector.extract_strided_slice %585 {offsets = [0, 36], sizes = [8, 64], strides = [1, 1]} : vector<8x114xf32> to vector<8x64xf32>
    %671 = vector.extract_strided_slice %585 {offsets = [0, 37], sizes = [8, 64], strides = [1, 1]} : vector<8x114xf32> to vector<8x64xf32>
    %672 = vector.extract_strided_slice %585 {offsets = [0, 38], sizes = [8, 64], strides = [1, 1]} : vector<8x114xf32> to vector<8x64xf32>
    %673 = vector.extract_strided_slice %585 {offsets = [0, 39], sizes = [8, 64], strides = [1, 1]} : vector<8x114xf32> to vector<8x64xf32>
    %674 = vector.extract_strided_slice %585 {offsets = [0, 40], sizes = [8, 64], strides = [1, 1]} : vector<8x114xf32> to vector<8x64xf32>
    %675 = vector.extract_strided_slice %585 {offsets = [0, 41], sizes = [8, 64], strides = [1, 1]} : vector<8x114xf32> to vector<8x64xf32>
    %676 = vector.extract_strided_slice %585 {offsets = [0, 42], sizes = [8, 64], strides = [1, 1]} : vector<8x114xf32> to vector<8x64xf32>
    %677 = vector.extract_strided_slice %585 {offsets = [0, 43], sizes = [8, 64], strides = [1, 1]} : vector<8x114xf32> to vector<8x64xf32>
    %678 = vector.extract_strided_slice %585 {offsets = [0, 44], sizes = [8, 64], strides = [1, 1]} : vector<8x114xf32> to vector<8x64xf32>
    %679 = vector.extract_strided_slice %585 {offsets = [0, 45], sizes = [8, 64], strides = [1, 1]} : vector<8x114xf32> to vector<8x64xf32>
    %680 = vector.extract_strided_slice %585 {offsets = [0, 46], sizes = [8, 64], strides = [1, 1]} : vector<8x114xf32> to vector<8x64xf32>
    %681 = vector.extract_strided_slice %585 {offsets = [0, 47], sizes = [8, 64], strides = [1, 1]} : vector<8x114xf32> to vector<8x64xf32>
    %682 = tpu.concatenate %666, %667, %668, %669, %670, %671, %672, %673, %674, %675, %676, %677, %678, %679, %680, %681 in 0 : vector<8x64xf32>, vector<8x64xf32>, vector<8x64xf32>, vector<8x64xf32>, vector<8x64xf32>, vector<8x64xf32>, vector<8x64xf32>, vector<8x64xf32>, vector<8x64xf32>, vector<8x64xf32>, vector<8x64xf32>, vector<8x64xf32>, vector<8x64xf32>, vector<8x64xf32>, vector<8x64xf32>, vector<8x64xf32> -> vector<128x64xf32>
    %683 = vector.extract_strided_slice %588 {offsets = [0, 32], sizes = [8, 64], strides = [1, 1]} : vector<8x114xf32> to vector<8x64xf32>
    %684 = vector.extract_strided_slice %588 {offsets = [0, 33], sizes = [8, 64], strides = [1, 1]} : vector<8x114xf32> to vector<8x64xf32>
    %685 = vector.extract_strided_slice %588 {offsets = [0, 34], sizes = [8, 64], strides = [1, 1]} : vector<8x114xf32> to vector<8x64xf32>
    %686 = vector.extract_strided_slice %588 {offsets = [0, 35], sizes = [8, 64], strides = [1, 1]} : vector<8x114xf32> to vector<8x64xf32>
    %687 = vector.extract_strided_slice %588 {offsets = [0, 36], sizes = [8, 64], strides = [1, 1]} : vector<8x114xf32> to vector<8x64xf32>
    %688 = vector.extract_strided_slice %588 {offsets = [0, 37], sizes = [8, 64], strides = [1, 1]} : vector<8x114xf32> to vector<8x64xf32>
    %689 = vector.extract_strided_slice %588 {offsets = [0, 38], sizes = [8, 64], strides = [1, 1]} : vector<8x114xf32> to vector<8x64xf32>
    %690 = vector.extract_strided_slice %588 {offsets = [0, 39], sizes = [8, 64], strides = [1, 1]} : vector<8x114xf32> to vector<8x64xf32>
    %691 = vector.extract_strided_slice %588 {offsets = [0, 40], sizes = [8, 64], strides = [1, 1]} : vector<8x114xf32> to vector<8x64xf32>
    %692 = vector.extract_strided_slice %588 {offsets = [0, 41], sizes = [8, 64], strides = [1, 1]} : vector<8x114xf32> to vector<8x64xf32>
    %693 = vector.extract_strided_slice %588 {offsets = [0, 42], sizes = [8, 64], strides = [1, 1]} : vector<8x114xf32> to vector<8x64xf32>
    %694 = vector.extract_strided_slice %588 {offsets = [0, 43], sizes = [8, 64], strides = [1, 1]} : vector<8x114xf32> to vector<8x64xf32>
    %695 = vector.extract_strided_slice %588 {offsets = [0, 44], sizes = [8, 64], strides = [1, 1]} : vector<8x114xf32> to vector<8x64xf32>
    %696 = vector.extract_strided_slice %588 {offsets = [0, 45], sizes = [8, 64], strides = [1, 1]} : vector<8x114xf32> to vector<8x64xf32>
    %697 = vector.extract_strided_slice %588 {offsets = [0, 46], sizes = [8, 64], strides = [1, 1]} : vector<8x114xf32> to vector<8x64xf32>
    %698 = vector.extract_strided_slice %588 {offsets = [0, 47], sizes = [8, 64], strides = [1, 1]} : vector<8x114xf32> to vector<8x64xf32>
    %699 = tpu.concatenate %683, %684, %685, %686, %687, %688, %689, %690, %691, %692, %693, %694, %695, %696, %697, %698 in 0 : vector<8x64xf32>, vector<8x64xf32>, vector<8x64xf32>, vector<8x64xf32>, vector<8x64xf32>, vector<8x64xf32>, vector<8x64xf32>, vector<8x64xf32>, vector<8x64xf32>, vector<8x64xf32>, vector<8x64xf32>, vector<8x64xf32>, vector<8x64xf32>, vector<8x64xf32>, vector<8x64xf32>, vector<8x64xf32> -> vector<128x64xf32>
    %700 = tpu.concatenate %682, %699 in 1 : vector<128x64xf32>, vector<128x64xf32> -> vector<128x128xf32>
    %701 = vector.extract_strided_slice %580 {offsets = [0, 256], sizes = [8, 128], strides = [1, 1]} : vector<8x408xf32> to vector<8x128xf32>
    %cst_58 = arith.constant dense<0.000000e+00> : vector<8x128xf32>
    %702 = tpu.matmul %701, %700, %cst_58 {dimension_numbers = #tpu.dot_dimension_numbers<[1], [0], [0], [1], [0, 0, 1, 1], [], []>} : vector<8x128xf32>, vector<128x128xf32>, vector<8x128xf32> -> vector<8x128xf32>
    %703 = arith.addf %665, %702 : vector<8x128xf32>
    %704 = vector.extract_strided_slice %585 {offsets = [0, 48], sizes = [8, 64], strides = [1, 1]} : vector<8x114xf32> to vector<8x64xf32>
    %705 = vector.extract_strided_slice %585 {offsets = [0, 49], sizes = [8, 64], strides = [1, 1]} : vector<8x114xf32> to vector<8x64xf32>
    %706 = vector.extract_strided_slice %585 {offsets = [0, 50], sizes = [8, 64], strides = [1, 1]} : vector<8x114xf32> to vector<8x64xf32>
    %707 = tpu.concatenate %704, %705, %706 in 0 : vector<8x64xf32>, vector<8x64xf32>, vector<8x64xf32> -> vector<24x64xf32>
    %708 = vector.extract_strided_slice %588 {offsets = [0, 48], sizes = [8, 64], strides = [1, 1]} : vector<8x114xf32> to vector<8x64xf32>
    %709 = vector.extract_strided_slice %588 {offsets = [0, 49], sizes = [8, 64], strides = [1, 1]} : vector<8x114xf32> to vector<8x64xf32>
    %710 = vector.extract_strided_slice %588 {offsets = [0, 50], sizes = [8, 64], strides = [1, 1]} : vector<8x114xf32> to vector<8x64xf32>
    %711 = tpu.concatenate %708, %709, %710 in 0 : vector<8x64xf32>, vector<8x64xf32>, vector<8x64xf32> -> vector<24x64xf32>
    %712 = tpu.concatenate %707, %711 in 1 : vector<24x64xf32>, vector<24x64xf32> -> vector<24x128xf32>
    %713 = vector.extract_strided_slice %580 {offsets = [0, 384], sizes = [8, 24], strides = [1, 1]} : vector<8x408xf32> to vector<8x24xf32>
    %cst_59 = arith.constant dense<0.000000e+00> : vector<8x128xf32>
    %714 = tpu.matmul %713, %712, %cst_59 {dimension_numbers = #tpu.dot_dimension_numbers<[1], [0], [0], [1], [0, 0, 1, 1], [], []>} : vector<8x24xf32>, vector<24x128xf32>, vector<8x128xf32> -> vector<8x128xf32>
    %715 = arith.addf %703, %714 : vector<8x128xf32>
    %716 = vector.broadcast %582 : vector<8x1xf32> to vector<8x128xf32>
    %717 = arith.addf %715, %716 : vector<8x128xf32>
    %cst_60 = arith.constant 0.000000e+00 : f32
    %718 = vector.broadcast %cst_60 : f32 to vector<8x128xf32>
    %719 = arith.maximumf %717, %718 : vector<8x128xf32>
    %720 = vector.extract_strided_slice %719 {offsets = [0, 0], sizes = [8, 64], strides = [1, 1]} : vector<8x128xf32> to vector<8x64xf32>
    %721 = vector.extract_strided_slice %719 {offsets = [0, 64], sizes = [8, 64], strides = [1, 1]} : vector<8x128xf32> to vector<8x64xf32>
    %c5 = arith.constant 5 : index
    %c0_61 = arith.constant 0 : index
    %c0_62 = arith.constant 0 : index
    %722 = vector.load %arg2[%c5, %c0_61, %c0_62] : memref<6x8x408xf32, #tpu.memory_space<vmem>>, vector<1x8x408xf32>
    %723 = vector.shape_cast %722 : vector<1x8x408xf32> to vector<8x408xf32>
    %c5_63 = arith.constant 5 : index
    %c0_64 = arith.constant 0 : index
    %c0_65 = arith.constant 0 : index
    %724 = vector.load %arg3[%c5_63, %c0_64, %c0_65] : memref<6x8x1xf32, #tpu.memory_space<vmem>>, vector<1x8x1xf32>
    %725 = vector.shape_cast %724 : vector<1x8x1xf32> to vector<8x1xf32>
    %726 = vector.extract_strided_slice %720 {offsets = [0, 39], sizes = [8, 25], strides = [1, 1]} : vector<8x64xf32> to vector<8x25xf32>
    %727 = vector.extract_strided_slice %720 {offsets = [0, 0], sizes = [8, 25], strides = [1, 1]} : vector<8x64xf32> to vector<8x25xf32>
    %728 = tpu.concatenate %726, %720, %727 in 1 : vector<8x25xf32>, vector<8x64xf32>, vector<8x25xf32> -> vector<8x114xf32>
    %729 = vector.extract_strided_slice %721 {offsets = [0, 39], sizes = [8, 25], strides = [1, 1]} : vector<8x64xf32> to vector<8x25xf32>
    %730 = vector.extract_strided_slice %721 {offsets = [0, 0], sizes = [8, 25], strides = [1, 1]} : vector<8x64xf32> to vector<8x25xf32>
    %731 = tpu.concatenate %729, %721, %730 in 1 : vector<8x25xf32>, vector<8x64xf32>, vector<8x25xf32> -> vector<8x114xf32>
    %cst_66 = arith.constant 0.000000e+00 : f32
    %732 = vector.broadcast %cst_66 : f32 to vector<8x128xf32>
    %733 = vector.extract_strided_slice %728 {offsets = [0, 0], sizes = [8, 64], strides = [1, 1]} : vector<8x114xf32> to vector<8x64xf32>
    %734 = vector.extract_strided_slice %728 {offsets = [0, 1], sizes = [8, 64], strides = [1, 1]} : vector<8x114xf32> to vector<8x64xf32>
    %735 = vector.extract_strided_slice %728 {offsets = [0, 2], sizes = [8, 64], strides = [1, 1]} : vector<8x114xf32> to vector<8x64xf32>
    %736 = vector.extract_strided_slice %728 {offsets = [0, 3], sizes = [8, 64], strides = [1, 1]} : vector<8x114xf32> to vector<8x64xf32>
    %737 = vector.extract_strided_slice %728 {offsets = [0, 4], sizes = [8, 64], strides = [1, 1]} : vector<8x114xf32> to vector<8x64xf32>
    %738 = vector.extract_strided_slice %728 {offsets = [0, 5], sizes = [8, 64], strides = [1, 1]} : vector<8x114xf32> to vector<8x64xf32>
    %739 = vector.extract_strided_slice %728 {offsets = [0, 6], sizes = [8, 64], strides = [1, 1]} : vector<8x114xf32> to vector<8x64xf32>
    %740 = vector.extract_strided_slice %728 {offsets = [0, 7], sizes = [8, 64], strides = [1, 1]} : vector<8x114xf32> to vector<8x64xf32>
    %741 = vector.extract_strided_slice %728 {offsets = [0, 8], sizes = [8, 64], strides = [1, 1]} : vector<8x114xf32> to vector<8x64xf32>
    %742 = vector.extract_strided_slice %728 {offsets = [0, 9], sizes = [8, 64], strides = [1, 1]} : vector<8x114xf32> to vector<8x64xf32>
    %743 = vector.extract_strided_slice %728 {offsets = [0, 10], sizes = [8, 64], strides = [1, 1]} : vector<8x114xf32> to vector<8x64xf32>
    %744 = vector.extract_strided_slice %728 {offsets = [0, 11], sizes = [8, 64], strides = [1, 1]} : vector<8x114xf32> to vector<8x64xf32>
    %745 = vector.extract_strided_slice %728 {offsets = [0, 12], sizes = [8, 64], strides = [1, 1]} : vector<8x114xf32> to vector<8x64xf32>
    %746 = vector.extract_strided_slice %728 {offsets = [0, 13], sizes = [8, 64], strides = [1, 1]} : vector<8x114xf32> to vector<8x64xf32>
    %747 = vector.extract_strided_slice %728 {offsets = [0, 14], sizes = [8, 64], strides = [1, 1]} : vector<8x114xf32> to vector<8x64xf32>
    %748 = vector.extract_strided_slice %728 {offsets = [0, 15], sizes = [8, 64], strides = [1, 1]} : vector<8x114xf32> to vector<8x64xf32>
    %749 = tpu.concatenate %733, %734, %735, %736, %737, %738, %739, %740, %741, %742, %743, %744, %745, %746, %747, %748 in 0 : vector<8x64xf32>, vector<8x64xf32>, vector<8x64xf32>, vector<8x64xf32>, vector<8x64xf32>, vector<8x64xf32>, vector<8x64xf32>, vector<8x64xf32>, vector<8x64xf32>, vector<8x64xf32>, vector<8x64xf32>, vector<8x64xf32>, vector<8x64xf32>, vector<8x64xf32>, vector<8x64xf32>, vector<8x64xf32> -> vector<128x64xf32>
    %750 = vector.extract_strided_slice %731 {offsets = [0, 0], sizes = [8, 64], strides = [1, 1]} : vector<8x114xf32> to vector<8x64xf32>
    %751 = vector.extract_strided_slice %731 {offsets = [0, 1], sizes = [8, 64], strides = [1, 1]} : vector<8x114xf32> to vector<8x64xf32>
    %752 = vector.extract_strided_slice %731 {offsets = [0, 2], sizes = [8, 64], strides = [1, 1]} : vector<8x114xf32> to vector<8x64xf32>
    %753 = vector.extract_strided_slice %731 {offsets = [0, 3], sizes = [8, 64], strides = [1, 1]} : vector<8x114xf32> to vector<8x64xf32>
    %754 = vector.extract_strided_slice %731 {offsets = [0, 4], sizes = [8, 64], strides = [1, 1]} : vector<8x114xf32> to vector<8x64xf32>
    %755 = vector.extract_strided_slice %731 {offsets = [0, 5], sizes = [8, 64], strides = [1, 1]} : vector<8x114xf32> to vector<8x64xf32>
    %756 = vector.extract_strided_slice %731 {offsets = [0, 6], sizes = [8, 64], strides = [1, 1]} : vector<8x114xf32> to vector<8x64xf32>
    %757 = vector.extract_strided_slice %731 {offsets = [0, 7], sizes = [8, 64], strides = [1, 1]} : vector<8x114xf32> to vector<8x64xf32>
    %758 = vector.extract_strided_slice %731 {offsets = [0, 8], sizes = [8, 64], strides = [1, 1]} : vector<8x114xf32> to vector<8x64xf32>
    %759 = vector.extract_strided_slice %731 {offsets = [0, 9], sizes = [8, 64], strides = [1, 1]} : vector<8x114xf32> to vector<8x64xf32>
    %760 = vector.extract_strided_slice %731 {offsets = [0, 10], sizes = [8, 64], strides = [1, 1]} : vector<8x114xf32> to vector<8x64xf32>
    %761 = vector.extract_strided_slice %731 {offsets = [0, 11], sizes = [8, 64], strides = [1, 1]} : vector<8x114xf32> to vector<8x64xf32>
    %762 = vector.extract_strided_slice %731 {offsets = [0, 12], sizes = [8, 64], strides = [1, 1]} : vector<8x114xf32> to vector<8x64xf32>
    %763 = vector.extract_strided_slice %731 {offsets = [0, 13], sizes = [8, 64], strides = [1, 1]} : vector<8x114xf32> to vector<8x64xf32>
    %764 = vector.extract_strided_slice %731 {offsets = [0, 14], sizes = [8, 64], strides = [1, 1]} : vector<8x114xf32> to vector<8x64xf32>
    %765 = vector.extract_strided_slice %731 {offsets = [0, 15], sizes = [8, 64], strides = [1, 1]} : vector<8x114xf32> to vector<8x64xf32>
    %766 = tpu.concatenate %750, %751, %752, %753, %754, %755, %756, %757, %758, %759, %760, %761, %762, %763, %764, %765 in 0 : vector<8x64xf32>, vector<8x64xf32>, vector<8x64xf32>, vector<8x64xf32>, vector<8x64xf32>, vector<8x64xf32>, vector<8x64xf32>, vector<8x64xf32>, vector<8x64xf32>, vector<8x64xf32>, vector<8x64xf32>, vector<8x64xf32>, vector<8x64xf32>, vector<8x64xf32>, vector<8x64xf32>, vector<8x64xf32> -> vector<128x64xf32>
    %767 = tpu.concatenate %749, %766 in 1 : vector<128x64xf32>, vector<128x64xf32> -> vector<128x128xf32>
    %768 = vector.extract_strided_slice %723 {offsets = [0, 0], sizes = [8, 128], strides = [1, 1]} : vector<8x408xf32> to vector<8x128xf32>
    %cst_67 = arith.constant dense<0.000000e+00> : vector<8x128xf32>
    %769 = tpu.matmul %768, %767, %cst_67 {dimension_numbers = #tpu.dot_dimension_numbers<[1], [0], [0], [1], [0, 0, 1, 1], [], []>} : vector<8x128xf32>, vector<128x128xf32>, vector<8x128xf32> -> vector<8x128xf32>
    %770 = arith.addf %732, %769 : vector<8x128xf32>
    %771 = vector.extract_strided_slice %728 {offsets = [0, 16], sizes = [8, 64], strides = [1, 1]} : vector<8x114xf32> to vector<8x64xf32>
    %772 = vector.extract_strided_slice %728 {offsets = [0, 17], sizes = [8, 64], strides = [1, 1]} : vector<8x114xf32> to vector<8x64xf32>
    %773 = vector.extract_strided_slice %728 {offsets = [0, 18], sizes = [8, 64], strides = [1, 1]} : vector<8x114xf32> to vector<8x64xf32>
    %774 = vector.extract_strided_slice %728 {offsets = [0, 19], sizes = [8, 64], strides = [1, 1]} : vector<8x114xf32> to vector<8x64xf32>
    %775 = vector.extract_strided_slice %728 {offsets = [0, 20], sizes = [8, 64], strides = [1, 1]} : vector<8x114xf32> to vector<8x64xf32>
    %776 = vector.extract_strided_slice %728 {offsets = [0, 21], sizes = [8, 64], strides = [1, 1]} : vector<8x114xf32> to vector<8x64xf32>
    %777 = vector.extract_strided_slice %728 {offsets = [0, 22], sizes = [8, 64], strides = [1, 1]} : vector<8x114xf32> to vector<8x64xf32>
    %778 = vector.extract_strided_slice %728 {offsets = [0, 23], sizes = [8, 64], strides = [1, 1]} : vector<8x114xf32> to vector<8x64xf32>
    %779 = vector.extract_strided_slice %728 {offsets = [0, 24], sizes = [8, 64], strides = [1, 1]} : vector<8x114xf32> to vector<8x64xf32>
    %780 = vector.extract_strided_slice %728 {offsets = [0, 25], sizes = [8, 64], strides = [1, 1]} : vector<8x114xf32> to vector<8x64xf32>
    %781 = vector.extract_strided_slice %728 {offsets = [0, 26], sizes = [8, 64], strides = [1, 1]} : vector<8x114xf32> to vector<8x64xf32>
    %782 = vector.extract_strided_slice %728 {offsets = [0, 27], sizes = [8, 64], strides = [1, 1]} : vector<8x114xf32> to vector<8x64xf32>
    %783 = vector.extract_strided_slice %728 {offsets = [0, 28], sizes = [8, 64], strides = [1, 1]} : vector<8x114xf32> to vector<8x64xf32>
    %784 = vector.extract_strided_slice %728 {offsets = [0, 29], sizes = [8, 64], strides = [1, 1]} : vector<8x114xf32> to vector<8x64xf32>
    %785 = vector.extract_strided_slice %728 {offsets = [0, 30], sizes = [8, 64], strides = [1, 1]} : vector<8x114xf32> to vector<8x64xf32>
    %786 = vector.extract_strided_slice %728 {offsets = [0, 31], sizes = [8, 64], strides = [1, 1]} : vector<8x114xf32> to vector<8x64xf32>
    %787 = tpu.concatenate %771, %772, %773, %774, %775, %776, %777, %778, %779, %780, %781, %782, %783, %784, %785, %786 in 0 : vector<8x64xf32>, vector<8x64xf32>, vector<8x64xf32>, vector<8x64xf32>, vector<8x64xf32>, vector<8x64xf32>, vector<8x64xf32>, vector<8x64xf32>, vector<8x64xf32>, vector<8x64xf32>, vector<8x64xf32>, vector<8x64xf32>, vector<8x64xf32>, vector<8x64xf32>, vector<8x64xf32>, vector<8x64xf32> -> vector<128x64xf32>
    %788 = vector.extract_strided_slice %731 {offsets = [0, 16], sizes = [8, 64], strides = [1, 1]} : vector<8x114xf32> to vector<8x64xf32>
    %789 = vector.extract_strided_slice %731 {offsets = [0, 17], sizes = [8, 64], strides = [1, 1]} : vector<8x114xf32> to vector<8x64xf32>
    %790 = vector.extract_strided_slice %731 {offsets = [0, 18], sizes = [8, 64], strides = [1, 1]} : vector<8x114xf32> to vector<8x64xf32>
    %791 = vector.extract_strided_slice %731 {offsets = [0, 19], sizes = [8, 64], strides = [1, 1]} : vector<8x114xf32> to vector<8x64xf32>
    %792 = vector.extract_strided_slice %731 {offsets = [0, 20], sizes = [8, 64], strides = [1, 1]} : vector<8x114xf32> to vector<8x64xf32>
    %793 = vector.extract_strided_slice %731 {offsets = [0, 21], sizes = [8, 64], strides = [1, 1]} : vector<8x114xf32> to vector<8x64xf32>
    %794 = vector.extract_strided_slice %731 {offsets = [0, 22], sizes = [8, 64], strides = [1, 1]} : vector<8x114xf32> to vector<8x64xf32>
    %795 = vector.extract_strided_slice %731 {offsets = [0, 23], sizes = [8, 64], strides = [1, 1]} : vector<8x114xf32> to vector<8x64xf32>
    %796 = vector.extract_strided_slice %731 {offsets = [0, 24], sizes = [8, 64], strides = [1, 1]} : vector<8x114xf32> to vector<8x64xf32>
    %797 = vector.extract_strided_slice %731 {offsets = [0, 25], sizes = [8, 64], strides = [1, 1]} : vector<8x114xf32> to vector<8x64xf32>
    %798 = vector.extract_strided_slice %731 {offsets = [0, 26], sizes = [8, 64], strides = [1, 1]} : vector<8x114xf32> to vector<8x64xf32>
    %799 = vector.extract_strided_slice %731 {offsets = [0, 27], sizes = [8, 64], strides = [1, 1]} : vector<8x114xf32> to vector<8x64xf32>
    %800 = vector.extract_strided_slice %731 {offsets = [0, 28], sizes = [8, 64], strides = [1, 1]} : vector<8x114xf32> to vector<8x64xf32>
    %801 = vector.extract_strided_slice %731 {offsets = [0, 29], sizes = [8, 64], strides = [1, 1]} : vector<8x114xf32> to vector<8x64xf32>
    %802 = vector.extract_strided_slice %731 {offsets = [0, 30], sizes = [8, 64], strides = [1, 1]} : vector<8x114xf32> to vector<8x64xf32>
    %803 = vector.extract_strided_slice %731 {offsets = [0, 31], sizes = [8, 64], strides = [1, 1]} : vector<8x114xf32> to vector<8x64xf32>
    %804 = tpu.concatenate %788, %789, %790, %791, %792, %793, %794, %795, %796, %797, %798, %799, %800, %801, %802, %803 in 0 : vector<8x64xf32>, vector<8x64xf32>, vector<8x64xf32>, vector<8x64xf32>, vector<8x64xf32>, vector<8x64xf32>, vector<8x64xf32>, vector<8x64xf32>, vector<8x64xf32>, vector<8x64xf32>, vector<8x64xf32>, vector<8x64xf32>, vector<8x64xf32>, vector<8x64xf32>, vector<8x64xf32>, vector<8x64xf32> -> vector<128x64xf32>
    %805 = tpu.concatenate %787, %804 in 1 : vector<128x64xf32>, vector<128x64xf32> -> vector<128x128xf32>
    %806 = vector.extract_strided_slice %723 {offsets = [0, 128], sizes = [8, 128], strides = [1, 1]} : vector<8x408xf32> to vector<8x128xf32>
    %cst_68 = arith.constant dense<0.000000e+00> : vector<8x128xf32>
    %807 = tpu.matmul %806, %805, %cst_68 {dimension_numbers = #tpu.dot_dimension_numbers<[1], [0], [0], [1], [0, 0, 1, 1], [], []>} : vector<8x128xf32>, vector<128x128xf32>, vector<8x128xf32> -> vector<8x128xf32>
    %808 = arith.addf %770, %807 : vector<8x128xf32>
    %809 = vector.extract_strided_slice %728 {offsets = [0, 32], sizes = [8, 64], strides = [1, 1]} : vector<8x114xf32> to vector<8x64xf32>
    %810 = vector.extract_strided_slice %728 {offsets = [0, 33], sizes = [8, 64], strides = [1, 1]} : vector<8x114xf32> to vector<8x64xf32>
    %811 = vector.extract_strided_slice %728 {offsets = [0, 34], sizes = [8, 64], strides = [1, 1]} : vector<8x114xf32> to vector<8x64xf32>
    %812 = vector.extract_strided_slice %728 {offsets = [0, 35], sizes = [8, 64], strides = [1, 1]} : vector<8x114xf32> to vector<8x64xf32>
    %813 = vector.extract_strided_slice %728 {offsets = [0, 36], sizes = [8, 64], strides = [1, 1]} : vector<8x114xf32> to vector<8x64xf32>
    %814 = vector.extract_strided_slice %728 {offsets = [0, 37], sizes = [8, 64], strides = [1, 1]} : vector<8x114xf32> to vector<8x64xf32>
    %815 = vector.extract_strided_slice %728 {offsets = [0, 38], sizes = [8, 64], strides = [1, 1]} : vector<8x114xf32> to vector<8x64xf32>
    %816 = vector.extract_strided_slice %728 {offsets = [0, 39], sizes = [8, 64], strides = [1, 1]} : vector<8x114xf32> to vector<8x64xf32>
    %817 = vector.extract_strided_slice %728 {offsets = [0, 40], sizes = [8, 64], strides = [1, 1]} : vector<8x114xf32> to vector<8x64xf32>
    %818 = vector.extract_strided_slice %728 {offsets = [0, 41], sizes = [8, 64], strides = [1, 1]} : vector<8x114xf32> to vector<8x64xf32>
    %819 = vector.extract_strided_slice %728 {offsets = [0, 42], sizes = [8, 64], strides = [1, 1]} : vector<8x114xf32> to vector<8x64xf32>
    %820 = vector.extract_strided_slice %728 {offsets = [0, 43], sizes = [8, 64], strides = [1, 1]} : vector<8x114xf32> to vector<8x64xf32>
    %821 = vector.extract_strided_slice %728 {offsets = [0, 44], sizes = [8, 64], strides = [1, 1]} : vector<8x114xf32> to vector<8x64xf32>
    %822 = vector.extract_strided_slice %728 {offsets = [0, 45], sizes = [8, 64], strides = [1, 1]} : vector<8x114xf32> to vector<8x64xf32>
    %823 = vector.extract_strided_slice %728 {offsets = [0, 46], sizes = [8, 64], strides = [1, 1]} : vector<8x114xf32> to vector<8x64xf32>
    %824 = vector.extract_strided_slice %728 {offsets = [0, 47], sizes = [8, 64], strides = [1, 1]} : vector<8x114xf32> to vector<8x64xf32>
    %825 = tpu.concatenate %809, %810, %811, %812, %813, %814, %815, %816, %817, %818, %819, %820, %821, %822, %823, %824 in 0 : vector<8x64xf32>, vector<8x64xf32>, vector<8x64xf32>, vector<8x64xf32>, vector<8x64xf32>, vector<8x64xf32>, vector<8x64xf32>, vector<8x64xf32>, vector<8x64xf32>, vector<8x64xf32>, vector<8x64xf32>, vector<8x64xf32>, vector<8x64xf32>, vector<8x64xf32>, vector<8x64xf32>, vector<8x64xf32> -> vector<128x64xf32>
    %826 = vector.extract_strided_slice %731 {offsets = [0, 32], sizes = [8, 64], strides = [1, 1]} : vector<8x114xf32> to vector<8x64xf32>
    %827 = vector.extract_strided_slice %731 {offsets = [0, 33], sizes = [8, 64], strides = [1, 1]} : vector<8x114xf32> to vector<8x64xf32>
    %828 = vector.extract_strided_slice %731 {offsets = [0, 34], sizes = [8, 64], strides = [1, 1]} : vector<8x114xf32> to vector<8x64xf32>
    %829 = vector.extract_strided_slice %731 {offsets = [0, 35], sizes = [8, 64], strides = [1, 1]} : vector<8x114xf32> to vector<8x64xf32>
    %830 = vector.extract_strided_slice %731 {offsets = [0, 36], sizes = [8, 64], strides = [1, 1]} : vector<8x114xf32> to vector<8x64xf32>
    %831 = vector.extract_strided_slice %731 {offsets = [0, 37], sizes = [8, 64], strides = [1, 1]} : vector<8x114xf32> to vector<8x64xf32>
    %832 = vector.extract_strided_slice %731 {offsets = [0, 38], sizes = [8, 64], strides = [1, 1]} : vector<8x114xf32> to vector<8x64xf32>
    %833 = vector.extract_strided_slice %731 {offsets = [0, 39], sizes = [8, 64], strides = [1, 1]} : vector<8x114xf32> to vector<8x64xf32>
    %834 = vector.extract_strided_slice %731 {offsets = [0, 40], sizes = [8, 64], strides = [1, 1]} : vector<8x114xf32> to vector<8x64xf32>
    %835 = vector.extract_strided_slice %731 {offsets = [0, 41], sizes = [8, 64], strides = [1, 1]} : vector<8x114xf32> to vector<8x64xf32>
    %836 = vector.extract_strided_slice %731 {offsets = [0, 42], sizes = [8, 64], strides = [1, 1]} : vector<8x114xf32> to vector<8x64xf32>
    %837 = vector.extract_strided_slice %731 {offsets = [0, 43], sizes = [8, 64], strides = [1, 1]} : vector<8x114xf32> to vector<8x64xf32>
    %838 = vector.extract_strided_slice %731 {offsets = [0, 44], sizes = [8, 64], strides = [1, 1]} : vector<8x114xf32> to vector<8x64xf32>
    %839 = vector.extract_strided_slice %731 {offsets = [0, 45], sizes = [8, 64], strides = [1, 1]} : vector<8x114xf32> to vector<8x64xf32>
    %840 = vector.extract_strided_slice %731 {offsets = [0, 46], sizes = [8, 64], strides = [1, 1]} : vector<8x114xf32> to vector<8x64xf32>
    %841 = vector.extract_strided_slice %731 {offsets = [0, 47], sizes = [8, 64], strides = [1, 1]} : vector<8x114xf32> to vector<8x64xf32>
    %842 = tpu.concatenate %826, %827, %828, %829, %830, %831, %832, %833, %834, %835, %836, %837, %838, %839, %840, %841 in 0 : vector<8x64xf32>, vector<8x64xf32>, vector<8x64xf32>, vector<8x64xf32>, vector<8x64xf32>, vector<8x64xf32>, vector<8x64xf32>, vector<8x64xf32>, vector<8x64xf32>, vector<8x64xf32>, vector<8x64xf32>, vector<8x64xf32>, vector<8x64xf32>, vector<8x64xf32>, vector<8x64xf32>, vector<8x64xf32> -> vector<128x64xf32>
    %843 = tpu.concatenate %825, %842 in 1 : vector<128x64xf32>, vector<128x64xf32> -> vector<128x128xf32>
    %844 = vector.extract_strided_slice %723 {offsets = [0, 256], sizes = [8, 128], strides = [1, 1]} : vector<8x408xf32> to vector<8x128xf32>
    %cst_69 = arith.constant dense<0.000000e+00> : vector<8x128xf32>
    %845 = tpu.matmul %844, %843, %cst_69 {dimension_numbers = #tpu.dot_dimension_numbers<[1], [0], [0], [1], [0, 0, 1, 1], [], []>} : vector<8x128xf32>, vector<128x128xf32>, vector<8x128xf32> -> vector<8x128xf32>
    %846 = arith.addf %808, %845 : vector<8x128xf32>
    %847 = vector.extract_strided_slice %728 {offsets = [0, 48], sizes = [8, 64], strides = [1, 1]} : vector<8x114xf32> to vector<8x64xf32>
    %848 = vector.extract_strided_slice %728 {offsets = [0, 49], sizes = [8, 64], strides = [1, 1]} : vector<8x114xf32> to vector<8x64xf32>
    %849 = vector.extract_strided_slice %728 {offsets = [0, 50], sizes = [8, 64], strides = [1, 1]} : vector<8x114xf32> to vector<8x64xf32>
    %850 = tpu.concatenate %847, %848, %849 in 0 : vector<8x64xf32>, vector<8x64xf32>, vector<8x64xf32> -> vector<24x64xf32>
    %851 = vector.extract_strided_slice %731 {offsets = [0, 48], sizes = [8, 64], strides = [1, 1]} : vector<8x114xf32> to vector<8x64xf32>
    %852 = vector.extract_strided_slice %731 {offsets = [0, 49], sizes = [8, 64], strides = [1, 1]} : vector<8x114xf32> to vector<8x64xf32>
    %853 = vector.extract_strided_slice %731 {offsets = [0, 50], sizes = [8, 64], strides = [1, 1]} : vector<8x114xf32> to vector<8x64xf32>
    %854 = tpu.concatenate %851, %852, %853 in 0 : vector<8x64xf32>, vector<8x64xf32>, vector<8x64xf32> -> vector<24x64xf32>
    %855 = tpu.concatenate %850, %854 in 1 : vector<24x64xf32>, vector<24x64xf32> -> vector<24x128xf32>
    %856 = vector.extract_strided_slice %723 {offsets = [0, 384], sizes = [8, 24], strides = [1, 1]} : vector<8x408xf32> to vector<8x24xf32>
    %cst_70 = arith.constant dense<0.000000e+00> : vector<8x128xf32>
    %857 = tpu.matmul %856, %855, %cst_70 {dimension_numbers = #tpu.dot_dimension_numbers<[1], [0], [0], [1], [0, 0, 1, 1], [], []>} : vector<8x24xf32>, vector<24x128xf32>, vector<8x128xf32> -> vector<8x128xf32>
    %858 = arith.addf %846, %857 : vector<8x128xf32>
    %859 = vector.broadcast %725 : vector<8x1xf32> to vector<8x128xf32>
    %860 = arith.addf %858, %859 : vector<8x128xf32>
    %861 = vector.extract_strided_slice %860 {offsets = [0, 0], sizes = [8, 64], strides = [1, 1]} : vector<8x128xf32> to vector<8x64xf32>
    %862 = vector.extract_strided_slice %860 {offsets = [0, 64], sizes = [8, 64], strides = [1, 1]} : vector<8x128xf32> to vector<8x64xf32>
    %863 = vector.extract_strided_slice %861 {offsets = [0, 0], sizes = [1, 64], strides = [1, 1]} : vector<8x64xf32> to vector<1x64xf32>
    %c0_71 = arith.constant 0 : index
    %c0_72 = arith.constant 0 : index
    %c0_73 = arith.constant 0 : index
    %864 = vector.load %arg4[%c0_71, %c0_72, %c0_73] : memref<2x1x64xf32, #tpu.memory_space<vmem>>, vector<1x1x64xf32>
    %865 = vector.shape_cast %864 : vector<1x1x64xf32> to vector<1x64xf32>
    %866 = vector.shape_cast %863 : vector<1x64xf32> to vector<1x1x64xf32>
    tpu.vector_store %arg4[%c0_71, %c0_72, %c0_73], %866 {strides = array<i32>} : memref<2x1x64xf32, #tpu.memory_space<vmem>>, vector<1x1x64xf32>,
    %867 = vector.extract_strided_slice %862 {offsets = [0, 0], sizes = [1, 64], strides = [1, 1]} : vector<8x64xf32> to vector<1x64xf32>
    %c1_74 = arith.constant 1 : index
    %c0_75 = arith.constant 0 : index
    %c0_76 = arith.constant 0 : index
    %868 = vector.load %arg4[%c1_74, %c0_75, %c0_76] : memref<2x1x64xf32, #tpu.memory_space<vmem>>, vector<1x1x64xf32>
    %869 = vector.shape_cast %868 : vector<1x1x64xf32> to vector<1x64xf32>
    %870 = vector.shape_cast %867 : vector<1x64xf32> to vector<1x1x64xf32>
    tpu.vector_store %arg4[%c1_74, %c0_75, %c0_76], %870 {strides = array<i32>} : memref<2x1x64xf32, #tpu.memory_space<vmem>>, vector<1x1x64xf32>,
    return
  }
  func.func @transform_0(%arg0: i32) -> (i32, i32, i32) {
    %c0_i32 = arith.constant 0 : i32
    %c0_i32_0 = arith.constant 0 : i32
    %c0_i32_1 = arith.constant 0 : i32
    return %arg0, %c0_i32, %c0_i32_0 : i32, i32, i32
  }
  func.func @transform_1(%arg0: i32) -> (i32, i32, i32) {
    %c0_i32 = arith.constant 0 : i32
    %c0_i32_0 = arith.constant 0 : i32
    %c0_i32_1 = arith.constant 0 : i32
    %c0_i32_2 = arith.constant 0 : i32
    return %c0_i32, %c0_i32_0, %c0_i32_1 : i32, i32, i32
  }
  func.func @transform_2(%arg0: i32) -> (i32, i32, i32) {
    %c0_i32 = arith.constant 0 : i32
    %c0_i32_0 = arith.constant 0 : i32
    %c0_i32_1 = arith.constant 0 : i32
    %c0_i32_2 = arith.constant 0 : i32
    return %c0_i32, %c0_i32_0, %c0_i32_1 : i32, i32, i32
  }
  func.func @transform_3(%arg0: i32) -> (i32, i32, i32) {
    %c0_i32 = arith.constant 0 : i32
    %c0_i32_0 = arith.constant 0 : i32
    %c0_i32_1 = arith.constant 0 : i32
    return %arg0, %c0_i32, %c0_i32_0 : i32, i32, i32
  }
}

</mosaic_0001>

<llo_original>
// kernel: tpu_custom_call.1
$region0: #{tpu_custom_call.1}
  #allocation0 [shape = 'u32[]', space=smem, size = 0x4, offset = 0x4, fixed_abs, tag = 'smem constant byte address 0x4 - core index']
  #allocation1 [shape = 'u32[72,128]{1,0:T(1,128)}', space=vmem, size = 0x9000, scoped, tag = 'internal scratch']
  %s0 = inlined_call_operand.vmem [shape: f32[4,1,64], index: 0, kind: input, shape index: {}]
  %s1 = inlined_call_operand.hbm [shape: f32[6,8,408], index: 1, kind: input, shape index: {}]
  %s2 = inlined_call_operand.vmem [shape: f32[6,8,1], index: 2, kind: input, shape index: {}]
  %s3 = inlined_call_operand.hbm [shape: f32[4,1,64], index: 3, kind: output, shape index: {}]
  %s4 = sld [smem:[#allocation0]]
  $region49: #{tpu_custom_call.1} parent=0
    _
  %s6 = ssub.s32 1, %s4
  %s7 = scalar_select 0, %s6, %s4
  $region1: #{tpu_custom_call.1} parent=0
    #allocation2 [shape = 'u8[98304]{0}', space=vmem, size = 0x18000, scoped, tag = 'input window, operand 1, single buffered']
    #allocation3 [shape = 's32[2]{0}', space=sflag, size = 0x8, scoped, tag = 'scoped memory for tpu_custom_call.1']
    #allocation4 [shape = 's32[2]{0}', space=sflag, size = 0x8, scoped, tag = 'scoped memory for tpu_custom_call.1']
    #allocation5 [shape = 'u8[2048]{0}', space=vmem, size = 0x800, scoped, tag = 'output window, operand 0']
    %8 = vsyncpa [#allocation3], 0
    %9 = vsyncpa [#allocation4], 0
    %s10 = scalar_lea.sflag [#allocation4], 1
    %11 = vsyncpa %s10, 0
    loop: start=0, step=1, limit=4
    $region2: #{tpu_custom_call.1} parent=1 // loop_pre_header
      _
    $region3: #{tpu_custom_call.1} parent=1 // loop_header
      %s13 = sphi 0, %s17
      %p14 = scmp.ge.s32.totalorder %s13, 4
      %s23 = sphi 0, %s25
      %s26 = sphi 0, %s23
      %s27 = sphi 0, %s26
      %s43 = sphi 0, %s27
      %s47 = sphi 0, %s47
      %s49 = sphi 0, %s47
      %s50 = sphi 0, %s49
      %s64 = sphi 0, %s50
      %s68 = sphi 0, %s68
      %s70 = sphi 0, %s68
      %s71 = sphi 0, %s70
      %s85 = sphi 0, %s71
      %s91 = sphi 0, %s93
      %s94 = sphi 0, %s91
      %s95 = sphi 0, %s94
      %s111 = sphi 0, %s95
    $region4: #{tpu_custom_call.1} parent=1 // loop_header_branch
      %16 = sbr.rel (%p14) target = $region8
    $region5: #{tpu_custom_call.1} parent=1 // loop_body
      %s18 = ssub.s32 %s13, 1
      %s19 = ssub.s32 %s13, 2
      %s20 = sadd.s32 %s13, 1
      %s21 = ssub.s32 %s13, %s20
      %p22 = scmp.eq.s32.totalorder %s21, 0
      %s24 = sadd.s32 %s23, 1
      %s25 = scalar_select %p22, %s23, %s24
      %p28 = pneg %p22
      %p29 = scmp.eq.s32.totalorder %s13, 1
      %p30 = por %p28, %p29
      %p31 = scmp.ne.s32.totalorder %s23, %s26
      %p32 = scmp.eq.s32.totalorder %s13, 0
      %p33 = por %p31, %p32
      %p34 = scmp.ne.s32.totalorder %s23, %s26
      %p35 = scmp.eq.s32.totalorder %s18, 1
      %p36 = por %p34, %p35
      %p37 = scmp.ne.s32.totalorder %s26, %s27
      %p38 = scmp.eq.s32.totalorder %s18, 0
      %p39 = por %p37, %p38
      %p40 = scmp.ne.s32.totalorder %s26, %s27
      %p41 = scmp.eq.s32.totalorder %s19, 1
      %p42 = por %p40, %p41
      %p44 = scmp.ne.s32.totalorder %s27, %s43
      %p45 = scmp.eq.s32.totalorder %s19, 0
      %p46 = por %p44, %p45
      %s48 = sadd.s32 %s47, 1
      %p51 = scmp.eq.s32.totalorder %s13, 1
      %p52 = scmp.ne.s32.totalorder %s47, %s49
      %p53 = scmp.eq.s32.totalorder %s13, 0
      %p54 = por %p52, %p53
      %p55 = scmp.ne.s32.totalorder %s47, %s49
      %p56 = scmp.eq.s32.totalorder %s18, 1
      %p57 = por %p55, %p56
      %p58 = scmp.ne.s32.totalorder %s49, %s50
      %p59 = scmp.eq.s32.totalorder %s18, 0
      %p60 = por %p58, %p59
      %p61 = scmp.ne.s32.totalorder %s49, %s50
      %p62 = scmp.eq.s32.totalorder %s19, 1
      %p63 = por %p61, %p62
      %p65 = scmp.ne.s32.totalorder %s50, %s64
      %p66 = scmp.eq.s32.totalorder %s19, 0
      %p67 = por %p65, %p66
      %s69 = sadd.s32 %s68, 1
      %p72 = scmp.eq.s32.totalorder %s13, 1
      %p73 = scmp.ne.s32.totalorder %s68, %s70
      %p74 = scmp.eq.s32.totalorder %s13, 0
      %p75 = por %p73, %p74
      %p76 = scmp.ne.s32.totalorder %s68, %s70
      %p77 = scmp.eq.s32.totalorder %s18, 1
      %p78 = por %p76, %p77
      %p79 = scmp.ne.s32.totalorder %s70, %s71
      %p80 = scmp.eq.s32.totalorder %s18, 0
      %p81 = por %p79, %p80
      %p82 = scmp.ne.s32.totalorder %s70, %s71
      %p83 = scmp.eq.s32.totalorder %s19, 1
      %p84 = por %p82, %p83
      %p86 = scmp.ne.s32.totalorder %s71, %s85
      %p87 = scmp.eq.s32.totalorder %s19, 0
      %p88 = por %p86, %p87
      %s89 = ssub.s32 %s13, %s20
      %p90 = scmp.eq.s32.totalorder %s89, 0
      %s92 = sadd.s32 %s91, 1
      %s93 = scalar_select %p90, %s91, %s92
      %p96 = pneg %p90
      %p97 = scmp.eq.s32.totalorder %s13, 1
      %p98 = por %p96, %p97
      %p99 = scmp.ne.s32.totalorder %s91, %s94
      %p100 = scmp.eq.s32.totalorder %s13, 0
      %p101 = por %p99, %p100
      %p102 = scmp.ne.s32.totalorder %s91, %s94
      %p103 = scmp.eq.s32.totalorder %s18, 1
      %p104 = por %p102, %p103
      %p105 = scmp.ne.s32.totalorder %s94, %s95
      %p106 = scmp.eq.s32.totalorder %s18, 0
      %p107 = por %p105, %p106
      %p108 = scmp.ne.s32.totalorder %s94, %s95
      %p109 = scmp.eq.s32.totalorder %s19, 1
      %p110 = por %p108, %p109
      %p112 = scmp.ne.s32.totalorder %s95, %s111
      %p113 = scmp.eq.s32.totalorder %s19, 0
      %p114 = por %p112, %p113
      %p115 = scmp.le.s32.totalorder 1, %s13
      %p116 = scmp.lt.s32.totalorder %s13, 3
      %p117 = pnand %p115, %p116
      %p118 = pneg %p117
      // Predicated region
      $region9: #{tpu_custom_call.1} parent=5 // pred_check
        _
      $region10: #{tpu_custom_call.1} parent=5 // pred_check_branch
        %120 = sbr.rel (%p117) target = $region12
      $region11: #{tpu_custom_call.1} parent=5 // pred_region
        %s121 = ssub.s32 %s13, 1
        // Predicated region
        $region13: #{tpu_custom_call.1} parent=11 // pred_check
          %p122 = pneg %p60
        $region14: #{tpu_custom_call.1} parent=11 // pred_check_branch
          %124 = sbr.rel (%p122) target = $region16
        $region15: #{tpu_custom_call.1} parent=11 // pred_region
          %126 = vsyncadd [#allocation3], 0
          %s127 = sshll.u32 %s1, 4
          %s128 = int_to_ptr.hbm [resolvable:$true] %s127
          %s129 = sshll.u32 [#allocation2], 4
          %s130 = int_to_ptr.vmem [resolvable:$true] %s129
          %135 = dma.hbm_to_vmem [thread:$0]  %s128, 3072, %s130, [#allocation3], 512, 512, 32
        $region16: #{tpu_custom_call.1} parent=11 // pred_fallthru
          _
        // Predicated region
        $region17: #{tpu_custom_call.1} parent=11 // pred_check
          %p136 = pneg %p81
        $region18: #{tpu_custom_call.1} parent=11 // pred_check_branch
          %138 = sbr.rel (%p136) target = $region20
        $region19: #{tpu_custom_call.1} parent=11 // pred_region
          _
        $region20: #{tpu_custom_call.1} parent=11 // pred_fallthru
          _
      $region12: #{tpu_custom_call.1} parent=5 // pred_fallthru
        _
      %p139 = scmp.lt.s32.totalorder %s13, 2
      // Predicated region
      $region21: #{tpu_custom_call.1} parent=5 // pred_check
        %p140 = pneg %p139
      $region22: #{tpu_custom_call.1} parent=5 // pred_check_branch
        %142 = sbr.rel (%p140) target = $region24
      $region23: #{tpu_custom_call.1} parent=5 // pred_region
        // Predicated region
        $region25: #{tpu_custom_call.1} parent=23 // pred_check
          %p143 = pneg %p33
        $region26: #{tpu_custom_call.1} parent=23 // pred_check_branch
          %145 = sbr.rel (%p143) target = $region28
        $region27: #{tpu_custom_call.1} parent=23 // pred_region
          %s146 = smul.u32 2, %s13
          %p147 = scmp.lt.s32.totalorder %s146, 3
          %s148 = scalar_select %p147, %s146, 3
          %s149 = scalar_lea.vmem %s0, %s148
          %s150 = smul.u32 2, %s13
        $region28: #{tpu_custom_call.1} parent=23 // pred_fallthru
          _
      $region24: #{tpu_custom_call.1} parent=5 // pred_fallthru
        _
      %p151 = scmp.le.s32.totalorder 1, %s13
      %p152 = scmp.lt.s32.totalorder %s13, 3
      %p153 = pnand %p151, %p152
      %p154 = pneg %p153
      // Predicated region
      $region29: #{tpu_custom_call.1} parent=5 // pred_check
        _
      $region30: #{tpu_custom_call.1} parent=5 // pred_check_branch
        %156 = sbr.rel (%p153) target = $region32
      $region31: #{tpu_custom_call.1} parent=5 // pred_region
        %s157 = ssub.s32 %s13, 1
        // Predicated region
        $region33: #{tpu_custom_call.1} parent=31 // pred_check
          %p158 = pneg %p60
        $region34: #{tpu_custom_call.1} parent=31 // pred_check_branch
          %160 = sbr.rel (%p158) target = $region36
        $region35: #{tpu_custom_call.1} parent=31 // pred_region
          %162 = dma.done [#allocation3], 3072
        $region36: #{tpu_custom_call.1} parent=31 // pred_fallthru
          _
        %s163 = smul.u32 2, %s18
        %p164 = scmp.lt.s32.totalorder %s163, 3
        %s165 = scalar_select %p164, %s163, 3
        %s166 = scalar_lea.vmem %s0, %s165
        %p167 = pneg %p39
        %p168 = pneg %p36
        %p169 = pneg %p60
        %p170 = pneg %p57
        %p171 = pneg %p81
        %p172 = pneg %p78
        %p173 = pneg %p107
        %p174 = pneg %p104
        %s175 = sand.u32 %s94, 1
        %s176 = scalar_lea.sflag [#allocation4], %s175
        %s177 = sand.u32 %s94, 1
        %s178 = smul.addr %s177, 2
        %s179 = scalar_lea.vmem [#allocation5], %s178
        %s180 = smul.u32 2, %s18
        %p181 = scmp.lt.s32.totalorder %s180, 3
        %s182 = scalar_select %p181, %s180, 3
        %s183 = scalar_lea.vmem %s0, %s182
        %s184 = smul.u32 2, %s18
        %s185 = smul.u32 2, %s18
        %v186 = vld [vmem:[%s183] sm:$0x1]
        %vm187 = vcmask 1040384
        %v188 = vsel %vm187, %v186, 0.0
        %s189 = scalar_lea.vmem %s183, 1
        %v190 = vld [vmem:[%s189] sm:$0x1]
        %v191 = vsel %vm187, %v190, 0.0
        %v192 = vld [vmem:[#allocation2] sm:$0xff]
        %v193 = vld [vmem:[#allocation2 + $0x8] sm:$0xff]
        %v194 = vld [vmem:[#allocation2 + $0x10] sm:$0xff]
        %v195 = vld [vmem:[#allocation2 + $0x18] sm:$0xff]
        %v196 = vld [vmem:[%s2] sm:$0xff]
        %198 = vrot.lane.b32.xlu0 %v188, 89
        %v199 = vpop.permute.xlu0 %198
        %201 = vrot.lane.b32.xlu0 %v188, 25
        %v202 = vpop.permute.xlu0 %201
        %vm204 = vcmask 203776
        %v205 = vsel %vm204, %v199, %v202
        %vm206 = vcmask 728064
        %v207 = vsel %vm206, %v205, %v199
        %209 = vrot.lane.b32.xlu0 %v191, 89
        %v210 = vpop.permute.xlu0 %209
        %212 = vrot.lane.b32.xlu0 %v191, 25
        %v213 = vpop.permute.xlu0 %212
        %v215 = vsel %vm204, %v210, %v213
        %v216 = vsel %vm206, %v215, %v210
        %218 = vrot.lane.b32.xlu0 %v207, 127
        %v219 = vpop.permute.xlu0 %218
        %221 = vrot.lane.b32.xlu0 %v207, 126
        %v222 = vpop.permute.xlu0 %221
        %224 = vrot.lane.b32.xlu0 %v207, 125
        %v225 = vpop.permute.xlu0 %224
        %227 = vrot.lane.b32.xlu0 %v207, 124
        %v228 = vpop.permute.xlu0 %227
        %230 = vrot.lane.b32.xlu0 %v207, 123
        %v231 = vpop.permute.xlu0 %230
        %233 = vrot.lane.b32.xlu0 %v207, 122
        %v234 = vpop.permute.xlu0 %233
        %236 = vrot.lane.b32.xlu0 %v207, 121
        %v237 = vpop.permute.xlu0 %236
        %239 = vrot.lane.b32.xlu0 %v207, 120
        %v240 = vpop.permute.xlu0 %239
        %242 = vrot.lane.b32.xlu0 %v207, 119
        %v243 = vpop.permute.xlu0 %242
        %245 = vrot.lane.b32.xlu0 %v207, 118
        %v246 = vpop.permute.xlu0 %245
        %248 = vrot.lane.b32.xlu0 %v207, 117
        %v249 = vpop.permute.xlu0 %248
        %251 = vrot.lane.b32.xlu0 %v207, 116
        %v252 = vpop.permute.xlu0 %251
        %254 = vrot.lane.b32.xlu0 %v207, 115
        %v255 = vpop.permute.xlu0 %254
        %257 = vrot.lane.b32.xlu0 %v207, 114
        %v258 = vpop.permute.xlu0 %257
        %260 = vrot.lane.b32.xlu0 %v207, 113
        %v261 = vpop.permute.xlu0 %260
        %264 = vrot.lane.b32.xlu0 %v216, 127
        %v265 = vpop.permute.xlu0 %264
        %266 = vrot.lane.b32.xlu0 %v216, 126
        %v267 = vpop.permute.xlu0 %266
        %268 = vrot.lane.b32.xlu0 %v216, 125
        %v269 = vpop.permute.xlu0 %268
        %270 = vrot.lane.b32.xlu0 %v216, 124
        %v271 = vpop.permute.xlu0 %270
        %272 = vrot.lane.b32.xlu0 %v216, 123
        %v273 = vpop.permute.xlu0 %272
        %274 = vrot.lane.b32.xlu0 %v216, 122
        %v275 = vpop.permute.xlu0 %274
        %276 = vrot.lane.b32.xlu0 %v216, 121
        %v277 = vpop.permute.xlu0 %276
        %278 = vrot.lane.b32.xlu0 %v216, 120
        %v279 = vpop.permute.xlu0 %278
        %280 = vrot.lane.b32.xlu0 %v216, 119
        %v281 = vpop.permute.xlu0 %280
        %282 = vrot.lane.b32.xlu0 %v216, 118
        %v283 = vpop.permute.xlu0 %282
        %284 = vrot.lane.b32.xlu0 %v216, 117
        %v285 = vpop.permute.xlu0 %284
        %286 = vrot.lane.b32.xlu0 %v216, 116
        %v287 = vpop.permute.xlu0 %286
        %288 = vrot.lane.b32.xlu0 %v216, 115
        %v289 = vpop.permute.xlu0 %288
        %290 = vrot.lane.b32.xlu0 %v216, 114
        %v291 = vpop.permute.xlu0 %290
        %292 = vrot.lane.b32.xlu0 %v216, 113
        %v293 = vpop.permute.xlu0 %292
        %294 = vrot.lane.b32.xlu0 %v216, 64
        %v295 = vpop.permute.xlu0 %294
        %296 = vrot.lane.b32.xlu0 %v265, 64
        %v297 = vpop.permute.xlu0 %296
        %298 = vrot.lane.b32.xlu0 %v267, 64
        %v299 = vpop.permute.xlu0 %298
        %300 = vrot.lane.b32.xlu0 %v269, 64
        %v301 = vpop.permute.xlu0 %300
        %302 = vrot.lane.b32.xlu0 %v271, 64
        %v303 = vpop.permute.xlu0 %302
        %304 = vrot.lane.b32.xlu0 %v273, 64
        %v305 = vpop.permute.xlu0 %304
        %306 = vrot.lane.b32.xlu0 %v275, 64
        %v307 = vpop.permute.xlu0 %306
        %308 = vrot.lane.b32.xlu0 %v277, 64
        %v309 = vpop.permute.xlu0 %308
        %310 = vrot.lane.b32.xlu0 %v279, 64
        %v311 = vpop.permute.xlu0 %310
        %312 = vrot.lane.b32.xlu0 %v281, 64
        %v313 = vpop.permute.xlu0 %312
        %314 = vrot.lane.b32.xlu0 %v283, 64
        %v315 = vpop.permute.xlu0 %314
        %316 = vrot.lane.b32.xlu0 %v285, 64
        %v317 = vpop.permute.xlu0 %316
        %318 = vrot.lane.b32.xlu0 %v287, 64
        %v319 = vpop.permute.xlu0 %318
        %320 = vrot.lane.b32.xlu0 %v289, 64
        %v321 = vpop.permute.xlu0 %320
        %322 = vrot.lane.b32.xlu0 %v291, 64
        %v323 = vpop.permute.xlu0 %322
        %324 = vrot.lane.b32.xlu0 %v293, 64
        %v325 = vpop.permute.xlu0 %324
        %vm342 = vcmask 523264
        %v343 = vsel %vm342, %v207, %v295
        %v344 = vsel %vm342, %v219, %v297
        %v345 = vsel %vm342, %v222, %v299
        %v346 = vsel %vm342, %v225, %v301
        %v347 = vsel %vm342, %v228, %v303
        %v348 = vsel %vm342, %v231, %v305
        %v349 = vsel %vm342, %v234, %v307
        %v350 = vsel %vm342, %v237, %v309
        %v351 = vsel %vm342, %v240, %v311
        %v352 = vsel %vm342, %v243, %v313
        %v353 = vsel %vm342, %v246, %v315
        %v354 = vsel %vm342, %v249, %v317
        %v355 = vsel %vm342, %v252, %v319
        %v356 = vsel %vm342, %v255, %v321
        %v357 = vsel %vm342, %v258, %v323
        %v358 = vsel %vm342, %v261, %v325
        %359 = vrot.lane.b32.xlu0 %v207, 112
        %v360 = vpop.permute.xlu0 %359
        %361 = vrot.lane.b32.xlu0 %v219, 112
        %v362 = vpop.permute.xlu0 %361
        %363 = vrot.lane.b32.xlu0 %v222, 112
        %v364 = vpop.permute.xlu0 %363
        %365 = vrot.lane.b32.xlu0 %v225, 112
        %v366 = vpop.permute.xlu0 %365
        %367 = vrot.lane.b32.xlu0 %v228, 112
        %v368 = vpop.permute.xlu0 %367
        %369 = vrot.lane.b32.xlu0 %v231, 112
        %v370 = vpop.permute.xlu0 %369
        %371 = vrot.lane.b32.xlu0 %v234, 112
        %v372 = vpop.permute.xlu0 %371
        %373 = vrot.lane.b32.xlu0 %v237, 112
        %v374 = vpop.permute.xlu0 %373
        %375 = vrot.lane.b32.xlu0 %v240, 112
        %v376 = vpop.permute.xlu0 %375
        %377 = vrot.lane.b32.xlu0 %v243, 112
        %v378 = vpop.permute.xlu0 %377
        %379 = vrot.lane.b32.xlu0 %v246, 112
        %v380 = vpop.permute.xlu0 %379
        %381 = vrot.lane.b32.xlu0 %v249, 112
        %v382 = vpop.permute.xlu0 %381
        %383 = vrot.lane.b32.xlu0 %v252, 112
        %v384 = vpop.permute.xlu0 %383
        %385 = vrot.lane.b32.xlu0 %v255, 112
        %v386 = vpop.permute.xlu0 %385
        %387 = vrot.lane.b32.xlu0 %v258, 112
        %v388 = vpop.permute.xlu0 %387
        %389 = vrot.lane.b32.xlu0 %v261, 112
        %v390 = vpop.permute.xlu0 %389
        %407 = vrot.lane.b32.xlu0 %v216, 48
        %v408 = vpop.permute.xlu0 %407
        %409 = vrot.lane.b32.xlu0 %v265, 48
        %v410 = vpop.permute.xlu0 %409
        %411 = vrot.lane.b32.xlu0 %v267, 48
        %v412 = vpop.permute.xlu0 %411
        %413 = vrot.lane.b32.xlu0 %v269, 48
        %v414 = vpop.permute.xlu0 %413
        %415 = vrot.lane.b32.xlu0 %v271, 48
        %v416 = vpop.permute.xlu0 %415
        %417 = vrot.lane.b32.xlu0 %v273, 48
        %v418 = vpop.permute.xlu0 %417
        %419 = vrot.lane.b32.xlu0 %v275, 48
        %v420 = vpop.permute.xlu0 %419
        %421 = vrot.lane.b32.xlu0 %v277, 48
        %v422 = vpop.permute.xlu0 %421
        %423 = vrot.lane.b32.xlu0 %v279, 48
        %v424 = vpop.permute.xlu0 %423
        %425 = vrot.lane.b32.xlu0 %v281, 48
        %v426 = vpop.permute.xlu0 %425
        %427 = vrot.lane.b32.xlu0 %v283, 48
        %v428 = vpop.permute.xlu0 %427
        %429 = vrot.lane.b32.xlu0 %v285, 48
        %v430 = vpop.permute.xlu0 %429
        %431 = vrot.lane.b32.xlu0 %v287, 48
        %v432 = vpop.permute.xlu0 %431
        %433 = vrot.lane.b32.xlu0 %v289, 48
        %v434 = vpop.permute.xlu0 %433
        %435 = vrot.lane.b32.xlu0 %v291, 48
        %v436 = vpop.permute.xlu0 %435
        %437 = vrot.lane.b32.xlu0 %v293, 48
        %v438 = vpop.permute.xlu0 %437
        %v455 = vsel %vm342, %v360, %v408
        %v456 = vsel %vm342, %v362, %v410
        %v457 = vsel %vm342, %v364, %v412
        %v458 = vsel %vm342, %v366, %v414
        %v459 = vsel %vm342, %v368, %v416
        %v460 = vsel %vm342, %v370, %v418
        %v461 = vsel %vm342, %v372, %v420
        %v462 = vsel %vm342, %v374, %v422
        %v463 = vsel %vm342, %v376, %v424
        %v464 = vsel %vm342, %v378, %v426
        %v465 = vsel %vm342, %v380, %v428
        %v466 = vsel %vm342, %v382, %v430
        %v467 = vsel %vm342, %v384, %v432
        %v468 = vsel %vm342, %v386, %v434
        %v469 = vsel %vm342, %v388, %v436
        %v470 = vsel %vm342, %v390, %v438
        %471 = vmatpush.msra.mxu0 %v470
        %472 = vmatpush.msra.mxu0 %v469
        %473 = vmatpush.msra.mxu0 %v468
        %474 = vmatpush.msra.mxu0 %v467
        %475 = vmatpush.msra.mxu0 %v466
        %476 = vmatpush.msra.mxu0 %v465
        %477 = vmatpush.msra.mxu0 %v464
        %478 = vmatpush.msra.mxu0 %v463
        %479 = vmatpush.msra.mxu0 %v462
        %480 = vmatpush.msra.mxu0 %v461
        %481 = vmatpush.msra.mxu0 %v460
        %482 = vmatpush.msra.mxu0 %v459
        %483 = vmatpush.msra.mxu0 %v458
        %484 = vmatpush.msra.mxu0 %v457
        %485 = vmatpush.msra.mxu0 %v456
        %486 = vmatpush.msra.mxu0 %v455
        %487 = vmatmul.f32.gmra.mxu0 %v193
        %v488 = vpop.f32.mrf.mxu0
        %v489 = vadd.f32 0.0, %v488
        %490 = vdwg.mxu0
        %491 = vmatpush.msra.mxu0 %v358
        %492 = vmatpush.msra.mxu0 %v357
        %493 = vmatpush.msra.mxu0 %v356
        %494 = vmatpush.msra.mxu0 %v355
        %495 = vmatpush.msra.mxu0 %v354
        %496 = vmatpush.msra.mxu0 %v353
        %497 = vmatpush.msra.mxu0 %v352
        %498 = vmatpush.msra.mxu0 %v351
        %499 = vmatpush.msra.mxu0 %v350
        %500 = vmatpush.msra.mxu0 %v349
        %501 = vmatpush.msra.mxu0 %v348
        %502 = vmatpush.msra.mxu0 %v347
        %503 = vmatpush.msra.mxu0 %v346
        %504 = vmatpush.msra.mxu0 %v345
        %505 = vmatpush.msra.mxu0 %v344
        %506 = vmatpush.msra.mxu0 %v343
        %507 = vmatmul.f32.gmra.mxu0 %v192
        %v508 = vpop.f32.mrf.mxu0
        %v509 = vadd.f32 %v489, %v508
        %510 = vdwg.mxu0
        %511 = vrot.lane.b32.xlu0 %v207, 96
        %v512 = vpop.permute.xlu0 %511
        %513 = vrot.lane.b32.xlu0 %v219, 96
        %v514 = vpop.permute.xlu0 %513
        %515 = vrot.lane.b32.xlu0 %v222, 96
        %v516 = vpop.permute.xlu0 %515
        %517 = vrot.lane.b32.xlu0 %v225, 96
        %v518 = vpop.permute.xlu0 %517
        %519 = vrot.lane.b32.xlu0 %v228, 96
        %v520 = vpop.permute.xlu0 %519
        %521 = vrot.lane.b32.xlu0 %v231, 96
        %v522 = vpop.permute.xlu0 %521
        %523 = vrot.lane.b32.xlu0 %v234, 96
        %v524 = vpop.permute.xlu0 %523
        %525 = vrot.lane.b32.xlu0 %v237, 96
        %v526 = vpop.permute.xlu0 %525
        %527 = vrot.lane.b32.xlu0 %v240, 96
        %v528 = vpop.permute.xlu0 %527
        %529 = vrot.lane.b32.xlu0 %v243, 96
        %v530 = vpop.permute.xlu0 %529
        %531 = vrot.lane.b32.xlu0 %v246, 96
        %v532 = vpop.permute.xlu0 %531
        %533 = vrot.lane.b32.xlu0 %v249, 96
        %v534 = vpop.permute.xlu0 %533
        %535 = vrot.lane.b32.xlu0 %v252, 96
        %v536 = vpop.permute.xlu0 %535
        %537 = vrot.lane.b32.xlu0 %v255, 96
        %v538 = vpop.permute.xlu0 %537
        %539 = vrot.lane.b32.xlu0 %v258, 96
        %v540 = vpop.permute.xlu0 %539
        %541 = vrot.lane.b32.xlu0 %v261, 96
        %v542 = vpop.permute.xlu0 %541
        %559 = vrot.lane.b32.xlu0 %v216, 32
        %v560 = vpop.permute.xlu0 %559
        %561 = vrot.lane.b32.xlu0 %v265, 32
        %v562 = vpop.permute.xlu0 %561
        %563 = vrot.lane.b32.xlu0 %v267, 32
        %v564 = vpop.permute.xlu0 %563
        %565 = vrot.lane.b32.xlu0 %v269, 32
        %v566 = vpop.permute.xlu0 %565
        %567 = vrot.lane.b32.xlu0 %v271, 32
        %v568 = vpop.permute.xlu0 %567
        %569 = vrot.lane.b32.xlu0 %v273, 32
        %v570 = vpop.permute.xlu0 %569
        %571 = vrot.lane.b32.xlu0 %v275, 32
        %v572 = vpop.permute.xlu0 %571
        %573 = vrot.lane.b32.xlu0 %v277, 32
        %v574 = vpop.permute.xlu0 %573
        %575 = vrot.lane.b32.xlu0 %v279, 32
        %v576 = vpop.permute.xlu0 %575
        %577 = vrot.lane.b32.xlu0 %v281, 32
        %v578 = vpop.permute.xlu0 %577
        %579 = vrot.lane.b32.xlu0 %v283, 32
        %v580 = vpop.permute.xlu0 %579
        %581 = vrot.lane.b32.xlu0 %v285, 32
        %v582 = vpop.permute.xlu0 %581
        %583 = vrot.lane.b32.xlu0 %v287, 32
        %v584 = vpop.permute.xlu0 %583
        %585 = vrot.lane.b32.xlu0 %v289, 32
        %v586 = vpop.permute.xlu0 %585
        %587 = vrot.lane.b32.xlu0 %v291, 32
        %v588 = vpop.permute.xlu0 %587
        %589 = vrot.lane.b32.xlu0 %v293, 32
        %v590 = vpop.permute.xlu0 %589
        %v607 = vsel %vm342, %v512, %v560
        %v608 = vsel %vm342, %v514, %v562
        %v609 = vsel %vm342, %v516, %v564
        %v610 = vsel %vm342, %v518, %v566
        %v611 = vsel %vm342, %v520, %v568
        %v612 = vsel %vm342, %v522, %v570
        %v613 = vsel %vm342, %v524, %v572
        %v614 = vsel %vm342, %v526, %v574
        %v615 = vsel %vm342, %v528, %v576
        %v616 = vsel %vm342, %v530, %v578
        %v617 = vsel %vm342, %v532, %v580
        %v618 = vsel %vm342, %v534, %v582
        %v619 = vsel %vm342, %v536, %v584
        %v620 = vsel %vm342, %v538, %v586
        %v621 = vsel %vm342, %v540, %v588
        %v622 = vsel %vm342, %v542, %v590
        %623 = vmatpush.msra.mxu0 %v622
        %624 = vmatpush.msra.mxu0 %v621
        %625 = vmatpush.msra.mxu0 %v620
        %626 = vmatpush.msra.mxu0 %v619
        %627 = vmatpush.msra.mxu0 %v618
        %628 = vmatpush.msra.mxu0 %v617
        %629 = vmatpush.msra.mxu0 %v616
        %630 = vmatpush.msra.mxu0 %v615
        %631 = vmatpush.msra.mxu0 %v614
        %632 = vmatpush.msra.mxu0 %v613
        %633 = vmatpush.msra.mxu0 %v612
        %634 = vmatpush.msra.mxu0 %v611
        %635 = vmatpush.msra.mxu0 %v610
        %636 = vmatpush.msra.mxu0 %v609
        %637 = vmatpush.msra.mxu0 %v608
        %638 = vmatpush.msra.mxu0 %v607
        %639 = vmatmul.f32.gmra.mxu0 %v194
        %v640 = vpop.f32.mrf.mxu0
        %v641 = vadd.f32 0.0, %v640
        %642 = vdwg.mxu0
        %v643 = vadd.f32 %v509, %v641
        %644 = vrot.lane.b32.xlu0 %v207, 80
        %v645 = vpop.permute.xlu0 %644
        %646 = vrot.lane.b32.xlu0 %v219, 80
        %v647 = vpop.permute.xlu0 %646
        %648 = vrot.lane.b32.xlu0 %v222, 80
        %v649 = vpop.permute.xlu0 %648
        %653 = vrot.lane.b32.xlu0 %v216, 16
        %v654 = vpop.permute.xlu0 %653
        %655 = vrot.lane.b32.xlu0 %v265, 16
        %v656 = vpop.permute.xlu0 %655
        %657 = vrot.lane.b32.xlu0 %v267, 16
        %v658 = vpop.permute.xlu0 %657
        %v662 = vsel %vm342, %v645, %v654
        %v663 = vsel %vm342, %v647, %v656
        %v664 = vsel %vm342, %v649, %v658
        %vm665 = vcmask 195584
        %v667 = vsel %vm665, %v195, 0
        %669 = vmatpush.msra.mxu0 0.0
        %670 = vmatpush.msra.mxu0 0.0
        %671 = vmatpush.msra.mxu0 0.0
        %672 = vmatpush.msra.mxu0 0.0
        %673 = vmatpush.msra.mxu0 0.0
        %674 = vmatpush.msra.mxu0 0.0
        %675 = vmatpush.msra.mxu0 0.0
        %676 = vmatpush.msra.mxu0 0.0
        %677 = vmatpush.msra.mxu0 0.0
        %678 = vmatpush.msra.mxu0 0.0
        %679 = vmatpush.msra.mxu0 0.0
        %680 = vmatpush.msra.mxu0 0.0
        %681 = vmatpush.msra.mxu0 0.0
        %682 = vmatpush.msra.mxu0 %v664
        %683 = vmatpush.msra.mxu0 %v663
        %684 = vmatpush.msra.mxu0 %v662
        %685 = vmatmul.f32.gmra.mxu0 %v667
        %v686 = vpop.f32.mrf.mxu0
        %v687 = vadd.f32 0.0, %v686
        %688 = vdwg.mxu0
        %v689 = vadd.f32 %v643, %v687
        %691 = vset.pattern.permute.xlu0 0
        %692 = vperm.xlu0 %691, %v196
        %v693 = vpop.permute.xlu0 %692
        %v695 = vadd.f32 %v689, %v693
        %v696 = vmax.f32 %v695, 0.0
        %s697 = scalar_lea.vmem [#allocation2], 32
        %v698 = vld [vmem:[%s697] sm:$0xff]
        %v699 = vld [vmem:[%s697 + $0x8] sm:$0xff]
        %v700 = vld [vmem:[%s697 + $0x10] sm:$0xff]
        %v701 = vld [vmem:[%s697 + $0x18] sm:$0xff]
        %s702 = scalar_lea.vmem %s2, 8
        %v703 = vld [vmem:[%s702] sm:$0xff]
        %705 = vrot.lane.b32.xlu0 %v696, 89
        %v706 = vpop.permute.xlu0 %705
        %708 = vrot.lane.b32.xlu0 %v696, 25
        %v709 = vpop.permute.xlu0 %708
        %v711 = vsel %vm204, %v706, %v709
        %v712 = vsel %vm206, %v711, %v706
        %v713 = vsel %vm204, %v709, %v706
        %v714 = vsel %vm206, %v713, %v709
        %716 = vrot.lane.b32.xlu0 %v712, 127
        %v717 = vpop.permute.xlu0 %716
        %719 = vrot.lane.b32.xlu0 %v712, 126
        %v720 = vpop.permute.xlu0 %719
        %722 = vrot.lane.b32.xlu0 %v712, 125
        %v723 = vpop.permute.xlu0 %722
        %725 = vrot.lane.b32.xlu0 %v712, 124
        %v726 = vpop.permute.xlu0 %725
        %728 = vrot.lane.b32.xlu0 %v712, 123
        %v729 = vpop.permute.xlu0 %728
        %731 = vrot.lane.b32.xlu0 %v712, 122
        %v732 = vpop.permute.xlu0 %731
        %734 = vrot.lane.b32.xlu0 %v712, 121
        %v735 = vpop.permute.xlu0 %734
        %737 = vrot.lane.b32.xlu0 %v712, 120
        %v738 = vpop.permute.xlu0 %737
        %740 = vrot.lane.b32.xlu0 %v712, 119
        %v741 = vpop.permute.xlu0 %740
        %743 = vrot.lane.b32.xlu0 %v712, 118
        %v744 = vpop.permute.xlu0 %743
        %746 = vrot.lane.b32.xlu0 %v712, 117
        %v747 = vpop.permute.xlu0 %746
        %749 = vrot.lane.b32.xlu0 %v712, 116
        %v750 = vpop.permute.xlu0 %749
        %752 = vrot.lane.b32.xlu0 %v712, 115
        %v753 = vpop.permute.xlu0 %752
        %755 = vrot.lane.b32.xlu0 %v712, 114
        %v756 = vpop.permute.xlu0 %755
        %758 = vrot.lane.b32.xlu0 %v712, 113
        %v759 = vpop.permute.xlu0 %758
        %762 = vrot.lane.b32.xlu0 %v714, 127
        %v763 = vpop.permute.xlu0 %762
        %764 = vrot.lane.b32.xlu0 %v714, 126
        %v765 = vpop.permute.xlu0 %764
        %766 = vrot.lane.b32.xlu0 %v714, 125
        %v767 = vpop.permute.xlu0 %766
        %768 = vrot.lane.b32.xlu0 %v714, 124
        %v769 = vpop.permute.xlu0 %768
        %770 = vrot.lane.b32.xlu0 %v714, 123
        %v771 = vpop.permute.xlu0 %770
        %772 = vrot.lane.b32.xlu0 %v714, 122
        %v773 = vpop.permute.xlu0 %772
        %774 = vrot.lane.b32.xlu0 %v714, 121
        %v775 = vpop.permute.xlu0 %774
        %776 = vrot.lane.b32.xlu0 %v714, 120
        %v777 = vpop.permute.xlu0 %776
        %778 = vrot.lane.b32.xlu0 %v714, 119
        %v779 = vpop.permute.xlu0 %778
        %780 = vrot.lane.b32.xlu0 %v714, 118
        %v781 = vpop.permute.xlu0 %780
        %782 = vrot.lane.b32.xlu0 %v714, 117
        %v783 = vpop.permute.xlu0 %782
        %784 = vrot.lane.b32.xlu0 %v714, 116
        %v785 = vpop.permute.xlu0 %784
        %786 = vrot.lane.b32.xlu0 %v714, 115
        %v787 = vpop.permute.xlu0 %786
        %788 = vrot.lane.b32.xlu0 %v714, 114
        %v789 = vpop.permute.xlu0 %788
        %790 = vrot.lane.b32.xlu0 %v714, 113
        %v791 = vpop.permute.xlu0 %790
        %792 = vrot.lane.b32.xlu0 %v714, 64
        %v793 = vpop.permute.xlu0 %792
        %794 = vrot.lane.b32.xlu0 %v763, 64
        %v795 = vpop.permute.xlu0 %794
        %796 = vrot.lane.b32.xlu0 %v765, 64
        %v797 = vpop.permute.xlu0 %796
        %798 = vrot.lane.b32.xlu0 %v767, 64
        %v799 = vpop.permute.xlu0 %798
        %800 = vrot.lane.b32.xlu0 %v769, 64
        %v801 = vpop.permute.xlu0 %800
        %802 = vrot.lane.b32.xlu0 %v771, 64
        %v803 = vpop.permute.xlu0 %802
        %804 = vrot.lane.b32.xlu0 %v773, 64
        %v805 = vpop.permute.xlu0 %804
        %806 = vrot.lane.b32.xlu0 %v775, 64
        %v807 = vpop.permute.xlu0 %806
        %808 = vrot.lane.b32.xlu0 %v777, 64
        %v809 = vpop.permute.xlu0 %808
        %810 = vrot.lane.b32.xlu0 %v779, 64
        %v811 = vpop.permute.xlu0 %810
        %812 = vrot.lane.b32.xlu0 %v781, 64
        %v813 = vpop.permute.xlu0 %812
        %814 = vrot.lane.b32.xlu0 %v783, 64
        %v815 = vpop.permute.xlu0 %814
        %816 = vrot.lane.b32.xlu0 %v785, 64
        %v817 = vpop.permute.xlu0 %816
        %818 = vrot.lane.b32.xlu0 %v787, 64
        %v819 = vpop.permute.xlu0 %818
        %820 = vrot.lane.b32.xlu0 %v789, 64
        %v821 = vpop.permute.xlu0 %820
        %822 = vrot.lane.b32.xlu0 %v791, 64
        %v823 = vpop.permute.xlu0 %822
        %v840 = vsel %vm342, %v712, %v793
        %v841 = vsel %vm342, %v717, %v795
        %v842 = vsel %vm342, %v720, %v797
        %v843 = vsel %vm342, %v723, %v799
        %v844 = vsel %vm342, %v726, %v801
        %v845 = vsel %vm342, %v729, %v803
        %v846 = vsel %vm342, %v732, %v805
        %v847 = vsel %vm342, %v735, %v807
        %v848 = vsel %vm342, %v738, %v809
        %v849 = vsel %vm342, %v741, %v811
        %v850 = vsel %vm342, %v744, %v813
        %v851 = vsel %vm342, %v747, %v815
        %v852 = vsel %vm342, %v750, %v817
        %v853 = vsel %vm342, %v753, %v819
        %v854 = vsel %vm342, %v756, %v821
        %v855 = vsel %vm342, %v759, %v823
        %856 = vrot.lane.b32.xlu0 %v712, 112
        %v857 = vpop.permute.xlu0 %856
        %858 = vrot.lane.b32.xlu0 %v717, 112
        %v859 = vpop.permute.xlu0 %858
        %860 = vrot.lane.b32.xlu0 %v720, 112
        %v861 = vpop.permute.xlu0 %860
        %862 = vrot.lane.b32.xlu0 %v723, 112
        %v863 = vpop.permute.xlu0 %862
        %864 = vrot.lane.b32.xlu0 %v726, 112
        %v865 = vpop.permute.xlu0 %864
        %866 = vrot.lane.b32.xlu0 %v729, 112
        %v867 = vpop.permute.xlu0 %866
        %868 = vrot.lane.b32.xlu0 %v732, 112
        %v869 = vpop.permute.xlu0 %868
        %870 = vrot.lane.b32.xlu0 %v735, 112
        %v871 = vpop.permute.xlu0 %870
        %872 = vrot.lane.b32.xlu0 %v738, 112
        %v873 = vpop.permute.xlu0 %872
        %874 = vrot.lane.b32.xlu0 %v741, 112
        %v875 = vpop.permute.xlu0 %874
        %876 = vrot.lane.b32.xlu0 %v744, 112
        %v877 = vpop.permute.xlu0 %876
        %878 = vrot.lane.b32.xlu0 %v747, 112
        %v879 = vpop.permute.xlu0 %878
        %880 = vrot.lane.b32.xlu0 %v750, 112
        %v881 = vpop.permute.xlu0 %880
        %882 = vrot.lane.b32.xlu0 %v753, 112
        %v883 = vpop.permute.xlu0 %882
        %884 = vrot.lane.b32.xlu0 %v756, 112
        %v885 = vpop.permute.xlu0 %884
        %886 = vrot.lane.b32.xlu0 %v759, 112
        %v887 = vpop.permute.xlu0 %886
        %904 = vrot.lane.b32.xlu0 %v714, 48
        %v905 = vpop.permute.xlu0 %904
        %906 = vrot.lane.b32.xlu0 %v763, 48
        %v907 = vpop.permute.xlu0 %906
        %908 = vrot.lane.b32.xlu0 %v765, 48
        %v909 = vpop.permute.xlu0 %908
        %910 = vrot.lane.b32.xlu0 %v767, 48
        %v911 = vpop.permute.xlu0 %910
        %912 = vrot.lane.b32.xlu0 %v769, 48
        %v913 = vpop.permute.xlu0 %912
        %914 = vrot.lane.b32.xlu0 %v771, 48
        %v915 = vpop.permute.xlu0 %914
        %916 = vrot.lane.b32.xlu0 %v773, 48
        %v917 = vpop.permute.xlu0 %916
        %918 = vrot.lane.b32.xlu0 %v775, 48
        %v919 = vpop.permute.xlu0 %918
        %920 = vrot.lane.b32.xlu0 %v777, 48
        %v921 = vpop.permute.xlu0 %920
        %922 = vrot.lane.b32.xlu0 %v779, 48
        %v923 = vpop.permute.xlu0 %922
        %924 = vrot.lane.b32.xlu0 %v781, 48
        %v925 = vpop.permute.xlu0 %924
        %926 = vrot.lane.b32.xlu0 %v783, 48
        %v927 = vpop.permute.xlu0 %926
        %928 = vrot.lane.b32.xlu0 %v785, 48
        %v929 = vpop.permute.xlu0 %928
        %930 = vrot.lane.b32.xlu0 %v787, 48
        %v931 = vpop.permute.xlu0 %930
        %932 = vrot.lane.b32.xlu0 %v789, 48
        %v933 = vpop.permute.xlu0 %932
        %934 = vrot.lane.b32.xlu0 %v791, 48
        %v935 = vpop.permute.xlu0 %934
        %v952 = vsel %vm342, %v857, %v905
        %v953 = vsel %vm342, %v859, %v907
        %v954 = vsel %vm342, %v861, %v909
        %v955 = vsel %vm342, %v863, %v911
        %v956 = vsel %vm342, %v865, %v913
        %v957 = vsel %vm342, %v867, %v915
        %v958 = vsel %vm342, %v869, %v917
        %v959 = vsel %vm342, %v871, %v919
        %v960 = vsel %vm342, %v873, %v921
        %v961 = vsel %vm342, %v875, %v923
        %v962 = vsel %vm342, %v877, %v925
        %v963 = vsel %vm342, %v879, %v927
        %v964 = vsel %vm342, %v881, %v929
        %v965 = vsel %vm342, %v883, %v931
        %v966 = vsel %vm342, %v885, %v933
        %v967 = vsel %vm342, %v887, %v935
        %968 = vmatpush.msra.mxu0 %v967
        %969 = vmatpush.msra.mxu0 %v966
        %970 = vmatpush.msra.mxu0 %v965
        %971 = vmatpush.msra.mxu0 %v964
        %972 = vmatpush.msra.mxu0 %v963
        %973 = vmatpush.msra.mxu0 %v962
        %974 = vmatpush.msra.mxu0 %v961
        %975 = vmatpush.msra.mxu0 %v960
        %976 = vmatpush.msra.mxu0 %v959
        %977 = vmatpush.msra.mxu0 %v958
        %978 = vmatpush.msra.mxu0 %v957
        %979 = vmatpush.msra.mxu0 %v956
        %980 = vmatpush.msra.mxu0 %v955
        %981 = vmatpush.msra.mxu0 %v954
        %982 = vmatpush.msra.mxu0 %v953
        %983 = vmatpush.msra.mxu0 %v952
        %984 = vmatmul.f32.gmra.mxu0 %v699
        %v985 = vpop.f32.mrf.mxu0
        %v986 = vadd.f32 0.0, %v985
        %987 = vdwg.mxu0
        %988 = vmatpush.msra.mxu0 %v855
        %989 = vmatpush.msra.mxu0 %v854
        %990 = vmatpush.msra.mxu0 %v853
        %991 = vmatpush.msra.mxu0 %v852
        %992 = vmatpush.msra.mxu0 %v851
        %993 = vmatpush.msra.mxu0 %v850
        %994 = vmatpush.msra.mxu0 %v849
        %995 = vmatpush.msra.mxu0 %v848
        %996 = vmatpush.msra.mxu0 %v847
        %997 = vmatpush.msra.mxu0 %v846
        %998 = vmatpush.msra.mxu0 %v845
        %999 = vmatpush.msra.mxu0 %v844
        %1000 = vmatpush.msra.mxu0 %v843
        %1001 = vmatpush.msra.mxu0 %v842
        %1002 = vmatpush.msra.mxu0 %v841
        %1003 = vmatpush.msra.mxu0 %v840
        %1004 = vmatmul.f32.gmra.mxu0 %v698
        %v1005 = vpop.f32.mrf.mxu0
        %v1006 = vadd.f32 %v986, %v1005
        %1007 = vdwg.mxu0
        %1008 = vrot.lane.b32.xlu0 %v712, 96
        %v1009 = vpop.permute.xlu0 %1008
        %1010 = vrot.lane.b32.xlu0 %v717, 96
        %v1011 = vpop.permute.xlu0 %1010
        %1012 = vrot.lane.b32.xlu0 %v720, 96
        %v1013 = vpop.permute.xlu0 %1012
        %1014 = vrot.lane.b32.xlu0 %v723, 96
        %v1015 = vpop.permute.xlu0 %1014
        %1016 = vrot.lane.b32.xlu0 %v726, 96
        %v1017 = vpop.permute.xlu0 %1016
        %1018 = vrot.lane.b32.xlu0 %v729, 96
        %v1019 = vpop.permute.xlu0 %1018
        %1020 = vrot.lane.b32.xlu0 %v732, 96
        %v1021 = vpop.permute.xlu0 %1020
        %1022 = vrot.lane.b32.xlu0 %v735, 96
        %v1023 = vpop.permute.xlu0 %1022
        %1024 = vrot.lane.b32.xlu0 %v738, 96
        %v1025 = vpop.permute.xlu0 %1024
        %1026 = vrot.lane.b32.xlu0 %v741, 96
        %v1027 = vpop.permute.xlu0 %1026
        %1028 = vrot.lane.b32.xlu0 %v744, 96
        %v1029 = vpop.permute.xlu0 %1028
        %1030 = vrot.lane.b32.xlu0 %v747, 96
        %v1031 = vpop.permute.xlu0 %1030
        %1032 = vrot.lane.b32.xlu0 %v750, 96
        %v1033 = vpop.permute.xlu0 %1032
        %1034 = vrot.lane.b32.xlu0 %v753, 96
        %v1035 = vpop.permute.xlu0 %1034
        %1036 = vrot.lane.b32.xlu0 %v756, 96
        %v1037 = vpop.permute.xlu0 %1036
        %1038 = vrot.lane.b32.xlu0 %v759, 96
        %v1039 = vpop.permute.xlu0 %1038
        %1056 = vrot.lane.b32.xlu0 %v714, 32
        %v1057 = vpop.permute.xlu0 %1056
        %1058 = vrot.lane.b32.xlu0 %v763, 32
        %v1059 = vpop.permute.xlu0 %1058
        %1060 = vrot.lane.b32.xlu0 %v765, 32
        %v1061 = vpop.permute.xlu0 %1060
        %1062 = vrot.lane.b32.xlu0 %v767, 32
        %v1063 = vpop.permute.xlu0 %1062
        %1064 = vrot.lane.b32.xlu0 %v769, 32
        %v1065 = vpop.permute.xlu0 %1064
        %1066 = vrot.lane.b32.xlu0 %v771, 32
        %v1067 = vpop.permute.xlu0 %1066
        %1068 = vrot.lane.b32.xlu0 %v773, 32
        %v1069 = vpop.permute.xlu0 %1068
        %1070 = vrot.lane.b32.xlu0 %v775, 32
        %v1071 = vpop.permute.xlu0 %1070
        %1072 = vrot.lane.b32.xlu0 %v777, 32
        %v1073 = vpop.permute.xlu0 %1072
        %1074 = vrot.lane.b32.xlu0 %v779, 32
        %v1075 = vpop.permute.xlu0 %1074
        %1076 = vrot.lane.b32.xlu0 %v781, 32
        %v1077 = vpop.permute.xlu0 %1076
        %1078 = vrot.lane.b32.xlu0 %v783, 32
        %v1079 = vpop.permute.xlu0 %1078
        %1080 = vrot.lane.b32.xlu0 %v785, 32
        %v1081 = vpop.permute.xlu0 %1080
        %1082 = vrot.lane.b32.xlu0 %v787, 32
        %v1083 = vpop.permute.xlu0 %1082
        %1084 = vrot.lane.b32.xlu0 %v789, 32
        %v1085 = vpop.permute.xlu0 %1084
        %1086 = vrot.lane.b32.xlu0 %v791, 32
        %v1087 = vpop.permute.xlu0 %1086
        %v1104 = vsel %vm342, %v1009, %v1057
        %v1105 = vsel %vm342, %v1011, %v1059
        %v1106 = vsel %vm342, %v1013, %v1061
        %v1107 = vsel %vm342, %v1015, %v1063
        %v1108 = vsel %vm342, %v1017, %v1065
        %v1109 = vsel %vm342, %v1019, %v1067
        %v1110 = vsel %vm342, %v1021, %v1069
        %v1111 = vsel %vm342, %v1023, %v1071
        %v1112 = vsel %vm342, %v1025, %v1073
        %v1113 = vsel %vm342, %v1027, %v1075
        %v1114 = vsel %vm342, %v1029, %v1077
        %v1115 = vsel %vm342, %v1031, %v1079
        %v1116 = vsel %vm342, %v1033, %v1081
        %v1117 = vsel %vm342, %v1035, %v1083
        %v1118 = vsel %vm342, %v1037, %v1085
        %v1119 = vsel %vm342, %v1039, %v1087
        %1120 = vmatpush.msra.mxu0 %v1119
        %1121 = vmatpush.msra.mxu0 %v1118
        %1122 = vmatpush.msra.mxu0 %v1117
        %1123 = vmatpush.msra.mxu0 %v1116
        %1124 = vmatpush.msra.mxu0 %v1115
        %1125 = vmatpush.msra.mxu0 %v1114
        %1126 = vmatpush.msra.mxu0 %v1113
        %1127 = vmatpush.msra.mxu0 %v1112
        %1128 = vmatpush.msra.mxu0 %v1111
        %1129 = vmatpush.msra.mxu0 %v1110
        %1130 = vmatpush.msra.mxu0 %v1109
        %1131 = vmatpush.msra.mxu0 %v1108
        %1132 = vmatpush.msra.mxu0 %v1107
        %1133 = vmatpush.msra.mxu0 %v1106
        %1134 = vmatpush.msra.mxu0 %v1105
        %1135 = vmatpush.msra.mxu0 %v1104
        %1136 = vmatmul.f32.gmra.mxu0 %v700
        %v1137 = vpop.f32.mrf.mxu0
        %v1138 = vadd.f32 0.0, %v1137
        %1139 = vdwg.mxu0
        %v1140 = vadd.f32 %v1006, %v1138
        %1141 = vrot.lane.b32.xlu0 %v712, 80
        %v1142 = vpop.permute.xlu0 %1141
        %1143 = vrot.lane.b32.xlu0 %v717, 80
        %v1144 = vpop.permute.xlu0 %1143
        %1145 = vrot.lane.b32.xlu0 %v720, 80
        %v1146 = vpop.permute.xlu0 %1145
        %1150 = vrot.lane.b32.xlu0 %v714, 16
        %v1151 = vpop.permute.xlu0 %1150
        %1152 = vrot.lane.b32.xlu0 %v763, 16
        %v1153 = vpop.permute.xlu0 %1152
        %1154 = vrot.lane.b32.xlu0 %v765, 16
        %v1155 = vpop.permute.xlu0 %1154
        %v1159 = vsel %vm342, %v1142, %v1151
        %v1160 = vsel %vm342, %v1144, %v1153
        %v1161 = vsel %vm342, %v1146, %v1155
        %v1163 = vsel %vm665, %v701, 0
        %1165 = vmatpush.msra.mxu0 0.0
        %1166 = vmatpush.msra.mxu0 0.0
        %1167 = vmatpush.msra.mxu0 0.0
        %1168 = vmatpush.msra.mxu0 0.0
        %1169 = vmatpush.msra.mxu0 0.0
        %1170 = vmatpush.msra.mxu0 0.0
        %1171 = vmatpush.msra.mxu0 0.0
        %1172 = vmatpush.msra.mxu0 0.0
        %1173 = vmatpush.msra.mxu0 0.0
        %1174 = vmatpush.msra.mxu0 0.0
        %1175 = vmatpush.msra.mxu0 0.0
        %1176 = vmatpush.msra.mxu0 0.0
        %1177 = vmatpush.msra.mxu0 0.0
        %1178 = vmatpush.msra.mxu0 %v1161
        %1179 = vmatpush.msra.mxu0 %v1160
        %1180 = vmatpush.msra.mxu0 %v1159
        %1181 = vmatmul.f32.gmra.mxu0 %v1163
        %v1182 = vpop.f32.mrf.mxu0
        %v1183 = vadd.f32 0.0, %v1182
        %1184 = vdwg.mxu0
        %v1185 = vadd.f32 %v1140, %v1183
        %1187 = vset.pattern.permute.xlu0 0
        %1188 = vperm.xlu0 %1187, %v703
        %v1189 = vpop.permute.xlu0 %1188
        %v1191 = vadd.f32 %v1185, %v1189
        %v1192 = vmax.f32 %v1191, 0.0
        %s1193 = scalar_lea.vmem [#allocation2], 64
        %v1194 = vld [vmem:[%s1193] sm:$0xff]
        %v1195 = vld [vmem:[%s1193 + $0x8] sm:$0xff]
        %v1196 = vld [vmem:[%s1193 + $0x10] sm:$0xff]
        %v1197 = vld [vmem:[%s1193 + $0x18] sm:$0xff]
        %s1198 = scalar_lea.vmem %s2, 16
        %v1199 = vld [vmem:[%s1198] sm:$0xff]
        %1201 = vrot.lane.b32.xlu0 %v1192, 89
        %v1202 = vpop.permute.xlu0 %1201
        %1204 = vrot.lane.b32.xlu0 %v1192, 25
        %v1205 = vpop.permute.xlu0 %1204
        %v1207 = vsel %vm204, %v1202, %v1205
        %v1208 = vsel %vm206, %v1207, %v1202
        %v1209 = vsel %vm204, %v1205, %v1202
        %v1210 = vsel %vm206, %v1209, %v1205
        %1212 = vrot.lane.b32.xlu0 %v1208, 127
        %v1213 = vpop.permute.xlu0 %1212
        %1215 = vrot.lane.b32.xlu0 %v1208, 126
        %v1216 = vpop.permute.xlu0 %1215
        %1218 = vrot.lane.b32.xlu0 %v1208, 125
        %v1219 = vpop.permute.xlu0 %1218
        %1221 = vrot.lane.b32.xlu0 %v1208, 124
        %v1222 = vpop.permute.xlu0 %1221
        %1224 = vrot.lane.b32.xlu0 %v1208, 123
        %v1225 = vpop.permute.xlu0 %1224
        %1227 = vrot.lane.b32.xlu0 %v1208, 122
        %v1228 = vpop.permute.xlu0 %1227
        %1230 = vrot.lane.b32.xlu0 %v1208, 121
        %v1231 = vpop.permute.xlu0 %1230
        %1233 = vrot.lane.b32.xlu0 %v1208, 120
        %v1234 = vpop.permute.xlu0 %1233
        %1236 = vrot.lane.b32.xlu0 %v1208, 119
        %v1237 = vpop.permute.xlu0 %1236
        %1239 = vrot.lane.b32.xlu0 %v1208, 118
        %v1240 = vpop.permute.xlu0 %1239
        %1242 = vrot.lane.b32.xlu0 %v1208, 117
        %v1243 = vpop.permute.xlu0 %1242
        %1245 = vrot.lane.b32.xlu0 %v1208, 116
        %v1246 = vpop.permute.xlu0 %1245
        %1248 = vrot.lane.b32.xlu0 %v1208, 115
        %v1249 = vpop.permute.xlu0 %1248
        %1251 = vrot.lane.b32.xlu0 %v1208, 114
        %v1252 = vpop.permute.xlu0 %1251
        %1254 = vrot.lane.b32.xlu0 %v1208, 113
        %v1255 = vpop.permute.xlu0 %1254
        %1258 = vrot.lane.b32.xlu0 %v1210, 127
        %v1259 = vpop.permute.xlu0 %1258
        %1260 = vrot.lane.b32.xlu0 %v1210, 126
        %v1261 = vpop.permute.xlu0 %1260
        %1262 = vrot.lane.b32.xlu0 %v1210, 125
        %v1263 = vpop.permute.xlu0 %1262
        %1264 = vrot.lane.b32.xlu0 %v1210, 124
        %v1265 = vpop.permute.xlu0 %1264
        %1266 = vrot.lane.b32.xlu0 %v1210, 123
        %v1267 = vpop.permute.xlu0 %1266
        %1268 = vrot.lane.b32.xlu0 %v1210, 122
        %v1269 = vpop.permute.xlu0 %1268
        %1270 = vrot.lane.b32.xlu0 %v1210, 121
        %v1271 = vpop.permute.xlu0 %1270
        %1272 = vrot.lane.b32.xlu0 %v1210, 120
        %v1273 = vpop.permute.xlu0 %1272
        %1274 = vrot.lane.b32.xlu0 %v1210, 119
        %v1275 = vpop.permute.xlu0 %1274
        %1276 = vrot.lane.b32.xlu0 %v1210, 118
        %v1277 = vpop.permute.xlu0 %1276
        %1278 = vrot.lane.b32.xlu0 %v1210, 117
        %v1279 = vpop.permute.xlu0 %1278
        %1280 = vrot.lane.b32.xlu0 %v1210, 116
        %v1281 = vpop.permute.xlu0 %1280
        %1282 = vrot.lane.b32.xlu0 %v1210, 115
        %v1283 = vpop.permute.xlu0 %1282
        %1284 = vrot.lane.b32.xlu0 %v1210, 114
        %v1285 = vpop.permute.xlu0 %1284
        %1286 = vrot.lane.b32.xlu0 %v1210, 113
        %v1287 = vpop.permute.xlu0 %1286
        %1288 = vrot.lane.b32.xlu0 %v1210, 64
        %v1289 = vpop.permute.xlu0 %1288
        %1290 = vrot.lane.b32.xlu0 %v1259, 64
        %v1291 = vpop.permute.xlu0 %1290
        %1292 = vrot.lane.b32.xlu0 %v1261, 64
        %v1293 = vpop.permute.xlu0 %1292
        %1294 = vrot.lane.b32.xlu0 %v1263, 64
        %v1295 = vpop.permute.xlu0 %1294
        %1296 = vrot.lane.b32.xlu0 %v1265, 64
        %v1297 = vpop.permute.xlu0 %1296
        %1298 = vrot.lane.b32.xlu0 %v1267, 64
        %v1299 = vpop.permute.xlu0 %1298
        %1300 = vrot.lane.b32.xlu0 %v1269, 64
        %v1301 = vpop.permute.xlu0 %1300
        %1302 = vrot.lane.b32.xlu0 %v1271, 64
        %v1303 = vpop.permute.xlu0 %1302
        %1304 = vrot.lane.b32.xlu0 %v1273, 64
        %v1305 = vpop.permute.xlu0 %1304
        %1306 = vrot.lane.b32.xlu0 %v1275, 64
        %v1307 = vpop.permute.xlu0 %1306
        %1308 = vrot.lane.b32.xlu0 %v1277, 64
        %v1309 = vpop.permute.xlu0 %1308
        %1310 = vrot.lane.b32.xlu0 %v1279, 64
        %v1311 = vpop.permute.xlu0 %1310
        %1312 = vrot.lane.b32.xlu0 %v1281, 64
        %v1313 = vpop.permute.xlu0 %1312
        %1314 = vrot.lane.b32.xlu0 %v1283, 64
        %v1315 = vpop.permute.xlu0 %1314
        %1316 = vrot.lane.b32.xlu0 %v1285, 64
        %v1317 = vpop.permute.xlu0 %1316
        %1318 = vrot.lane.b32.xlu0 %v1287, 64
        %v1319 = vpop.permute.xlu0 %1318
        %v1336 = vsel %vm342, %v1208, %v1289
        %v1337 = vsel %vm342, %v1213, %v1291
        %v1338 = vsel %vm342, %v1216, %v1293
        %v1339 = vsel %vm342, %v1219, %v1295
        %v1340 = vsel %vm342, %v1222, %v1297
        %v1341 = vsel %vm342, %v1225, %v1299
        %v1342 = vsel %vm342, %v1228, %v1301
        %v1343 = vsel %vm342, %v1231, %v1303
        %v1344 = vsel %vm342, %v1234, %v1305
        %v1345 = vsel %vm342, %v1237, %v1307
        %v1346 = vsel %vm342, %v1240, %v1309
        %v1347 = vsel %vm342, %v1243, %v1311
        %v1348 = vsel %vm342, %v1246, %v1313
        %v1349 = vsel %vm342, %v1249, %v1315
        %v1350 = vsel %vm342, %v1252, %v1317
        %v1351 = vsel %vm342, %v1255, %v1319
        %1352 = vrot.lane.b32.xlu0 %v1208, 112
        %v1353 = vpop.permute.xlu0 %1352
        %1354 = vrot.lane.b32.xlu0 %v1213, 112
        %v1355 = vpop.permute.xlu0 %1354
        %1356 = vrot.lane.b32.xlu0 %v1216, 112
        %v1357 = vpop.permute.xlu0 %1356
        %1358 = vrot.lane.b32.xlu0 %v1219, 112
        %v1359 = vpop.permute.xlu0 %1358
        %1360 = vrot.lane.b32.xlu0 %v1222, 112
        %v1361 = vpop.permute.xlu0 %1360
        %1362 = vrot.lane.b32.xlu0 %v1225, 112
        %v1363 = vpop.permute.xlu0 %1362
        %1364 = vrot.lane.b32.xlu0 %v1228, 112
        %v1365 = vpop.permute.xlu0 %1364
        %1366 = vrot.lane.b32.xlu0 %v1231, 112
        %v1367 = vpop.permute.xlu0 %1366
        %1368 = vrot.lane.b32.xlu0 %v1234, 112
        %v1369 = vpop.permute.xlu0 %1368
        %1370 = vrot.lane.b32.xlu0 %v1237, 112
        %v1371 = vpop.permute.xlu0 %1370
        %1372 = vrot.lane.b32.xlu0 %v1240, 112
        %v1373 = vpop.permute.xlu0 %1372
        %1374 = vrot.lane.b32.xlu0 %v1243, 112
        %v1375 = vpop.permute.xlu0 %1374
        %1376 = vrot.lane.b32.xlu0 %v1246, 112
        %v1377 = vpop.permute.xlu0 %1376
        %1378 = vrot.lane.b32.xlu0 %v1249, 112
        %v1379 = vpop.permute.xlu0 %1378
        %1380 = vrot.lane.b32.xlu0 %v1252, 112
        %v1381 = vpop.permute.xlu0 %1380
        %1382 = vrot.lane.b32.xlu0 %v1255, 112
        %v1383 = vpop.permute.xlu0 %1382
        %1400 = vrot.lane.b32.xlu0 %v1210, 48
        %v1401 = vpop.permute.xlu0 %1400
        %1402 = vrot.lane.b32.xlu0 %v1259, 48
        %v1403 = vpop.permute.xlu0 %1402
        %1404 = vrot.lane.b32.xlu0 %v1261, 48
        %v1405 = vpop.permute.xlu0 %1404
        %1406 = vrot.lane.b32.xlu0 %v1263, 48
        %v1407 = vpop.permute.xlu0 %1406
        %1408 = vrot.lane.b32.xlu0 %v1265, 48
        %v1409 = vpop.permute.xlu0 %1408
        %1410 = vrot.lane.b32.xlu0 %v1267, 48
        %v1411 = vpop.permute.xlu0 %1410
        %1412 = vrot.lane.b32.xlu0 %v1269, 48
        %v1413 = vpop.permute.xlu0 %1412
        %1414 = vrot.lane.b32.xlu0 %v1271, 48
        %v1415 = vpop.permute.xlu0 %1414
        %1416 = vrot.lane.b32.xlu0 %v1273, 48
        %v1417 = vpop.permute.xlu0 %1416
        %1418 = vrot.lane.b32.xlu0 %v1275, 48
        %v1419 = vpop.permute.xlu0 %1418
        %1420 = vrot.lane.b32.xlu0 %v1277, 48
        %v1421 = vpop.permute.xlu0 %1420
        %1422 = vrot.lane.b32.xlu0 %v1279, 48
        %v1423 = vpop.permute.xlu0 %1422
        %1424 = vrot.lane.b32.xlu0 %v1281, 48
        %v1425 = vpop.permute.xlu0 %1424
        %1426 = vrot.lane.b32.xlu0 %v1283, 48
        %v1427 = vpop.permute.xlu0 %1426
        %1428 = vrot.lane.b32.xlu0 %v1285, 48
        %v1429 = vpop.permute.xlu0 %1428
        %1430 = vrot.lane.b32.xlu0 %v1287, 48
        %v1431 = vpop.permute.xlu0 %1430
        %v1448 = vsel %vm342, %v1353, %v1401
        %v1449 = vsel %vm342, %v1355, %v1403
        %v1450 = vsel %vm342, %v1357, %v1405
        %v1451 = vsel %vm342, %v1359, %v1407
        %v1452 = vsel %vm342, %v1361, %v1409
        %v1453 = vsel %vm342, %v1363, %v1411
        %v1454 = vsel %vm342, %v1365, %v1413
        %v1455 = vsel %vm342, %v1367, %v1415
        %v1456 = vsel %vm342, %v1369, %v1417
        %v1457 = vsel %vm342, %v1371, %v1419
        %v1458 = vsel %vm342, %v1373, %v1421
        %v1459 = vsel %vm342, %v1375, %v1423
        %v1460 = vsel %vm342, %v1377, %v1425
        %v1461 = vsel %vm342, %v1379, %v1427
        %v1462 = vsel %vm342, %v1381, %v1429
        %v1463 = vsel %vm342, %v1383, %v1431
        %1464 = vmatpush.msra.mxu0 %v1463
        %1465 = vmatpush.msra.mxu0 %v1462
        %1466 = vmatpush.msra.mxu0 %v1461
        %1467 = vmatpush.msra.mxu0 %v1460
        %1468 = vmatpush.msra.mxu0 %v1459
        %1469 = vmatpush.msra.mxu0 %v1458
        %1470 = vmatpush.msra.mxu0 %v1457
        %1471 = vmatpush.msra.mxu0 %v1456
        %1472 = vmatpush.msra.mxu0 %v1455
        %1473 = vmatpush.msra.mxu0 %v1454
        %1474 = vmatpush.msra.mxu0 %v1453
        %1475 = vmatpush.msra.mxu0 %v1452
        %1476 = vmatpush.msra.mxu0 %v1451
        %1477 = vmatpush.msra.mxu0 %v1450
        %1478 = vmatpush.msra.mxu0 %v1449
        %1479 = vmatpush.msra.mxu0 %v1448
        %1480 = vmatmul.f32.gmra.mxu0 %v1195
        %v1481 = vpop.f32.mrf.mxu0
        %v1482 = vadd.f32 0.0, %v1481
        %1483 = vdwg.mxu0
        %1484 = vmatpush.msra.mxu0 %v1351
        %1485 = vmatpush.msra.mxu0 %v1350
        %1486 = vmatpush.msra.mxu0 %v1349
        %1487 = vmatpush.msra.mxu0 %v1348
        %1488 = vmatpush.msra.mxu0 %v1347
        %1489 = vmatpush.msra.mxu0 %v1346
        %1490 = vmatpush.msra.mxu0 %v1345
        %1491 = vmatpush.msra.mxu0 %v1344
        %1492 = vmatpush.msra.mxu0 %v1343
        %1493 = vmatpush.msra.mxu0 %v1342
        %1494 = vmatpush.msra.mxu0 %v1341
        %1495 = vmatpush.msra.mxu0 %v1340
        %1496 = vmatpush.msra.mxu0 %v1339
        %1497 = vmatpush.msra.mxu0 %v1338
        %1498 = vmatpush.msra.mxu0 %v1337
        %1499 = vmatpush.msra.mxu0 %v1336
        %1500 = vmatmul.f32.gmra.mxu0 %v1194
        %v1501 = vpop.f32.mrf.mxu0
        %v1502 = vadd.f32 %v1482, %v1501
        %1503 = vdwg.mxu0
        %1504 = vrot.lane.b32.xlu0 %v1208, 96
        %v1505 = vpop.permute.xlu0 %1504
        %1506 = vrot.lane.b32.xlu0 %v1213, 96
        %v1507 = vpop.permute.xlu0 %1506
        %1508 = vrot.lane.b32.xlu0 %v1216, 96
        %v1509 = vpop.permute.xlu0 %1508
        %1510 = vrot.lane.b32.xlu0 %v1219, 96
        %v1511 = vpop.permute.xlu0 %1510
        %1512 = vrot.lane.b32.xlu0 %v1222, 96
        %v1513 = vpop.permute.xlu0 %1512
        %1514 = vrot.lane.b32.xlu0 %v1225, 96
        %v1515 = vpop.permute.xlu0 %1514
        %1516 = vrot.lane.b32.xlu0 %v1228, 96
        %v1517 = vpop.permute.xlu0 %1516
        %1518 = vrot.lane.b32.xlu0 %v1231, 96
        %v1519 = vpop.permute.xlu0 %1518
        %1520 = vrot.lane.b32.xlu0 %v1234, 96
        %v1521 = vpop.permute.xlu0 %1520
        %1522 = vrot.lane.b32.xlu0 %v1237, 96
        %v1523 = vpop.permute.xlu0 %1522
        %1524 = vrot.lane.b32.xlu0 %v1240, 96
        %v1525 = vpop.permute.xlu0 %1524
        %1526 = vrot.lane.b32.xlu0 %v1243, 96
        %v1527 = vpop.permute.xlu0 %1526
        %1528 = vrot.lane.b32.xlu0 %v1246, 96
        %v1529 = vpop.permute.xlu0 %1528
        %1530 = vrot.lane.b32.xlu0 %v1249, 96
        %v1531 = vpop.permute.xlu0 %1530
        %1532 = vrot.lane.b32.xlu0 %v1252, 96
        %v1533 = vpop.permute.xlu0 %1532
        %1534 = vrot.lane.b32.xlu0 %v1255, 96
        %v1535 = vpop.permute.xlu0 %1534
        %1552 = vrot.lane.b32.xlu0 %v1210, 32
        %v1553 = vpop.permute.xlu0 %1552
        %1554 = vrot.lane.b32.xlu0 %v1259, 32
        %v1555 = vpop.permute.xlu0 %1554
        %1556 = vrot.lane.b32.xlu0 %v1261, 32
        %v1557 = vpop.permute.xlu0 %1556
        %1558 = vrot.lane.b32.xlu0 %v1263, 32
        %v1559 = vpop.permute.xlu0 %1558
        %1560 = vrot.lane.b32.xlu0 %v1265, 32
        %v1561 = vpop.permute.xlu0 %1560
        %1562 = vrot.lane.b32.xlu0 %v1267, 32
        %v1563 = vpop.permute.xlu0 %1562
        %1564 = vrot.lane.b32.xlu0 %v1269, 32
        %v1565 = vpop.permute.xlu0 %1564
        %1566 = vrot.lane.b32.xlu0 %v1271, 32
        %v1567 = vpop.permute.xlu0 %1566
        %1568 = vrot.lane.b32.xlu0 %v1273, 32
        %v1569 = vpop.permute.xlu0 %1568
        %1570 = vrot.lane.b32.xlu0 %v1275, 32
        %v1571 = vpop.permute.xlu0 %1570
        %1572 = vrot.lane.b32.xlu0 %v1277, 32
        %v1573 = vpop.permute.xlu0 %1572
        %1574 = vrot.lane.b32.xlu0 %v1279, 32
        %v1575 = vpop.permute.xlu0 %1574
        %1576 = vrot.lane.b32.xlu0 %v1281, 32
        %v1577 = vpop.permute.xlu0 %1576
        %1578 = vrot.lane.b32.xlu0 %v1283, 32
        %v1579 = vpop.permute.xlu0 %1578
        %1580 = vrot.lane.b32.xlu0 %v1285, 32
        %v1581 = vpop.permute.xlu0 %1580
        %1582 = vrot.lane.b32.xlu0 %v1287, 32
        %v1583 = vpop.permute.xlu0 %1582
        %v1600 = vsel %vm342, %v1505, %v1553
        %v1601 = vsel %vm342, %v1507, %v1555
        %v1602 = vsel %vm342, %v1509, %v1557
        %v1603 = vsel %vm342, %v1511, %v1559
        %v1604 = vsel %vm342, %v1513, %v1561
        %v1605 = vsel %vm342, %v1515, %v1563
        %v1606 = vsel %vm342, %v1517, %v1565
        %v1607 = vsel %vm342, %v1519, %v1567
        %v1608 = vsel %vm342, %v1521, %v1569
        %v1609 = vsel %vm342, %v1523, %v1571
        %v1610 = vsel %vm342, %v1525, %v1573
        %v1611 = vsel %vm342, %v1527, %v1575
        %v1612 = vsel %vm342, %v1529, %v1577
        %v1613 = vsel %vm342, %v1531, %v1579
        %v1614 = vsel %vm342, %v1533, %v1581
        %v1615 = vsel %vm342, %v1535, %v1583
        %1616 = vmatpush.msra.mxu0 %v1615
        %1617 = vmatpush.msra.mxu0 %v1614
        %1618 = vmatpush.msra.mxu0 %v1613
        %1619 = vmatpush.msra.mxu0 %v1612
        %1620 = vmatpush.msra.mxu0 %v1611
        %1621 = vmatpush.msra.mxu0 %v1610
        %1622 = vmatpush.msra.mxu0 %v1609
        %1623 = vmatpush.msra.mxu0 %v1608
        %1624 = vmatpush.msra.mxu0 %v1607
        %1625 = vmatpush.msra.mxu0 %v1606
        %1626 = vmatpush.msra.mxu0 %v1605
        %1627 = vmatpush.msra.mxu0 %v1604
        %1628 = vmatpush.msra.mxu0 %v1603
        %1629 = vmatpush.msra.mxu0 %v1602
        %1630 = vmatpush.msra.mxu0 %v1601
        %1631 = vmatpush.msra.mxu0 %v1600
        %1632 = vmatmul.f32.gmra.mxu0 %v1196
        %v1633 = vpop.f32.mrf.mxu0
        %v1634 = vadd.f32 0.0, %v1633
        %1635 = vdwg.mxu0
        %v1636 = vadd.f32 %v1502, %v1634
        %1637 = vrot.lane.b32.xlu0 %v1208, 80
        %v1638 = vpop.permute.xlu0 %1637
        %1639 = vrot.lane.b32.xlu0 %v1213, 80
        %v1640 = vpop.permute.xlu0 %1639
        %1641 = vrot.lane.b32.xlu0 %v1216, 80
        %v1642 = vpop.permute.xlu0 %1641
        %1646 = vrot.lane.b32.xlu0 %v1210, 16
        %v1647 = vpop.permute.xlu0 %1646
        %1648 = vrot.lane.b32.xlu0 %v1259, 16
        %v1649 = vpop.permute.xlu0 %1648
        %1650 = vrot.lane.b32.xlu0 %v1261, 16
        %v1651 = vpop.permute.xlu0 %1650
        %v1655 = vsel %vm342, %v1638, %v1647
        %v1656 = vsel %vm342, %v1640, %v1649
        %v1657 = vsel %vm342, %v1642, %v1651
        %v1659 = vsel %vm665, %v1197, 0
        %1661 = vmatpush.msra.mxu0 0.0
        %1662 = vmatpush.msra.mxu0 0.0
        %1663 = vmatpush.msra.mxu0 0.0
        %1664 = vmatpush.msra.mxu0 0.0
        %1665 = vmatpush.msra.mxu0 0.0
        %1666 = vmatpush.msra.mxu0 0.0
        %1667 = vmatpush.msra.mxu0 0.0
        %1668 = vmatpush.msra.mxu0 0.0
        %1669 = vmatpush.msra.mxu0 0.0
        %1670 = vmatpush.msra.mxu0 0.0
        %1671 = vmatpush.msra.mxu0 0.0
        %1672 = vmatpush.msra.mxu0 0.0
        %1673 = vmatpush.msra.mxu0 0.0
        %1674 = vmatpush.msra.mxu0 %v1657
        %1675 = vmatpush.msra.mxu0 %v1656
        %1676 = vmatpush.msra.mxu0 %v1655
        %1677 = vmatmul.f32.gmra.mxu0 %v1659
        %v1678 = vpop.f32.mrf.mxu0
        %v1679 = vadd.f32 0.0, %v1678
        %1680 = vdwg.mxu0
        %v1681 = vadd.f32 %v1636, %v1679
        %1683 = vset.pattern.permute.xlu0 0
        %1684 = vperm.xlu0 %1683, %v1199
        %v1685 = vpop.permute.xlu0 %1684
        %v1687 = vadd.f32 %v1681, %v1685
        %v1688 = vmax.f32 %v1687, 0.0
        %s1689 = scalar_lea.vmem [#allocation2], 96
        %v1690 = vld [vmem:[%s1689] sm:$0xff]
        %v1691 = vld [vmem:[%s1689 + $0x8] sm:$0xff]
        %v1692 = vld [vmem:[%s1689 + $0x10] sm:$0xff]
        %v1693 = vld [vmem:[%s1689 + $0x18] sm:$0xff]
        %s1694 = scalar_lea.vmem %s2, 24
        %v1695 = vld [vmem:[%s1694] sm:$0xff]
        %1697 = vrot.lane.b32.xlu0 %v1688, 89
        %v1698 = vpop.permute.xlu0 %1697
        %1700 = vrot.lane.b32.xlu0 %v1688, 25
        %v1701 = vpop.permute.xlu0 %1700
        %v1703 = vsel %vm204, %v1698, %v1701
        %v1704 = vsel %vm206, %v1703, %v1698
        %v1705 = vsel %vm204, %v1701, %v1698
        %v1706 = vsel %vm206, %v1705, %v1701
        %1708 = vrot.lane.b32.xlu0 %v1704, 127
        %v1709 = vpop.permute.xlu0 %1708
        %1711 = vrot.lane.b32.xlu0 %v1704, 126
        %v1712 = vpop.permute.xlu0 %1711
        %1714 = vrot.lane.b32.xlu0 %v1704, 125
        %v1715 = vpop.permute.xlu0 %1714
        %1717 = vrot.lane.b32.xlu0 %v1704, 124
        %v1718 = vpop.permute.xlu0 %1717
        %1720 = vrot.lane.b32.xlu0 %v1704, 123
        %v1721 = vpop.permute.xlu0 %1720
        %1723 = vrot.lane.b32.xlu0 %v1704, 122
        %v1724 = vpop.permute.xlu0 %1723
        %1726 = vrot.lane.b32.xlu0 %v1704, 121
        %v1727 = vpop.permute.xlu0 %1726
        %1729 = vrot.lane.b32.xlu0 %v1704, 120
        %v1730 = vpop.permute.xlu0 %1729
        %1732 = vrot.lane.b32.xlu0 %v1704, 119
        %v1733 = vpop.permute.xlu0 %1732
        %1735 = vrot.lane.b32.xlu0 %v1704, 118
        %v1736 = vpop.permute.xlu0 %1735
        %1738 = vrot.lane.b32.xlu0 %v1704, 117
        %v1739 = vpop.permute.xlu0 %1738
        %1741 = vrot.lane.b32.xlu0 %v1704, 116
        %v1742 = vpop.permute.xlu0 %1741
        %1744 = vrot.lane.b32.xlu0 %v1704, 115
        %v1745 = vpop.permute.xlu0 %1744
        %1747 = vrot.lane.b32.xlu0 %v1704, 114
        %v1748 = vpop.permute.xlu0 %1747
        %1750 = vrot.lane.b32.xlu0 %v1704, 113
        %v1751 = vpop.permute.xlu0 %1750
        %1754 = vrot.lane.b32.xlu0 %v1706, 127
        %v1755 = vpop.permute.xlu0 %1754
        %1756 = vrot.lane.b32.xlu0 %v1706, 126
        %v1757 = vpop.permute.xlu0 %1756
        %1758 = vrot.lane.b32.xlu0 %v1706, 125
        %v1759 = vpop.permute.xlu0 %1758
        %1760 = vrot.lane.b32.xlu0 %v1706, 124
        %v1761 = vpop.permute.xlu0 %1760
        %1762 = vrot.lane.b32.xlu0 %v1706, 123
        %v1763 = vpop.permute.xlu0 %1762
        %1764 = vrot.lane.b32.xlu0 %v1706, 122
        %v1765 = vpop.permute.xlu0 %1764
        %1766 = vrot.lane.b32.xlu0 %v1706, 121
        %v1767 = vpop.permute.xlu0 %1766
        %1768 = vrot.lane.b32.xlu0 %v1706, 120
        %v1769 = vpop.permute.xlu0 %1768
        %1770 = vrot.lane.b32.xlu0 %v1706, 119
        %v1771 = vpop.permute.xlu0 %1770
        %1772 = vrot.lane.b32.xlu0 %v1706, 118
        %v1773 = vpop.permute.xlu0 %1772
        %1774 = vrot.lane.b32.xlu0 %v1706, 117
        %v1775 = vpop.permute.xlu0 %1774
        %1776 = vrot.lane.b32.xlu0 %v1706, 116
        %v1777 = vpop.permute.xlu0 %1776
        %1778 = vrot.lane.b32.xlu0 %v1706, 115
        %v1779 = vpop.permute.xlu0 %1778
        %1780 = vrot.lane.b32.xlu0 %v1706, 114
        %v1781 = vpop.permute.xlu0 %1780
        %1782 = vrot.lane.b32.xlu0 %v1706, 113
        %v1783 = vpop.permute.xlu0 %1782
        %1784 = vrot.lane.b32.xlu0 %v1706, 64
        %v1785 = vpop.permute.xlu0 %1784
        %1786 = vrot.lane.b32.xlu0 %v1755, 64
        %v1787 = vpop.permute.xlu0 %1786
        %1788 = vrot.lane.b32.xlu0 %v1757, 64
        %v1789 = vpop.permute.xlu0 %1788
        %1790 = vrot.lane.b32.xlu0 %v1759, 64
        %v1791 = vpop.permute.xlu0 %1790
        %1792 = vrot.lane.b32.xlu0 %v1761, 64
        %v1793 = vpop.permute.xlu0 %1792
        %1794 = vrot.lane.b32.xlu0 %v1763, 64
        %v1795 = vpop.permute.xlu0 %1794
        %1796 = vrot.lane.b32.xlu0 %v1765, 64
        %v1797 = vpop.permute.xlu0 %1796
        %1798 = vrot.lane.b32.xlu0 %v1767, 64
        %v1799 = vpop.permute.xlu0 %1798
        %1800 = vrot.lane.b32.xlu0 %v1769, 64
        %v1801 = vpop.permute.xlu0 %1800
        %1802 = vrot.lane.b32.xlu0 %v1771, 64
        %v1803 = vpop.permute.xlu0 %1802
        %1804 = vrot.lane.b32.xlu0 %v1773, 64
        %v1805 = vpop.permute.xlu0 %1804
        %1806 = vrot.lane.b32.xlu0 %v1775, 64
        %v1807 = vpop.permute.xlu0 %1806
        %1808 = vrot.lane.b32.xlu0 %v1777, 64
        %v1809 = vpop.permute.xlu0 %1808
        %1810 = vrot.lane.b32.xlu0 %v1779, 64
        %v1811 = vpop.permute.xlu0 %1810
        %1812 = vrot.lane.b32.xlu0 %v1781, 64
        %v1813 = vpop.permute.xlu0 %1812
        %1814 = vrot.lane.b32.xlu0 %v1783, 64
        %v1815 = vpop.permute.xlu0 %1814
        %v1832 = vsel %vm342, %v1704, %v1785
        %v1833 = vsel %vm342, %v1709, %v1787
        %v1834 = vsel %vm342, %v1712, %v1789
        %v1835 = vsel %vm342, %v1715, %v1791
        %v1836 = vsel %vm342, %v1718, %v1793
        %v1837 = vsel %vm342, %v1721, %v1795
        %v1838 = vsel %vm342, %v1724, %v1797
        %v1839 = vsel %vm342, %v1727, %v1799
        %v1840 = vsel %vm342, %v1730, %v1801
        %v1841 = vsel %vm342, %v1733, %v1803
        %v1842 = vsel %vm342, %v1736, %v1805
        %v1843 = vsel %vm342, %v1739, %v1807
        %v1844 = vsel %vm342, %v1742, %v1809
        %v1845 = vsel %vm342, %v1745, %v1811
        %v1846 = vsel %vm342, %v1748, %v1813
        %v1847 = vsel %vm342, %v1751, %v1815
        %1848 = vrot.lane.b32.xlu0 %v1704, 112
        %v1849 = vpop.permute.xlu0 %1848
        %1850 = vrot.lane.b32.xlu0 %v1709, 112
        %v1851 = vpop.permute.xlu0 %1850
        %1852 = vrot.lane.b32.xlu0 %v1712, 112
        %v1853 = vpop.permute.xlu0 %1852
        %1854 = vrot.lane.b32.xlu0 %v1715, 112
        %v1855 = vpop.permute.xlu0 %1854
        %1856 = vrot.lane.b32.xlu0 %v1718, 112
        %v1857 = vpop.permute.xlu0 %1856
        %1858 = vrot.lane.b32.xlu0 %v1721, 112
        %v1859 = vpop.permute.xlu0 %1858
        %1860 = vrot.lane.b32.xlu0 %v1724, 112
        %v1861 = vpop.permute.xlu0 %1860
        %1862 = vrot.lane.b32.xlu0 %v1727, 112
        %v1863 = vpop.permute.xlu0 %1862
        %1864 = vrot.lane.b32.xlu0 %v1730, 112
        %v1865 = vpop.permute.xlu0 %1864
        %1866 = vrot.lane.b32.xlu0 %v1733, 112
        %v1867 = vpop.permute.xlu0 %1866
        %1868 = vrot.lane.b32.xlu0 %v1736, 112
        %v1869 = vpop.permute.xlu0 %1868
        %1870 = vrot.lane.b32.xlu0 %v1739, 112
        %v1871 = vpop.permute.xlu0 %1870
        %1872 = vrot.lane.b32.xlu0 %v1742, 112
        %v1873 = vpop.permute.xlu0 %1872
        %1874 = vrot.lane.b32.xlu0 %v1745, 112
        %v1875 = vpop.permute.xlu0 %1874
        %1876 = vrot.lane.b32.xlu0 %v1748, 112
        %v1877 = vpop.permute.xlu0 %1876
        %1878 = vrot.lane.b32.xlu0 %v1751, 112
        %v1879 = vpop.permute.xlu0 %1878
        %1896 = vrot.lane.b32.xlu0 %v1706, 48
        %v1897 = vpop.permute.xlu0 %1896
        %1898 = vrot.lane.b32.xlu0 %v1755, 48
        %v1899 = vpop.permute.xlu0 %1898
        %1900 = vrot.lane.b32.xlu0 %v1757, 48
        %v1901 = vpop.permute.xlu0 %1900
        %1902 = vrot.lane.b32.xlu0 %v1759, 48
        %v1903 = vpop.permute.xlu0 %1902
        %1904 = vrot.lane.b32.xlu0 %v1761, 48
        %v1905 = vpop.permute.xlu0 %1904
        %1906 = vrot.lane.b32.xlu0 %v1763, 48
        %v1907 = vpop.permute.xlu0 %1906
        %1908 = vrot.lane.b32.xlu0 %v1765, 48
        %v1909 = vpop.permute.xlu0 %1908
        %1910 = vrot.lane.b32.xlu0 %v1767, 48
        %v1911 = vpop.permute.xlu0 %1910
        %1912 = vrot.lane.b32.xlu0 %v1769, 48
        %v1913 = vpop.permute.xlu0 %1912
        %1914 = vrot.lane.b32.xlu0 %v1771, 48
        %v1915 = vpop.permute.xlu0 %1914
        %1916 = vrot.lane.b32.xlu0 %v1773, 48
        %v1917 = vpop.permute.xlu0 %1916
        %1918 = vrot.lane.b32.xlu0 %v1775, 48
        %v1919 = vpop.permute.xlu0 %1918
        %1920 = vrot.lane.b32.xlu0 %v1777, 48
        %v1921 = vpop.permute.xlu0 %1920
        %1922 = vrot.lane.b32.xlu0 %v1779, 48
        %v1923 = vpop.permute.xlu0 %1922
        %1924 = vrot.lane.b32.xlu0 %v1781, 48
        %v1925 = vpop.permute.xlu0 %1924
        %1926 = vrot.lane.b32.xlu0 %v1783, 48
        %v1927 = vpop.permute.xlu0 %1926
        %v1944 = vsel %vm342, %v1849, %v1897
        %v1945 = vsel %vm342, %v1851, %v1899
        %v1946 = vsel %vm342, %v1853, %v1901
        %v1947 = vsel %vm342, %v1855, %v1903
        %v1948 = vsel %vm342, %v1857, %v1905
        %v1949 = vsel %vm342, %v1859, %v1907
        %v1950 = vsel %vm342, %v1861, %v1909
        %v1951 = vsel %vm342, %v1863, %v1911
        %v1952 = vsel %vm342, %v1865, %v1913
        %v1953 = vsel %vm342, %v1867, %v1915
        %v1954 = vsel %vm342, %v1869, %v1917
        %v1955 = vsel %vm342, %v1871, %v1919
        %v1956 = vsel %vm342, %v1873, %v1921
        %v1957 = vsel %vm342, %v1875, %v1923
        %v1958 = vsel %vm342, %v1877, %v1925
        %v1959 = vsel %vm342, %v1879, %v1927
        %1960 = vmatpush.msra.mxu0 %v1959
        %1961 = vmatpush.msra.mxu0 %v1958
        %1962 = vmatpush.msra.mxu0 %v1957
        %1963 = vmatpush.msra.mxu0 %v1956
        %1964 = vmatpush.msra.mxu0 %v1955
        %1965 = vmatpush.msra.mxu0 %v1954
        %1966 = vmatpush.msra.mxu0 %v1953
        %1967 = vmatpush.msra.mxu0 %v1952
        %1968 = vmatpush.msra.mxu0 %v1951
        %1969 = vmatpush.msra.mxu0 %v1950
        %1970 = vmatpush.msra.mxu0 %v1949
        %1971 = vmatpush.msra.mxu0 %v1948
        %1972 = vmatpush.msra.mxu0 %v1947
        %1973 = vmatpush.msra.mxu0 %v1946
        %1974 = vmatpush.msra.mxu0 %v1945
        %1975 = vmatpush.msra.mxu0 %v1944
        %1976 = vmatmul.f32.gmra.mxu0 %v1691
        %v1977 = vpop.f32.mrf.mxu0
        %v1978 = vadd.f32 0.0, %v1977
        %1979 = vdwg.mxu0
        %1980 = vmatpush.msra.mxu0 %v1847
        %1981 = vmatpush.msra.mxu0 %v1846
        %1982 = vmatpush.msra.mxu0 %v1845
        %1983 = vmatpush.msra.mxu0 %v1844
        %1984 = vmatpush.msra.mxu0 %v1843
        %1985 = vmatpush.msra.mxu0 %v1842
        %1986 = vmatpush.msra.mxu0 %v1841
        %1987 = vmatpush.msra.mxu0 %v1840
        %1988 = vmatpush.msra.mxu0 %v1839
        %1989 = vmatpush.msra.mxu0 %v1838
        %1990 = vmatpush.msra.mxu0 %v1837
        %1991 = vmatpush.msra.mxu0 %v1836
        %1992 = vmatpush.msra.mxu0 %v1835
        %1993 = vmatpush.msra.mxu0 %v1834
        %1994 = vmatpush.msra.mxu0 %v1833
        %1995 = vmatpush.msra.mxu0 %v1832
        %1996 = vmatmul.f32.gmra.mxu0 %v1690
        %v1997 = vpop.f32.mrf.mxu0
        %v1998 = vadd.f32 %v1978, %v1997
        %1999 = vdwg.mxu0
        %2000 = vrot.lane.b32.xlu0 %v1704, 96
        %v2001 = vpop.permute.xlu0 %2000
        %2002 = vrot.lane.b32.xlu0 %v1709, 96
        %v2003 = vpop.permute.xlu0 %2002
        %2004 = vrot.lane.b32.xlu0 %v1712, 96
        %v2005 = vpop.permute.xlu0 %2004
        %2006 = vrot.lane.b32.xlu0 %v1715, 96
        %v2007 = vpop.permute.xlu0 %2006
        %2008 = vrot.lane.b32.xlu0 %v1718, 96
        %v2009 = vpop.permute.xlu0 %2008
        %2010 = vrot.lane.b32.xlu0 %v1721, 96
        %v2011 = vpop.permute.xlu0 %2010
        %2012 = vrot.lane.b32.xlu0 %v1724, 96
        %v2013 = vpop.permute.xlu0 %2012
        %2014 = vrot.lane.b32.xlu0 %v1727, 96
        %v2015 = vpop.permute.xlu0 %2014
        %2016 = vrot.lane.b32.xlu0 %v1730, 96
        %v2017 = vpop.permute.xlu0 %2016
        %2018 = vrot.lane.b32.xlu0 %v1733, 96
        %v2019 = vpop.permute.xlu0 %2018
        %2020 = vrot.lane.b32.xlu0 %v1736, 96
        %v2021 = vpop.permute.xlu0 %2020
        %2022 = vrot.lane.b32.xlu0 %v1739, 96
        %v2023 = vpop.permute.xlu0 %2022
        %2024 = vrot.lane.b32.xlu0 %v1742, 96
        %v2025 = vpop.permute.xlu0 %2024
        %2026 = vrot.lane.b32.xlu0 %v1745, 96
        %v2027 = vpop.permute.xlu0 %2026
        %2028 = vrot.lane.b32.xlu0 %v1748, 96
        %v2029 = vpop.permute.xlu0 %2028
        %2030 = vrot.lane.b32.xlu0 %v1751, 96
        %v2031 = vpop.permute.xlu0 %2030
        %2048 = vrot.lane.b32.xlu0 %v1706, 32
        %v2049 = vpop.permute.xlu0 %2048
        %2050 = vrot.lane.b32.xlu0 %v1755, 32
        %v2051 = vpop.permute.xlu0 %2050
        %2052 = vrot.lane.b32.xlu0 %v1757, 32
        %v2053 = vpop.permute.xlu0 %2052
        %2054 = vrot.lane.b32.xlu0 %v1759, 32
        %v2055 = vpop.permute.xlu0 %2054
        %2056 = vrot.lane.b32.xlu0 %v1761, 32
        %v2057 = vpop.permute.xlu0 %2056
        %2058 = vrot.lane.b32.xlu0 %v1763, 32
        %v2059 = vpop.permute.xlu0 %2058
        %2060 = vrot.lane.b32.xlu0 %v1765, 32
        %v2061 = vpop.permute.xlu0 %2060
        %2062 = vrot.lane.b32.xlu0 %v1767, 32
        %v2063 = vpop.permute.xlu0 %2062
        %2064 = vrot.lane.b32.xlu0 %v1769, 32
        %v2065 = vpop.permute.xlu0 %2064
        %2066 = vrot.lane.b32.xlu0 %v1771, 32
        %v2067 = vpop.permute.xlu0 %2066
        %2068 = vrot.lane.b32.xlu0 %v1773, 32
        %v2069 = vpop.permute.xlu0 %2068
        %2070 = vrot.lane.b32.xlu0 %v1775, 32
        %v2071 = vpop.permute.xlu0 %2070
        %2072 = vrot.lane.b32.xlu0 %v1777, 32
        %v2073 = vpop.permute.xlu0 %2072
        %2074 = vrot.lane.b32.xlu0 %v1779, 32
        %v2075 = vpop.permute.xlu0 %2074
        %2076 = vrot.lane.b32.xlu0 %v1781, 32
        %v2077 = vpop.permute.xlu0 %2076
        %2078 = vrot.lane.b32.xlu0 %v1783, 32
        %v2079 = vpop.permute.xlu0 %2078
        %v2096 = vsel %vm342, %v2001, %v2049
        %v2097 = vsel %vm342, %v2003, %v2051
        %v2098 = vsel %vm342, %v2005, %v2053
        %v2099 = vsel %vm342, %v2007, %v2055
        %v2100 = vsel %vm342, %v2009, %v2057
        %v2101 = vsel %vm342, %v2011, %v2059
        %v2102 = vsel %vm342, %v2013, %v2061
        %v2103 = vsel %vm342, %v2015, %v2063
        %v2104 = vsel %vm342, %v2017, %v2065
        %v2105 = vsel %vm342, %v2019, %v2067
        %v2106 = vsel %vm342, %v2021, %v2069
        %v2107 = vsel %vm342, %v2023, %v2071
        %v2108 = vsel %vm342, %v2025, %v2073
        %v2109 = vsel %vm342, %v2027, %v2075
        %v2110 = vsel %vm342, %v2029, %v2077
        %v2111 = vsel %vm342, %v2031, %v2079
        %2112 = vmatpush.msra.mxu0 %v2111
        %2113 = vmatpush.msra.mxu0 %v2110
        %2114 = vmatpush.msra.mxu0 %v2109
        %2115 = vmatpush.msra.mxu0 %v2108
        %2116 = vmatpush.msra.mxu0 %v2107
        %2117 = vmatpush.msra.mxu0 %v2106
        %2118 = vmatpush.msra.mxu0 %v2105
        %2119 = vmatpush.msra.mxu0 %v2104
        %2120 = vmatpush.msra.mxu0 %v2103
        %2121 = vmatpush.msra.mxu0 %v2102
        %2122 = vmatpush.msra.mxu0 %v2101
        %2123 = vmatpush.msra.mxu0 %v2100
        %2124 = vmatpush.msra.mxu0 %v2099
        %2125 = vmatpush.msra.mxu0 %v2098
        %2126 = vmatpush.msra.mxu0 %v2097
        %2127 = vmatpush.msra.mxu0 %v2096
        %2128 = vmatmul.f32.gmra.mxu0 %v1692
        %v2129 = vpop.f32.mrf.mxu0
        %v2130 = vadd.f32 0.0, %v2129
        %2131 = vdwg.mxu0
        %v2132 = vadd.f32 %v1998, %v2130
        %2133 = vrot.lane.b32.xlu0 %v1704, 80
        %v2134 = vpop.permute.xlu0 %2133
        %2135 = vrot.lane.b32.xlu0 %v1709, 80
        %v2136 = vpop.permute.xlu0 %2135
        %2137 = vrot.lane.b32.xlu0 %v1712, 80
        %v2138 = vpop.permute.xlu0 %2137
        %2142 = vrot.lane.b32.xlu0 %v1706, 16
        %v2143 = vpop.permute.xlu0 %2142
        %2144 = vrot.lane.b32.xlu0 %v1755, 16
        %v2145 = vpop.permute.xlu0 %2144
        %2146 = vrot.lane.b32.xlu0 %v1757, 16
        %v2147 = vpop.permute.xlu0 %2146
        %v2151 = vsel %vm342, %v2134, %v2143
        %v2152 = vsel %vm342, %v2136, %v2145
        %v2153 = vsel %vm342, %v2138, %v2147
        %v2155 = vsel %vm665, %v1693, 0
        %2157 = vmatpush.msra.mxu0 0.0
        %2158 = vmatpush.msra.mxu0 0.0
        %2159 = vmatpush.msra.mxu0 0.0
        %2160 = vmatpush.msra.mxu0 0.0
        %2161 = vmatpush.msra.mxu0 0.0
        %2162 = vmatpush.msra.mxu0 0.0
        %2163 = vmatpush.msra.mxu0 0.0
        %2164 = vmatpush.msra.mxu0 0.0
        %2165 = vmatpush.msra.mxu0 0.0
        %2166 = vmatpush.msra.mxu0 0.0
        %2167 = vmatpush.msra.mxu0 0.0
        %2168 = vmatpush.msra.mxu0 0.0
        %2169 = vmatpush.msra.mxu0 0.0
        %2170 = vmatpush.msra.mxu0 %v2153
        %2171 = vmatpush.msra.mxu0 %v2152
        %2172 = vmatpush.msra.mxu0 %v2151
        %2173 = vmatmul.f32.gmra.mxu0 %v2155
        %v2174 = vpop.f32.mrf.mxu0
        %v2175 = vadd.f32 0.0, %v2174
        %2176 = vdwg.mxu0
        %v2177 = vadd.f32 %v2132, %v2175
        %2179 = vset.pattern.permute.xlu0 0
        %2180 = vperm.xlu0 %2179, %v1695
        %v2181 = vpop.permute.xlu0 %2180
        %v2183 = vadd.f32 %v2177, %v2181
        %v2184 = vmax.f32 %v2183, 0.0
        %s2185 = scalar_lea.vmem [#allocation2], 128
        %v2186 = vld [vmem:[%s2185] sm:$0xff]
        %v2187 = vld [vmem:[%s2185 + $0x8] sm:$0xff]
        %v2188 = vld [vmem:[%s2185 + $0x10] sm:$0xff]
        %v2189 = vld [vmem:[%s2185 + $0x18] sm:$0xff]
        %s2190 = scalar_lea.vmem %s2, 32
        %v2191 = vld [vmem:[%s2190] sm:$0xff]
        %2193 = vrot.lane.b32.xlu0 %v2184, 89
        %v2194 = vpop.permute.xlu0 %2193
        %2196 = vrot.lane.b32.xlu0 %v2184, 25
        %v2197 = vpop.permute.xlu0 %2196
        %v2199 = vsel %vm204, %v2194, %v2197
        %v2200 = vsel %vm206, %v2199, %v2194
        %v2201 = vsel %vm204, %v2197, %v2194
        %v2202 = vsel %vm206, %v2201, %v2197
        %2204 = vrot.lane.b32.xlu0 %v2200, 127
        %v2205 = vpop.permute.xlu0 %2204
        %2207 = vrot.lane.b32.xlu0 %v2200, 126
        %v2208 = vpop.permute.xlu0 %2207
        %2210 = vrot.lane.b32.xlu0 %v2200, 125
        %v2211 = vpop.permute.xlu0 %2210
        %2213 = vrot.lane.b32.xlu0 %v2200, 124
        %v2214 = vpop.permute.xlu0 %2213
        %2216 = vrot.lane.b32.xlu0 %v2200, 123
        %v2217 = vpop.permute.xlu0 %2216
        %2219 = vrot.lane.b32.xlu0 %v2200, 122
        %v2220 = vpop.permute.xlu0 %2219
        %2222 = vrot.lane.b32.xlu0 %v2200, 121
        %v2223 = vpop.permute.xlu0 %2222
        %2225 = vrot.lane.b32.xlu0 %v2200, 120
        %v2226 = vpop.permute.xlu0 %2225
        %2228 = vrot.lane.b32.xlu0 %v2200, 119
        %v2229 = vpop.permute.xlu0 %2228
        %2231 = vrot.lane.b32.xlu0 %v2200, 118
        %v2232 = vpop.permute.xlu0 %2231
        %2234 = vrot.lane.b32.xlu0 %v2200, 117
        %v2235 = vpop.permute.xlu0 %2234
        %2237 = vrot.lane.b32.xlu0 %v2200, 116
        %v2238 = vpop.permute.xlu0 %2237
        %2240 = vrot.lane.b32.xlu0 %v2200, 115
        %v2241 = vpop.permute.xlu0 %2240
        %2243 = vrot.lane.b32.xlu0 %v2200, 114
        %v2244 = vpop.permute.xlu0 %2243
        %2246 = vrot.lane.b32.xlu0 %v2200, 113
        %v2247 = vpop.permute.xlu0 %2246
        %2250 = vrot.lane.b32.xlu0 %v2202, 127
        %v2251 = vpop.permute.xlu0 %2250
        %2252 = vrot.lane.b32.xlu0 %v2202, 126
        %v2253 = vpop.permute.xlu0 %2252
        %2254 = vrot.lane.b32.xlu0 %v2202, 125
        %v2255 = vpop.permute.xlu0 %2254
        %2256 = vrot.lane.b32.xlu0 %v2202, 124
        %v2257 = vpop.permute.xlu0 %2256
        %2258 = vrot.lane.b32.xlu0 %v2202, 123
        %v2259 = vpop.permute.xlu0 %2258
        %2260 = vrot.lane.b32.xlu0 %v2202, 122
        %v2261 = vpop.permute.xlu0 %2260
        %2262 = vrot.lane.b32.xlu0 %v2202, 121
        %v2263 = vpop.permute.xlu0 %2262
        %2264 = vrot.lane.b32.xlu0 %v2202, 120
        %v2265 = vpop.permute.xlu0 %2264
        %2266 = vrot.lane.b32.xlu0 %v2202, 119
        %v2267 = vpop.permute.xlu0 %2266
        %2268 = vrot.lane.b32.xlu0 %v2202, 118
        %v2269 = vpop.permute.xlu0 %2268
        %2270 = vrot.lane.b32.xlu0 %v2202, 117
        %v2271 = vpop.permute.xlu0 %2270
        %2272 = vrot.lane.b32.xlu0 %v2202, 116
        %v2273 = vpop.permute.xlu0 %2272
        %2274 = vrot.lane.b32.xlu0 %v2202, 115
        %v2275 = vpop.permute.xlu0 %2274
        %2276 = vrot.lane.b32.xlu0 %v2202, 114
        %v2277 = vpop.permute.xlu0 %2276
        %2278 = vrot.lane.b32.xlu0 %v2202, 113
        %v2279 = vpop.permute.xlu0 %2278
        %2280 = vrot.lane.b32.xlu0 %v2202, 64
        %v2281 = vpop.permute.xlu0 %2280
        %2282 = vrot.lane.b32.xlu0 %v2251, 64
        %v2283 = vpop.permute.xlu0 %2282
        %2284 = vrot.lane.b32.xlu0 %v2253, 64
        %v2285 = vpop.permute.xlu0 %2284
        %2286 = vrot.lane.b32.xlu0 %v2255, 64
        %v2287 = vpop.permute.xlu0 %2286
        %2288 = vrot.lane.b32.xlu0 %v2257, 64
        %v2289 = vpop.permute.xlu0 %2288
        %2290 = vrot.lane.b32.xlu0 %v2259, 64
        %v2291 = vpop.permute.xlu0 %2290
        %2292 = vrot.lane.b32.xlu0 %v2261, 64
        %v2293 = vpop.permute.xlu0 %2292
        %2294 = vrot.lane.b32.xlu0 %v2263, 64
        %v2295 = vpop.permute.xlu0 %2294
        %2296 = vrot.lane.b32.xlu0 %v2265, 64
        %v2297 = vpop.permute.xlu0 %2296
        %2298 = vrot.lane.b32.xlu0 %v2267, 64
        %v2299 = vpop.permute.xlu0 %2298
        %2300 = vrot.lane.b32.xlu0 %v2269, 64
        %v2301 = vpop.permute.xlu0 %2300
        %2302 = vrot.lane.b32.xlu0 %v2271, 64
        %v2303 = vpop.permute.xlu0 %2302
        %2304 = vrot.lane.b32.xlu0 %v2273, 64
        %v2305 = vpop.permute.xlu0 %2304
        %2306 = vrot.lane.b32.xlu0 %v2275, 64
        %v2307 = vpop.permute.xlu0 %2306
        %2308 = vrot.lane.b32.xlu0 %v2277, 64
        %v2309 = vpop.permute.xlu0 %2308
        %2310 = vrot.lane.b32.xlu0 %v2279, 64
        %v2311 = vpop.permute.xlu0 %2310
        %v2328 = vsel %vm342, %v2200, %v2281
        %v2329 = vsel %vm342, %v2205, %v2283
        %v2330 = vsel %vm342, %v2208, %v2285
        %v2331 = vsel %vm342, %v2211, %v2287
        %v2332 = vsel %vm342, %v2214, %v2289
        %v2333 = vsel %vm342, %v2217, %v2291
        %v2334 = vsel %vm342, %v2220, %v2293
        %v2335 = vsel %vm342, %v2223, %v2295
        %v2336 = vsel %vm342, %v2226, %v2297
        %v2337 = vsel %vm342, %v2229, %v2299
        %v2338 = vsel %vm342, %v2232, %v2301
        %v2339 = vsel %vm342, %v2235, %v2303
        %v2340 = vsel %vm342, %v2238, %v2305
        %v2341 = vsel %vm342, %v2241, %v2307
        %v2342 = vsel %vm342, %v2244, %v2309
        %v2343 = vsel %vm342, %v2247, %v2311
        %2344 = vrot.lane.b32.xlu0 %v2200, 112
        %v2345 = vpop.permute.xlu0 %2344
        %2346 = vrot.lane.b32.xlu0 %v2205, 112
        %v2347 = vpop.permute.xlu0 %2346
        %2348 = vrot.lane.b32.xlu0 %v2208, 112
        %v2349 = vpop.permute.xlu0 %2348
        %2350 = vrot.lane.b32.xlu0 %v2211, 112
        %v2351 = vpop.permute.xlu0 %2350
        %2352 = vrot.lane.b32.xlu0 %v2214, 112
        %v2353 = vpop.permute.xlu0 %2352
        %2354 = vrot.lane.b32.xlu0 %v2217, 112
        %v2355 = vpop.permute.xlu0 %2354
        %2356 = vrot.lane.b32.xlu0 %v2220, 112
        %v2357 = vpop.permute.xlu0 %2356
        %2358 = vrot.lane.b32.xlu0 %v2223, 112
        %v2359 = vpop.permute.xlu0 %2358
        %2360 = vrot.lane.b32.xlu0 %v2226, 112
        %v2361 = vpop.permute.xlu0 %2360
        %2362 = vrot.lane.b32.xlu0 %v2229, 112
        %v2363 = vpop.permute.xlu0 %2362
        %2364 = vrot.lane.b32.xlu0 %v2232, 112
        %v2365 = vpop.permute.xlu0 %2364
        %2366 = vrot.lane.b32.xlu0 %v2235, 112
        %v2367 = vpop.permute.xlu0 %2366
        %2368 = vrot.lane.b32.xlu0 %v2238, 112
        %v2369 = vpop.permute.xlu0 %2368
        %2370 = vrot.lane.b32.xlu0 %v2241, 112
        %v2371 = vpop.permute.xlu0 %2370
        %2372 = vrot.lane.b32.xlu0 %v2244, 112
        %v2373 = vpop.permute.xlu0 %2372
        %2374 = vrot.lane.b32.xlu0 %v2247, 112
        %v2375 = vpop.permute.xlu0 %2374
        %2392 = vrot.lane.b32.xlu0 %v2202, 48
        %v2393 = vpop.permute.xlu0 %2392
        %2394 = vrot.lane.b32.xlu0 %v2251, 48
        %v2395 = vpop.permute.xlu0 %2394
        %2396 = vrot.lane.b32.xlu0 %v2253, 48
        %v2397 = vpop.permute.xlu0 %2396
        %2398 = vrot.lane.b32.xlu0 %v2255, 48
        %v2399 = vpop.permute.xlu0 %2398
        %2400 = vrot.lane.b32.xlu0 %v2257, 48
        %v2401 = vpop.permute.xlu0 %2400
        %2402 = vrot.lane.b32.xlu0 %v2259, 48
        %v2403 = vpop.permute.xlu0 %2402
        %2404 = vrot.lane.b32.xlu0 %v2261, 48
        %v2405 = vpop.permute.xlu0 %2404
        %2406 = vrot.lane.b32.xlu0 %v2263, 48
        %v2407 = vpop.permute.xlu0 %2406
        %2408 = vrot.lane.b32.xlu0 %v2265, 48
        %v2409 = vpop.permute.xlu0 %2408
        %2410 = vrot.lane.b32.xlu0 %v2267, 48
        %v2411 = vpop.permute.xlu0 %2410
        %2412 = vrot.lane.b32.xlu0 %v2269, 48
        %v2413 = vpop.permute.xlu0 %2412
        %2414 = vrot.lane.b32.xlu0 %v2271, 48
        %v2415 = vpop.permute.xlu0 %2414
        %2416 = vrot.lane.b32.xlu0 %v2273, 48
        %v2417 = vpop.permute.xlu0 %2416
        %2418 = vrot.lane.b32.xlu0 %v2275, 48
        %v2419 = vpop.permute.xlu0 %2418
        %2420 = vrot.lane.b32.xlu0 %v2277, 48
        %v2421 = vpop.permute.xlu0 %2420
        %2422 = vrot.lane.b32.xlu0 %v2279, 48
        %v2423 = vpop.permute.xlu0 %2422
        %v2440 = vsel %vm342, %v2345, %v2393
        %v2441 = vsel %vm342, %v2347, %v2395
        %v2442 = vsel %vm342, %v2349, %v2397
        %v2443 = vsel %vm342, %v2351, %v2399
        %v2444 = vsel %vm342, %v2353, %v2401
        %v2445 = vsel %vm342, %v2355, %v2403
        %v2446 = vsel %vm342, %v2357, %v2405
        %v2447 = vsel %vm342, %v2359, %v2407
        %v2448 = vsel %vm342, %v2361, %v2409
        %v2449 = vsel %vm342, %v2363, %v2411
        %v2450 = vsel %vm342, %v2365, %v2413
        %v2451 = vsel %vm342, %v2367, %v2415
        %v2452 = vsel %vm342, %v2369, %v2417
        %v2453 = vsel %vm342, %v2371, %v2419
        %v2454 = vsel %vm342, %v2373, %v2421
        %v2455 = vsel %vm342, %v2375, %v2423
        %2456 = vmatpush.msra.mxu0 %v2455
        %2457 = vmatpush.msra.mxu0 %v2454
        %2458 = vmatpush.msra.mxu0 %v2453
        %2459 = vmatpush.msra.mxu0 %v2452
        %2460 = vmatpush.msra.mxu0 %v2451
        %2461 = vmatpush.msra.mxu0 %v2450
        %2462 = vmatpush.msra.mxu0 %v2449
        %2463 = vmatpush.msra.mxu0 %v2448
        %2464 = vmatpush.msra.mxu0 %v2447
        %2465 = vmatpush.msra.mxu0 %v2446
        %2466 = vmatpush.msra.mxu0 %v2445
        %2467 = vmatpush.msra.mxu0 %v2444
        %2468 = vmatpush.msra.mxu0 %v2443
        %2469 = vmatpush.msra.mxu0 %v2442
        %2470 = vmatpush.msra.mxu0 %v2441
        %2471 = vmatpush.msra.mxu0 %v2440
        %2472 = vmatmul.f32.gmra.mxu0 %v2187
        %v2473 = vpop.f32.mrf.mxu0
        %v2474 = vadd.f32 0.0, %v2473
        %2475 = vdwg.mxu0
        %2476 = vmatpush.msra.mxu0 %v2343
        %2477 = vmatpush.msra.mxu0 %v2342
        %2478 = vmatpush.msra.mxu0 %v2341
        %2479 = vmatpush.msra.mxu0 %v2340
        %2480 = vmatpush.msra.mxu0 %v2339
        %2481 = vmatpush.msra.mxu0 %v2338
        %2482 = vmatpush.msra.mxu0 %v2337
        %2483 = vmatpush.msra.mxu0 %v2336
        %2484 = vmatpush.msra.mxu0 %v2335
        %2485 = vmatpush.msra.mxu0 %v2334
        %2486 = vmatpush.msra.mxu0 %v2333
        %2487 = vmatpush.msra.mxu0 %v2332
        %2488 = vmatpush.msra.mxu0 %v2331
        %2489 = vmatpush.msra.mxu0 %v2330
        %2490 = vmatpush.msra.mxu0 %v2329
        %2491 = vmatpush.msra.mxu0 %v2328
        %2492 = vmatmul.f32.gmra.mxu0 %v2186
        %v2493 = vpop.f32.mrf.mxu0
        %v2494 = vadd.f32 %v2474, %v2493
        %2495 = vdwg.mxu0
        %2496 = vrot.lane.b32.xlu0 %v2200, 96
        %v2497 = vpop.permute.xlu0 %2496
        %2498 = vrot.lane.b32.xlu0 %v2205, 96
        %v2499 = vpop.permute.xlu0 %2498
        %2500 = vrot.lane.b32.xlu0 %v2208, 96
        %v2501 = vpop.permute.xlu0 %2500
        %2502 = vrot.lane.b32.xlu0 %v2211, 96
        %v2503 = vpop.permute.xlu0 %2502
        %2504 = vrot.lane.b32.xlu0 %v2214, 96
        %v2505 = vpop.permute.xlu0 %2504
        %2506 = vrot.lane.b32.xlu0 %v2217, 96
        %v2507 = vpop.permute.xlu0 %2506
        %2508 = vrot.lane.b32.xlu0 %v2220, 96
        %v2509 = vpop.permute.xlu0 %2508
        %2510 = vrot.lane.b32.xlu0 %v2223, 96
        %v2511 = vpop.permute.xlu0 %2510
        %2512 = vrot.lane.b32.xlu0 %v2226, 96
        %v2513 = vpop.permute.xlu0 %2512
        %2514 = vrot.lane.b32.xlu0 %v2229, 96
        %v2515 = vpop.permute.xlu0 %2514
        %2516 = vrot.lane.b32.xlu0 %v2232, 96
        %v2517 = vpop.permute.xlu0 %2516
        %2518 = vrot.lane.b32.xlu0 %v2235, 96
        %v2519 = vpop.permute.xlu0 %2518
        %2520 = vrot.lane.b32.xlu0 %v2238, 96
        %v2521 = vpop.permute.xlu0 %2520
        %2522 = vrot.lane.b32.xlu0 %v2241, 96
        %v2523 = vpop.permute.xlu0 %2522
        %2524 = vrot.lane.b32.xlu0 %v2244, 96
        %v2525 = vpop.permute.xlu0 %2524
        %2526 = vrot.lane.b32.xlu0 %v2247, 96
        %v2527 = vpop.permute.xlu0 %2526
        %2544 = vrot.lane.b32.xlu0 %v2202, 32
        %v2545 = vpop.permute.xlu0 %2544
        %2546 = vrot.lane.b32.xlu0 %v2251, 32
        %v2547 = vpop.permute.xlu0 %2546
        %2548 = vrot.lane.b32.xlu0 %v2253, 32
        %v2549 = vpop.permute.xlu0 %2548
        %2550 = vrot.lane.b32.xlu0 %v2255, 32
        %v2551 = vpop.permute.xlu0 %2550
        %2552 = vrot.lane.b32.xlu0 %v2257, 32
        %v2553 = vpop.permute.xlu0 %2552
        %2554 = vrot.lane.b32.xlu0 %v2259, 32
        %v2555 = vpop.permute.xlu0 %2554
        %2556 = vrot.lane.b32.xlu0 %v2261, 32
        %v2557 = vpop.permute.xlu0 %2556
        %2558 = vrot.lane.b32.xlu0 %v2263, 32
        %v2559 = vpop.permute.xlu0 %2558
        %2560 = vrot.lane.b32.xlu0 %v2265, 32
        %v2561 = vpop.permute.xlu0 %2560
        %2562 = vrot.lane.b32.xlu0 %v2267, 32
        %v2563 = vpop.permute.xlu0 %2562
        %2564 = vrot.lane.b32.xlu0 %v2269, 32
        %v2565 = vpop.permute.xlu0 %2564
        %2566 = vrot.lane.b32.xlu0 %v2271, 32
        %v2567 = vpop.permute.xlu0 %2566
        %2568 = vrot.lane.b32.xlu0 %v2273, 32
        %v2569 = vpop.permute.xlu0 %2568
        %2570 = vrot.lane.b32.xlu0 %v2275, 32
        %v2571 = vpop.permute.xlu0 %2570
        %2572 = vrot.lane.b32.xlu0 %v2277, 32
        %v2573 = vpop.permute.xlu0 %2572
        %2574 = vrot.lane.b32.xlu0 %v2279, 32
        %v2575 = vpop.permute.xlu0 %2574
        %v2592 = vsel %vm342, %v2497, %v2545
        %v2593 = vsel %vm342, %v2499, %v2547
        %v2594 = vsel %vm342, %v2501, %v2549
        %v2595 = vsel %vm342, %v2503, %v2551
        %v2596 = vsel %vm342, %v2505, %v2553
        %v2597 = vsel %vm342, %v2507, %v2555
        %v2598 = vsel %vm342, %v2509, %v2557
        %v2599 = vsel %vm342, %v2511, %v2559
        %v2600 = vsel %vm342, %v2513, %v2561
        %v2601 = vsel %vm342, %v2515, %v2563
        %v2602 = vsel %vm342, %v2517, %v2565
        %v2603 = vsel %vm342, %v2519, %v2567
        %v2604 = vsel %vm342, %v2521, %v2569
        %v2605 = vsel %vm342, %v2523, %v2571
        %v2606 = vsel %vm342, %v2525, %v2573
        %v2607 = vsel %vm342, %v2527, %v2575
        %2608 = vmatpush.msra.mxu0 %v2607
        %2609 = vmatpush.msra.mxu0 %v2606
        %2610 = vmatpush.msra.mxu0 %v2605
        %2611 = vmatpush.msra.mxu0 %v2604
        %2612 = vmatpush.msra.mxu0 %v2603
        %2613 = vmatpush.msra.mxu0 %v2602
        %2614 = vmatpush.msra.mxu0 %v2601
        %2615 = vmatpush.msra.mxu0 %v2600
        %2616 = vmatpush.msra.mxu0 %v2599
        %2617 = vmatpush.msra.mxu0 %v2598
        %2618 = vmatpush.msra.mxu0 %v2597
        %2619 = vmatpush.msra.mxu0 %v2596
        %2620 = vmatpush.msra.mxu0 %v2595
        %2621 = vmatpush.msra.mxu0 %v2594
        %2622 = vmatpush.msra.mxu0 %v2593
        %2623 = vmatpush.msra.mxu0 %v2592
        %2624 = vmatmul.f32.gmra.mxu0 %v2188
        %v2625 = vpop.f32.mrf.mxu0
        %v2626 = vadd.f32 0.0, %v2625
        %2627 = vdwg.mxu0
        %v2628 = vadd.f32 %v2494, %v2626
        %2629 = vrot.lane.b32.xlu0 %v2200, 80
        %v2630 = vpop.permute.xlu0 %2629
        %2631 = vrot.lane.b32.xlu0 %v2205, 80
        %v2632 = vpop.permute.xlu0 %2631
        %2633 = vrot.lane.b32.xlu0 %v2208, 80
        %v2634 = vpop.permute.xlu0 %2633
        %2638 = vrot.lane.b32.xlu0 %v2202, 16
        %v2639 = vpop.permute.xlu0 %2638
        %2640 = vrot.lane.b32.xlu0 %v2251, 16
        %v2641 = vpop.permute.xlu0 %2640
        %2642 = vrot.lane.b32.xlu0 %v2253, 16
        %v2643 = vpop.permute.xlu0 %2642
        %v2647 = vsel %vm342, %v2630, %v2639
        %v2648 = vsel %vm342, %v2632, %v2641
        %v2649 = vsel %vm342, %v2634, %v2643
        %v2651 = vsel %vm665, %v2189, 0
        %2653 = vmatpush.msra.mxu0 0.0
        %2654 = vmatpush.msra.mxu0 0.0
        %2655 = vmatpush.msra.mxu0 0.0
        %2656 = vmatpush.msra.mxu0 0.0
        %2657 = vmatpush.msra.mxu0 0.0
        %2658 = vmatpush.msra.mxu0 0.0
        %2659 = vmatpush.msra.mxu0 0.0
        %2660 = vmatpush.msra.mxu0 0.0
        %2661 = vmatpush.msra.mxu0 0.0
        %2662 = vmatpush.msra.mxu0 0.0
        %2663 = vmatpush.msra.mxu0 0.0
        %2664 = vmatpush.msra.mxu0 0.0
        %2665 = vmatpush.msra.mxu0 0.0
        %2666 = vmatpush.msra.mxu0 %v2649
        %2667 = vmatpush.msra.mxu0 %v2648
        %2668 = vmatpush.msra.mxu0 %v2647
        %2669 = vmatmul.f32.gmra.mxu0 %v2651
        %v2670 = vpop.f32.mrf.mxu0
        %v2671 = vadd.f32 0.0, %v2670
        %2672 = vdwg.mxu0
        %v2673 = vadd.f32 %v2628, %v2671
        %2675 = vset.pattern.permute.xlu0 0
        %2676 = vperm.xlu0 %2675, %v2191
        %v2677 = vpop.permute.xlu0 %2676
        %v2679 = vadd.f32 %v2673, %v2677
        %v2680 = vmax.f32 %v2679, 0.0
        %s2681 = scalar_lea.vmem [#allocation2], 160
        %v2682 = vld [vmem:[%s2681] sm:$0xff]
        %v2683 = vld [vmem:[%s2681 + $0x8] sm:$0xff]
        %v2684 = vld [vmem:[%s2681 + $0x10] sm:$0xff]
        %v2685 = vld [vmem:[%s2681 + $0x18] sm:$0xff]
        %s2686 = scalar_lea.vmem %s2, 40
        %v2687 = vld [vmem:[%s2686] sm:$0xff]
        %2689 = vrot.lane.b32.xlu0 %v2680, 89
        %v2690 = vpop.permute.xlu0 %2689
        %2692 = vrot.lane.b32.xlu0 %v2680, 25
        %v2693 = vpop.permute.xlu0 %2692
        %v2695 = vsel %vm204, %v2690, %v2693
        %v2696 = vsel %vm206, %v2695, %v2690
        %v2697 = vsel %vm204, %v2693, %v2690
        %v2698 = vsel %vm206, %v2697, %v2693
        %2700 = vrot.lane.b32.xlu0 %v2696, 127
        %v2701 = vpop.permute.xlu0 %2700
        %2703 = vrot.lane.b32.xlu0 %v2696, 126
        %v2704 = vpop.permute.xlu0 %2703
        %2706 = vrot.lane.b32.xlu0 %v2696, 125
        %v2707 = vpop.permute.xlu0 %2706
        %2709 = vrot.lane.b32.xlu0 %v2696, 124
        %v2710 = vpop.permute.xlu0 %2709
        %2712 = vrot.lane.b32.xlu0 %v2696, 123
        %v2713 = vpop.permute.xlu0 %2712
        %2715 = vrot.lane.b32.xlu0 %v2696, 122
        %v2716 = vpop.permute.xlu0 %2715
        %2718 = vrot.lane.b32.xlu0 %v2696, 121
        %v2719 = vpop.permute.xlu0 %2718
        %2721 = vrot.lane.b32.xlu0 %v2696, 120
        %v2722 = vpop.permute.xlu0 %2721
        %2724 = vrot.lane.b32.xlu0 %v2696, 119
        %v2725 = vpop.permute.xlu0 %2724
        %2727 = vrot.lane.b32.xlu0 %v2696, 118
        %v2728 = vpop.permute.xlu0 %2727
        %2730 = vrot.lane.b32.xlu0 %v2696, 117
        %v2731 = vpop.permute.xlu0 %2730
        %2733 = vrot.lane.b32.xlu0 %v2696, 116
        %v2734 = vpop.permute.xlu0 %2733
        %2736 = vrot.lane.b32.xlu0 %v2696, 115
        %v2737 = vpop.permute.xlu0 %2736
        %2739 = vrot.lane.b32.xlu0 %v2696, 114
        %v2740 = vpop.permute.xlu0 %2739
        %2742 = vrot.lane.b32.xlu0 %v2696, 113
        %v2743 = vpop.permute.xlu0 %2742
        %2746 = vrot.lane.b32.xlu0 %v2698, 127
        %v2747 = vpop.permute.xlu0 %2746
        %2748 = vrot.lane.b32.xlu0 %v2698, 126
        %v2749 = vpop.permute.xlu0 %2748
        %2750 = vrot.lane.b32.xlu0 %v2698, 125
        %v2751 = vpop.permute.xlu0 %2750
        %2752 = vrot.lane.b32.xlu0 %v2698, 124
        %v2753 = vpop.permute.xlu0 %2752
        %2754 = vrot.lane.b32.xlu0 %v2698, 123
        %v2755 = vpop.permute.xlu0 %2754
        %2756 = vrot.lane.b32.xlu0 %v2698, 122
        %v2757 = vpop.permute.xlu0 %2756
        %2758 = vrot.lane.b32.xlu0 %v2698, 121
        %v2759 = vpop.permute.xlu0 %2758
        %2760 = vrot.lane.b32.xlu0 %v2698, 120
        %v2761 = vpop.permute.xlu0 %2760
        %2762 = vrot.lane.b32.xlu0 %v2698, 119
        %v2763 = vpop.permute.xlu0 %2762
        %2764 = vrot.lane.b32.xlu0 %v2698, 118
        %v2765 = vpop.permute.xlu0 %2764
        %2766 = vrot.lane.b32.xlu0 %v2698, 117
        %v2767 = vpop.permute.xlu0 %2766
        %2768 = vrot.lane.b32.xlu0 %v2698, 116
        %v2769 = vpop.permute.xlu0 %2768
        %2770 = vrot.lane.b32.xlu0 %v2698, 115
        %v2771 = vpop.permute.xlu0 %2770
        %2772 = vrot.lane.b32.xlu0 %v2698, 114
        %v2773 = vpop.permute.xlu0 %2772
        %2774 = vrot.lane.b32.xlu0 %v2698, 113
        %v2775 = vpop.permute.xlu0 %2774
        %2776 = vrot.lane.b32.xlu0 %v2698, 64
        %v2777 = vpop.permute.xlu0 %2776
        %2778 = vrot.lane.b32.xlu0 %v2747, 64
        %v2779 = vpop.permute.xlu0 %2778
        %2780 = vrot.lane.b32.xlu0 %v2749, 64
        %v2781 = vpop.permute.xlu0 %2780
        %2782 = vrot.lane.b32.xlu0 %v2751, 64
        %v2783 = vpop.permute.xlu0 %2782
        %2784 = vrot.lane.b32.xlu0 %v2753, 64
        %v2785 = vpop.permute.xlu0 %2784
        %2786 = vrot.lane.b32.xlu0 %v2755, 64
        %v2787 = vpop.permute.xlu0 %2786
        %2788 = vrot.lane.b32.xlu0 %v2757, 64
        %v2789 = vpop.permute.xlu0 %2788
        %2790 = vrot.lane.b32.xlu0 %v2759, 64
        %v2791 = vpop.permute.xlu0 %2790
        %2792 = vrot.lane.b32.xlu0 %v2761, 64
        %v2793 = vpop.permute.xlu0 %2792
        %2794 = vrot.lane.b32.xlu0 %v2763, 64
        %v2795 = vpop.permute.xlu0 %2794
        %2796 = vrot.lane.b32.xlu0 %v2765, 64
        %v2797 = vpop.permute.xlu0 %2796
        %2798 = vrot.lane.b32.xlu0 %v2767, 64
        %v2799 = vpop.permute.xlu0 %2798
        %2800 = vrot.lane.b32.xlu0 %v2769, 64
        %v2801 = vpop.permute.xlu0 %2800
        %2802 = vrot.lane.b32.xlu0 %v2771, 64
        %v2803 = vpop.permute.xlu0 %2802
        %2804 = vrot.lane.b32.xlu0 %v2773, 64
        %v2805 = vpop.permute.xlu0 %2804
        %2806 = vrot.lane.b32.xlu0 %v2775, 64
        %v2807 = vpop.permute.xlu0 %2806
        %v2824 = vsel %vm342, %v2696, %v2777
        %v2825 = vsel %vm342, %v2701, %v2779
        %v2826 = vsel %vm342, %v2704, %v2781
        %v2827 = vsel %vm342, %v2707, %v2783
        %v2828 = vsel %vm342, %v2710, %v2785
        %v2829 = vsel %vm342, %v2713, %v2787
        %v2830 = vsel %vm342, %v2716, %v2789
        %v2831 = vsel %vm342, %v2719, %v2791
        %v2832 = vsel %vm342, %v2722, %v2793
        %v2833 = vsel %vm342, %v2725, %v2795
        %v2834 = vsel %vm342, %v2728, %v2797
        %v2835 = vsel %vm342, %v2731, %v2799
        %v2836 = vsel %vm342, %v2734, %v2801
        %v2837 = vsel %vm342, %v2737, %v2803
        %v2838 = vsel %vm342, %v2740, %v2805
        %v2839 = vsel %vm342, %v2743, %v2807
        %2840 = vrot.lane.b32.xlu0 %v2696, 112
        %v2841 = vpop.permute.xlu0 %2840
        %2842 = vrot.lane.b32.xlu0 %v2701, 112
        %v2843 = vpop.permute.xlu0 %2842
        %2844 = vrot.lane.b32.xlu0 %v2704, 112
        %v2845 = vpop.permute.xlu0 %2844
        %2846 = vrot.lane.b32.xlu0 %v2707, 112
        %v2847 = vpop.permute.xlu0 %2846
        %2848 = vrot.lane.b32.xlu0 %v2710, 112
        %v2849 = vpop.permute.xlu0 %2848
        %2850 = vrot.lane.b32.xlu0 %v2713, 112
        %v2851 = vpop.permute.xlu0 %2850
        %2852 = vrot.lane.b32.xlu0 %v2716, 112
        %v2853 = vpop.permute.xlu0 %2852
        %2854 = vrot.lane.b32.xlu0 %v2719, 112
        %v2855 = vpop.permute.xlu0 %2854
        %2856 = vrot.lane.b32.xlu0 %v2722, 112
        %v2857 = vpop.permute.xlu0 %2856
        %2858 = vrot.lane.b32.xlu0 %v2725, 112
        %v2859 = vpop.permute.xlu0 %2858
        %2860 = vrot.lane.b32.xlu0 %v2728, 112
        %v2861 = vpop.permute.xlu0 %2860
        %2862 = vrot.lane.b32.xlu0 %v2731, 112
        %v2863 = vpop.permute.xlu0 %2862
        %2864 = vrot.lane.b32.xlu0 %v2734, 112
        %v2865 = vpop.permute.xlu0 %2864
        %2866 = vrot.lane.b32.xlu0 %v2737, 112
        %v2867 = vpop.permute.xlu0 %2866
        %2868 = vrot.lane.b32.xlu0 %v2740, 112
        %v2869 = vpop.permute.xlu0 %2868
        %2870 = vrot.lane.b32.xlu0 %v2743, 112
        %v2871 = vpop.permute.xlu0 %2870
        %2888 = vrot.lane.b32.xlu0 %v2698, 48
        %v2889 = vpop.permute.xlu0 %2888
        %2890 = vrot.lane.b32.xlu0 %v2747, 48
        %v2891 = vpop.permute.xlu0 %2890
        %2892 = vrot.lane.b32.xlu0 %v2749, 48
        %v2893 = vpop.permute.xlu0 %2892
        %2894 = vrot.lane.b32.xlu0 %v2751, 48
        %v2895 = vpop.permute.xlu0 %2894
        %2896 = vrot.lane.b32.xlu0 %v2753, 48
        %v2897 = vpop.permute.xlu0 %2896
        %2898 = vrot.lane.b32.xlu0 %v2755, 48
        %v2899 = vpop.permute.xlu0 %2898
        %2900 = vrot.lane.b32.xlu0 %v2757, 48
        %v2901 = vpop.permute.xlu0 %2900
        %2902 = vrot.lane.b32.xlu0 %v2759, 48
        %v2903 = vpop.permute.xlu0 %2902
        %2904 = vrot.lane.b32.xlu0 %v2761, 48
        %v2905 = vpop.permute.xlu0 %2904
        %2906 = vrot.lane.b32.xlu0 %v2763, 48
        %v2907 = vpop.permute.xlu0 %2906
        %2908 = vrot.lane.b32.xlu0 %v2765, 48
        %v2909 = vpop.permute.xlu0 %2908
        %2910 = vrot.lane.b32.xlu0 %v2767, 48
        %v2911 = vpop.permute.xlu0 %2910
        %2912 = vrot.lane.b32.xlu0 %v2769, 48
        %v2913 = vpop.permute.xlu0 %2912
        %2914 = vrot.lane.b32.xlu0 %v2771, 48
        %v2915 = vpop.permute.xlu0 %2914
        %2916 = vrot.lane.b32.xlu0 %v2773, 48
        %v2917 = vpop.permute.xlu0 %2916
        %2918 = vrot.lane.b32.xlu0 %v2775, 48
        %v2919 = vpop.permute.xlu0 %2918
        %v2936 = vsel %vm342, %v2841, %v2889
        %v2937 = vsel %vm342, %v2843, %v2891
        %v2938 = vsel %vm342, %v2845, %v2893
        %v2939 = vsel %vm342, %v2847, %v2895
        %v2940 = vsel %vm342, %v2849, %v2897
        %v2941 = vsel %vm342, %v2851, %v2899
        %v2942 = vsel %vm342, %v2853, %v2901
        %v2943 = vsel %vm342, %v2855, %v2903
        %v2944 = vsel %vm342, %v2857, %v2905
        %v2945 = vsel %vm342, %v2859, %v2907
        %v2946 = vsel %vm342, %v2861, %v2909
        %v2947 = vsel %vm342, %v2863, %v2911
        %v2948 = vsel %vm342, %v2865, %v2913
        %v2949 = vsel %vm342, %v2867, %v2915
        %v2950 = vsel %vm342, %v2869, %v2917
        %v2951 = vsel %vm342, %v2871, %v2919
        %2952 = vmatpush.msra.mxu0 %v2951
        %2953 = vmatpush.msra.mxu0 %v2950
        %2954 = vmatpush.msra.mxu0 %v2949
        %2955 = vmatpush.msra.mxu0 %v2948
        %2956 = vmatpush.msra.mxu0 %v2947
        %2957 = vmatpush.msra.mxu0 %v2946
        %2958 = vmatpush.msra.mxu0 %v2945
        %2959 = vmatpush.msra.mxu0 %v2944
        %2960 = vmatpush.msra.mxu0 %v2943
        %2961 = vmatpush.msra.mxu0 %v2942
        %2962 = vmatpush.msra.mxu0 %v2941
        %2963 = vmatpush.msra.mxu0 %v2940
        %2964 = vmatpush.msra.mxu0 %v2939
        %2965 = vmatpush.msra.mxu0 %v2938
        %2966 = vmatpush.msra.mxu0 %v2937
        %2967 = vmatpush.msra.mxu0 %v2936
        %2968 = vmatmul.f32.gmra.mxu0 %v2683
        %v2969 = vpop.f32.mrf.mxu0
        %v2970 = vadd.f32 0.0, %v2969
        %2971 = vdwg.mxu0
        %2972 = vmatpush.msra.mxu0 %v2839
        %2973 = vmatpush.msra.mxu0 %v2838
        %2974 = vmatpush.msra.mxu0 %v2837
        %2975 = vmatpush.msra.mxu0 %v2836
        %2976 = vmatpush.msra.mxu0 %v2835
        %2977 = vmatpush.msra.mxu0 %v2834
        %2978 = vmatpush.msra.mxu0 %v2833
        %2979 = vmatpush.msra.mxu0 %v2832
        %2980 = vmatpush.msra.mxu0 %v2831
        %2981 = vmatpush.msra.mxu0 %v2830
        %2982 = vmatpush.msra.mxu0 %v2829
        %2983 = vmatpush.msra.mxu0 %v2828
        %2984 = vmatpush.msra.mxu0 %v2827
        %2985 = vmatpush.msra.mxu0 %v2826
        %2986 = vmatpush.msra.mxu0 %v2825
        %2987 = vmatpush.msra.mxu0 %v2824
        %2988 = vmatmul.f32.gmra.mxu0 %v2682
        %v2989 = vpop.f32.mrf.mxu0
        %v2990 = vadd.f32 %v2970, %v2989
        %2991 = vdwg.mxu0
        %2992 = vrot.lane.b32.xlu0 %v2696, 96
        %v2993 = vpop.permute.xlu0 %2992
        %2994 = vrot.lane.b32.xlu0 %v2701, 96
        %v2995 = vpop.permute.xlu0 %2994
        %2996 = vrot.lane.b32.xlu0 %v2704, 96
        %v2997 = vpop.permute.xlu0 %2996
        %2998 = vrot.lane.b32.xlu0 %v2707, 96
        %v2999 = vpop.permute.xlu0 %2998
        %3000 = vrot.lane.b32.xlu0 %v2710, 96
        %v3001 = vpop.permute.xlu0 %3000
        %3002 = vrot.lane.b32.xlu0 %v2713, 96
        %v3003 = vpop.permute.xlu0 %3002
        %3004 = vrot.lane.b32.xlu0 %v2716, 96
        %v3005 = vpop.permute.xlu0 %3004
        %3006 = vrot.lane.b32.xlu0 %v2719, 96
        %v3007 = vpop.permute.xlu0 %3006
        %3008 = vrot.lane.b32.xlu0 %v2722, 96
        %v3009 = vpop.permute.xlu0 %3008
        %3010 = vrot.lane.b32.xlu0 %v2725, 96
        %v3011 = vpop.permute.xlu0 %3010
        %3012 = vrot.lane.b32.xlu0 %v2728, 96
        %v3013 = vpop.permute.xlu0 %3012
        %3014 = vrot.lane.b32.xlu0 %v2731, 96
        %v3015 = vpop.permute.xlu0 %3014
        %3016 = vrot.lane.b32.xlu0 %v2734, 96
        %v3017 = vpop.permute.xlu0 %3016
        %3018 = vrot.lane.b32.xlu0 %v2737, 96
        %v3019 = vpop.permute.xlu0 %3018
        %3020 = vrot.lane.b32.xlu0 %v2740, 96
        %v3021 = vpop.permute.xlu0 %3020
        %3022 = vrot.lane.b32.xlu0 %v2743, 96
        %v3023 = vpop.permute.xlu0 %3022
        %3040 = vrot.lane.b32.xlu0 %v2698, 32
        %v3041 = vpop.permute.xlu0 %3040
        %3042 = vrot.lane.b32.xlu0 %v2747, 32
        %v3043 = vpop.permute.xlu0 %3042
        %3044 = vrot.lane.b32.xlu0 %v2749, 32
        %v3045 = vpop.permute.xlu0 %3044
        %3046 = vrot.lane.b32.xlu0 %v2751, 32
        %v3047 = vpop.permute.xlu0 %3046
        %3048 = vrot.lane.b32.xlu0 %v2753, 32
        %v3049 = vpop.permute.xlu0 %3048
        %3050 = vrot.lane.b32.xlu0 %v2755, 32
        %v3051 = vpop.permute.xlu0 %3050
        %3052 = vrot.lane.b32.xlu0 %v2757, 32
        %v3053 = vpop.permute.xlu0 %3052
        %3054 = vrot.lane.b32.xlu0 %v2759, 32
        %v3055 = vpop.permute.xlu0 %3054
        %3056 = vrot.lane.b32.xlu0 %v2761, 32
        %v3057 = vpop.permute.xlu0 %3056
        %3058 = vrot.lane.b32.xlu0 %v2763, 32
        %v3059 = vpop.permute.xlu0 %3058
        %3060 = vrot.lane.b32.xlu0 %v2765, 32
        %v3061 = vpop.permute.xlu0 %3060
        %3062 = vrot.lane.b32.xlu0 %v2767, 32
        %v3063 = vpop.permute.xlu0 %3062
        %3064 = vrot.lane.b32.xlu0 %v2769, 32
        %v3065 = vpop.permute.xlu0 %3064
        %3066 = vrot.lane.b32.xlu0 %v2771, 32
        %v3067 = vpop.permute.xlu0 %3066
        %3068 = vrot.lane.b32.xlu0 %v2773, 32
        %v3069 = vpop.permute.xlu0 %3068
        %3070 = vrot.lane.b32.xlu0 %v2775, 32
        %v3071 = vpop.permute.xlu0 %3070
        %v3088 = vsel %vm342, %v2993, %v3041
        %v3089 = vsel %vm342, %v2995, %v3043
        %v3090 = vsel %vm342, %v2997, %v3045
        %v3091 = vsel %vm342, %v2999, %v3047
        %v3092 = vsel %vm342, %v3001, %v3049
        %v3093 = vsel %vm342, %v3003, %v3051
        %v3094 = vsel %vm342, %v3005, %v3053
        %v3095 = vsel %vm342, %v3007, %v3055
        %v3096 = vsel %vm342, %v3009, %v3057
        %v3097 = vsel %vm342, %v3011, %v3059
        %v3098 = vsel %vm342, %v3013, %v3061
        %v3099 = vsel %vm342, %v3015, %v3063
        %v3100 = vsel %vm342, %v3017, %v3065
        %v3101 = vsel %vm342, %v3019, %v3067
        %v3102 = vsel %vm342, %v3021, %v3069
        %v3103 = vsel %vm342, %v3023, %v3071
        %3104 = vmatpush.msra.mxu0 %v3103
        %3105 = vmatpush.msra.mxu0 %v3102
        %3106 = vmatpush.msra.mxu0 %v3101
        %3107 = vmatpush.msra.mxu0 %v3100
        %3108 = vmatpush.msra.mxu0 %v3099
        %3109 = vmatpush.msra.mxu0 %v3098
        %3110 = vmatpush.msra.mxu0 %v3097
        %3111 = vmatpush.msra.mxu0 %v3096
        %3112 = vmatpush.msra.mxu0 %v3095
        %3113 = vmatpush.msra.mxu0 %v3094
        %3114 = vmatpush.msra.mxu0 %v3093
        %3115 = vmatpush.msra.mxu0 %v3092
        %3116 = vmatpush.msra.mxu0 %v3091
        %3117 = vmatpush.msra.mxu0 %v3090
        %3118 = vmatpush.msra.mxu0 %v3089
        %3119 = vmatpush.msra.mxu0 %v3088
        %3120 = vmatmul.f32.gmra.mxu0 %v2684
        %v3121 = vpop.f32.mrf.mxu0
        %v3122 = vadd.f32 0.0, %v3121
        %3123 = vdwg.mxu0
        %v3124 = vadd.f32 %v2990, %v3122
        %3125 = vrot.lane.b32.xlu0 %v2696, 80
        %v3126 = vpop.permute.xlu0 %3125
        %3127 = vrot.lane.b32.xlu0 %v2701, 80
        %v3128 = vpop.permute.xlu0 %3127
        %3129 = vrot.lane.b32.xlu0 %v2704, 80
        %v3130 = vpop.permute.xlu0 %3129
        %3134 = vrot.lane.b32.xlu0 %v2698, 16
        %v3135 = vpop.permute.xlu0 %3134
        %3136 = vrot.lane.b32.xlu0 %v2747, 16
        %v3137 = vpop.permute.xlu0 %3136
        %3138 = vrot.lane.b32.xlu0 %v2749, 16
        %v3139 = vpop.permute.xlu0 %3138
        %v3143 = vsel %vm342, %v3126, %v3135
        %v3144 = vsel %vm342, %v3128, %v3137
        %v3145 = vsel %vm342, %v3130, %v3139
        %v3147 = vsel %vm665, %v2685, 0
        %3149 = vmatpush.msra.mxu0 0.0
        %3150 = vmatpush.msra.mxu0 0.0
        %3151 = vmatpush.msra.mxu0 0.0
        %3152 = vmatpush.msra.mxu0 0.0
        %3153 = vmatpush.msra.mxu0 0.0
        %3154 = vmatpush.msra.mxu0 0.0
        %3155 = vmatpush.msra.mxu0 0.0
        %3156 = vmatpush.msra.mxu0 0.0
        %3157 = vmatpush.msra.mxu0 0.0
        %3158 = vmatpush.msra.mxu0 0.0
        %3159 = vmatpush.msra.mxu0 0.0
        %3160 = vmatpush.msra.mxu0 0.0
        %3161 = vmatpush.msra.mxu0 0.0
        %3162 = vmatpush.msra.mxu0 %v3145
        %3163 = vmatpush.msra.mxu0 %v3144
        %3164 = vmatpush.msra.mxu0 %v3143
        %3165 = vmatmul.f32.gmra.mxu0 %v3147
        %v3166 = vpop.f32.mrf.mxu0
        %v3167 = vadd.f32 0.0, %v3166
        %3168 = vdwg.mxu0
        %v3169 = vadd.f32 %v3124, %v3167
        %3171 = vset.pattern.permute.xlu0 0
        %3172 = vperm.xlu0 %3171, %v2687
        %v3173 = vpop.permute.xlu0 %3172
        %v3175 = vadd.f32 %v3169, %v3173
        %vm3176 = vcmask 516096
        %3177 = vst.msk [vmem:[%s179] sm:$0x1] %vm3176, %v3175
        %3179 = vrot.lane.b32.xlu0 %v3175, 64
        %v3180 = vpop.permute.xlu0 %3179
        %s3182 = scalar_lea.vmem %s179, 1 [#allocation5]
        %3183 = vst.msk [vmem:[%s3182] sm:$0x1] %vm3176, %v3180
        %s3184 = sand.u32 %s94, 1
        %s3185 = scalar_lea.sflag [#allocation4], %s3184
        %s3186 = sand.u32 %s94, 1
        %s3187 = smul.addr %s3186, 2
        %s3188 = scalar_lea.vmem [#allocation5], %s3187
        // Predicated region
        $region37: #{tpu_custom_call.1} parent=31 // pred_check
          %p3189 = pneg %p104
        $region38: #{tpu_custom_call.1} parent=31 // pred_check_branch
          %3191 = sbr.rel (%p3189) target = $region40
        $region39: #{tpu_custom_call.1} parent=31 // pred_region
          %s3192 = smul.u32 2, %s18
          %3194 = vsyncadd %s3185, 0
          %s3195 = scalar_lea.hbm %s3, %s3192
          %s3196 = sshll.u32 %s3188, 4
          %s3197 = int_to_ptr.vmem [resolvable:$true] %s3196
          %s3198 = sshll.u32 %s3195, 4
          %s3199 = int_to_ptr.hbm [resolvable:$true] %s3198
          %3204 = dma.vmem_to_hbm [thread:$0]  %s3197, 32, %s3199, %s3185, 16, 16, 1
        $region40: #{tpu_custom_call.1} parent=31 // pred_fallthru
          _
      $region32: #{tpu_custom_call.1} parent=5 // pred_fallthru
        _
      %p3205 = scmp.le.s32.totalorder 2, %s13
      // Predicated region
      $region41: #{tpu_custom_call.1} parent=5 // pred_check
        %p3206 = pneg %p3205
      $region42: #{tpu_custom_call.1} parent=5 // pred_check_branch
        %3208 = sbr.rel (%p3206) target = $region44
      $region43: #{tpu_custom_call.1} parent=5 // pred_region
        %s3209 = ssub.s32 %s13, 2
        // Predicated region
        $region45: #{tpu_custom_call.1} parent=43 // pred_check
          %p3210 = pneg %p110
        $region46: #{tpu_custom_call.1} parent=43 // pred_check_branch
          %3212 = sbr.rel (%p3210) target = $region48
        $region47: #{tpu_custom_call.1} parent=43 // pred_region
          %s3213 = sand.u32 %s95, 1
          %s3214 = scalar_lea.sflag [#allocation4], %s3213
          %s3215 = sand.u32 %s95, 1
          %s3216 = smul.addr %s3215, 2
          %s3217 = scalar_lea.vmem [#allocation5], %s3216
          %3219 = dma.done %s3214, 32
        $region48: #{tpu_custom_call.1} parent=43 // pred_fallthru
          _
      $region44: #{tpu_custom_call.1} parent=5 // pred_fallthru
        _
    $region6: #{tpu_custom_call.1} parent=1 // loop_footer
      %s17 = sadd.s32 1, %s13
    $region7: #{tpu_custom_call.1} parent=1 // loop_footer_branch
      %12 = sbr.rel target = $region3
    $region8: #{tpu_custom_call.1} parent=1 // loop_exit
      _
    %3220 = vsyncpa [#allocation3], 1
    %s3221 = scalar_lea.sflag [#allocation3], 1
    %3222 = vsyncpa %s3221, 1
    %3223 = vsyncpa [#allocation4], 1
    %s3224 = scalar_lea.sflag [#allocation4], 1
    %3225 = vsyncpa %s3224, 1

</llo_original>
